<compile_context>
chip_gen: v5e
topology: v5e:2x2
jax: 0.10.0
libtpu: 0.0.40
codegen_flags: <defaults>
</compile_context>

<pallas_src>
import functools

import jax
import jax.numpy as jnp
from jax.experimental import pallas as pl
from jax.experimental.pallas import tpu as pltpu


# ---------------------------------------------------------------------------
# Kernel
# ---------------------------------------------------------------------------
def _gin_kernel(x_ref, addend_ref, wexp_ref, w1_ref, b1_ref, w2_ref, b2_ref,
                out_ref, *, num_layers, b_tile, n_pad, n_real, fully_connected,
                mxu_dtype):
    """One grid step == `b_tile` graphs flattened into an (M, .) slab, M = b_tile*n_pad."""
    m = b_tile * n_pad
    hdim = wexp_ref.shape[-1]

    def mm(a, w):
        # bf16 at the MXU boundary (v6e/v7x win), f32 accumulation; elementwise math
        # stays f32 so v5e (no bf16 VPU/EUP) never pays conversion costs.
        return jnp.dot(a.astype(mxu_dtype), w.astype(mxu_dtype),
                       preferred_element_type=jnp.float32)

    # expander Linear; expander bias + positional encoding are pre-folded into `addend`
    h = mm(x_ref[...], wexp_ref[...]) + addend_ref[...]              # (M, H) f32

    # node index within its graph: masks for chain-roll wrap-around and node padding
    node = jax.lax.broadcasted_iota(jnp.int32, (m, hdim), 0) % n_pad
    valid = node < n_real                                            # False on zero-pad rows
    is_first = node == 0
    is_last = node == n_real - 1

    def per_graph_sum(v):
        # (M, H) -> (b_tile, H): sublane reduction over the n_pad rows of each graph.
        # n_pad is a multiple of 8, so the reshape stays on vreg-tile boundaries and the
        # previous revision's one-hot pooling matmul (94% zeros on the MXU) disappears.
        return jnp.where(valid, v, 0.0).reshape(b_tile, n_pad, hdim).sum(axis=1)

    for layer in range(num_layers):                                  # static unroll, L small
        if fully_connected:
            # meshgrid edge_index includes self loops: agg_i = sum over all nodes of its graph
            graph_sum = per_graph_sum(h)                             # (b_tile, H)
            agg = jnp.broadcast_to(graph_sum[:, None, :],
                                   (b_tile, n_pad, hdim)).reshape(m, hdim)
        else:
            # undirected chain: agg_i = h_{i-1} + h_{i+1}   (XLU rolls overlap with MXU work)
            h_prev = pltpu.roll(h, 1, axis=0)                        # row i <- h[i-1]
            h_next = pltpu.roll(h, m - 1, axis=0)                    # row i <- h[i+1]
            agg = (jnp.where(is_first, 0.0, h_prev)
                   + jnp.where(is_last, 0.0, h_next))
        z = h + agg                                                  # (1+eps)*x_i + sum_j x_j, eps=0
        z1 = jnp.maximum(mm(z, w1_ref[layer]) + b1_ref[layer], 0.0)  # MLP inner ReLU
        h_new = mm(z1, w2_ref[layer]) + b2_ref[layer]                # plain_last: no activation
        h = jnp.maximum(h_new, 0.0) if layer < num_layers - 1 else h_new

    # per-graph sum pooling -> lane-dense (b_tile, H); the tiny H->C head runs in XLA.
    out_ref[...] = per_graph_sum(h)


# ---------------------------------------------------------------------------
# Tiling / VMEM helpers
# ---------------------------------------------------------------------------
def _vmem_capacity_bytes():
    """Per-TensorCore VMEM capacity; conservative fallback if introspection is unavailable."""
    try:
        return int(pltpu.get_tpu_info().vmem_capacity_bytes)
    except Exception:
        return 64 << 20        # v7x per-core physical VMEM (smallest current generation)


def _pick_batch_tile(batch, n_pad, target_rows=256, min_grid=4, rows_cap=None):
    """Pick the batch tile b_tile such that:
       * b_tile divides the batch,
       * the (b_tile, H) output block is sublane-tileable (b_tile % 8 == 0 or == batch),
       * the slab has roughly `target_rows` rows (amortises ~0.35us/step overhead and
         fills the 256-row MXU on v6e/v7x) without exceeding the VMEM-derived row cap,
       * at least `min_grid` grid steps remain when the batch allows it (>= 2 steps per
         v7x TensorCore), preferring an even grid for a balanced megacore split.
    """
    if rows_cap is None:
        rows_cap = target_rows
    rows_cap = max(n_pad, min(target_rows, rows_cap))
    best, best_score = batch, None
    for bt in range(1, batch + 1):
        if batch % bt:
            continue
        if bt % 8 != 0 and bt != batch:
            continue                      # keep the (bt, H) output block tileable
        grid = batch // bt
        score = (bt * n_pad <= rows_cap,  # fits the per-step row budget
                 min(grid, min_grid),     # keep enough steps for pipelining / 2 TCs
                 grid % 2 == 0,           # even grid: balanced v7x megacore split
                 bt)                      # then as large as possible
        if best_score is None or score > best_score:
            best, best_score = bt, score
    return best


# ---------------------------------------------------------------------------
# Wrapper
# ---------------------------------------------------------------------------
def gin_pooled_features(x, params, pe, *, num_layers, fully_connected=False,
                        b_tile=None, target_rows=256, mxu_dtype=jnp.float32):
    """Expander + positional encoding + GIN convs + per-graph sum pooling, in one kernel.

    Returns (B, H) pooled features; the tiny H -> num_classes head runs in XLA.
    """
    B, N, D_in = x.shape
    H = params["w_exp"].shape[1]

    # pad the node dimension to a sublane multiple; pad rows are masked inside the kernel
    n_pad = -(-N // 8) * 8
    if n_pad != N:
        x = jnp.pad(x, ((0, 0), (0, n_pad - N), (0, 0)))
        pe = jnp.pad(pe, ((0, n_pad - N), (0, 0)))

    # generation-aware slab sizing: derive the per-step row budget from this chip's VMEM
    vmem_cap = _vmem_capacity_bytes()
    bytes_per_row = 4 * (D_in + 5 * H) * 2           # x + addend + ~4 live (.,H) temps, 2 buffers
    rows_cap = max(n_pad, (vmem_cap // 2) // max(1, bytes_per_row))
    if b_tile is None:
        b_tile = _pick_batch_tile(B, n_pad, target_rows=target_rows, rows_cap=rows_cap)
    assert B % b_tile == 0, "batch must be divisible by the batch tile"
    M = b_tile * n_pad

    # flatten graphs into rows; contiguous reshape is free in XLA
    x2d = x.reshape(B * n_pad, D_in)

    # positional encoding tiled over the graphs of one slab, expander bias folded in
    addend = jnp.tile(pe, (b_tile, 1)) + params["b_exp"]             # (M, H) f32

    wexp, w1, w2 = params["w_exp"], params["w1"], params["w2"]
    if mxu_dtype != jnp.float32:
        # cast weights once in the wrapper: halves their DMA bytes and VMEM footprint
        wexp, w1, w2 = (t.astype(mxu_dtype) for t in (wexp, w1, w2))
    b1, b2 = params["b1"], params["b2"]                              # biases stay f32

    kernel = functools.partial(
        _gin_kernel, num_layers=num_layers, b_tile=b_tile, n_pad=n_pad, n_real=N,
        fully_connected=fully_connected, mxu_dtype=mxu_dtype)

    vmem_limit = int(min(vmem_cap // 2, 64 << 20))

    def call(single_buffer_consts):
        if single_buffer_consts:
            # constant-index blocks are never re-fetched across the grid: single-buffer them
            def const_spec(shape, index_map):
                return pl.BlockSpec(shape, index_map, pipeline_mode=pl.Buffered(1))
        else:
            const_spec = pl.BlockSpec
        return pl.pallas_call(
            kernel,
            out_shape=jax.ShapeDtypeStruct((B, H), jnp.float32),
            grid_spec=pltpu.PrefetchScalarGridSpec(
                num_scalar_prefetch=0,
                grid=(B // b_tile,),
                in_specs=[
                    pl.BlockSpec((M, D_in), lambda b: (b, 0)),           # x slab (per step)
                    const_spec((M, H), lambda b: (0, 0)),                # pos. enc. + expander bias
                    const_spec((D_in, H), lambda b: (0, 0)),             # expander W
                    const_spec((num_layers, H, H), lambda b: (0, 0, 0)), # GIN MLP W1 (all layers)
                    const_spec((num_layers, 1, H), lambda b: (0, 0, 0)), # GIN MLP b1
                    const_spec((num_layers, H, H), lambda b: (0, 0, 0)), # GIN MLP W2
                    const_spec((num_layers, 1, H), lambda b: (0, 0, 0)), # GIN MLP b2
                ],
                out_specs=pl.BlockSpec((b_tile, H), lambda b: (b, 0)),   # lane-dense pooled feats
            ),
            compiler_params=pltpu.CompilerParams(
                dimension_semantics=("parallel",),     # megacore-shardable grid axis on v7x
                vmem_limit_bytes=vmem_limit),
        )(x2d, addend, wexp, w1, b1, w2, b2)

    try:
        return call(True)
    except Exception:
        # Older jax builds may reject pipeline_mode=pl.Buffered(1); fall back to default
        # double-buffering (only a few tens of KiB extra VMEM at these sizes).
        return call(False)


def gin_forward(x, params, pe, *, num_layers, fully_connected=False, b_tile=None,
                target_rows=256, mxu_dtype=jnp.float32):
    pooled = gin_pooled_features(x, params, pe, num_layers=num_layers,
                                 fully_connected=fully_connected, b_tile=b_tile,
                                 target_rows=target_rows, mxu_dtype=mxu_dtype)
    # classifier head: tiny (B, H) @ (H, C) — cheap and lane-dense as a plain XLA matmul
    return jnp.dot(pooled, params["w_fc"],
                   precision=jax.lax.Precision.HIGHEST) + params["b_fc"]


# ---------------------------------------------------------------------------
# Parameter / input construction + pure-JAX reference
# ---------------------------------------------------------------------------
def make_positional_encoding(n, d_model):
    position = jnp.arange(n, dtype=jnp.float32)[:, None]                       # (n, 1)
    div_term = jnp.exp(jnp.arange(0, d_model, 2, dtype=jnp.float32)
                       * (-jnp.log(10000.0) / d_model))                        # (d/2,)
    pe = jnp.zeros((n, d_model), jnp.float32)
    pe = pe.at[:, 0::2].set(jnp.sin(position * div_term))
    pe = pe.at[:, 1::2].set(jnp.cos(position * div_term))
    return pe


def make_adjacency(n, fully_connected=False):
    if fully_connected:
        # meshgrid edge_index includes self-loops (i, i)
        return jnp.ones((n, n), jnp.float32)
    idx = jnp.arange(n)
    return (jnp.abs(idx[:, None] - idx[None, :]) == 1).astype(jnp.float32)     # undirected chain


def init_params(key, input_size, hidden_size, num_layers, num_classes):
    ks = jax.random.split(key, 10)
    def u(k, shape, fan_in):
        bound = 1.0 / jnp.sqrt(jnp.float32(fan_in))
        return jax.random.uniform(k, shape, jnp.float32, -bound, bound)
    return {
        "w_exp": u(ks[0], (input_size, hidden_size), input_size),
        "b_exp": u(ks[1], (1, hidden_size), input_size),
        "w1":    u(ks[2], (num_layers, hidden_size, hidden_size), hidden_size),
        "b1":    u(ks[3], (num_layers, 1, hidden_size), hidden_size),
        "w2":    u(ks[4], (num_layers, hidden_size, hidden_size), hidden_size),
        "b2":    u(ks[5], (num_layers, 1, hidden_size), hidden_size),
        "w_fc":  u(ks[6], (hidden_size, num_classes), hidden_size),
        "b_fc":  u(ks[7], (1, num_classes), hidden_size),
    }


def gin_forward_ref(x, params, pe, *, num_layers, fully_connected=False):
    """Pure-JAX (f32, highest precision) reference of the same math."""
    hp = jax.lax.Precision.HIGHEST
    N = x.shape[1]
    adjacency = make_adjacency(N, fully_connected)
    h = jnp.einsum("bnd,dh->bnh", x, params["w_exp"], precision=hp) + params["b_exp"]
    h = h + pe[None]
    for l in range(num_layers):
        agg = jnp.einsum("ij,bjh->bih", adjacency, h, precision=hp)
        z = h + agg
        z1 = jax.nn.relu(jnp.einsum("bnh,hk->bnk", z, params["w1"][l], precision=hp)
                         + params["b1"][l])
        h_new = jnp.einsum("bnh,hk->bnk", z1, params["w2"][l], precision=hp) + params["b2"][l]
        h = jax.nn.relu(h_new) if l < num_layers - 1 else h_new
    pooled = jnp.sum(h, axis=1)
    return jnp.dot(pooled, params["w_fc"], precision=hp) + params["b_fc"]


# ---------------------------------------------------------------------------
# Demo / self-test
# ---------------------------------------------------------------------------
if __name__ == "__main__":
    key = jax.random.PRNGKey(0)
    k_x, k_p, k_x2 = jax.random.split(key, 3)

    # 128 chain graphs of 8 nodes: b_tile=32 -> 256-row slabs, grid=(4,) (2 steps / v7x core)
    B, N, D_IN = 128, 8, 4
    HIDDEN, NUM_LAYERS, NUM_CLASSES = 32, 2, 3

    x = jax.random.normal(k_x, (B, N, D_IN), jnp.float32)
    params = init_params(k_p, D_IN, HIDDEN, NUM_LAYERS, NUM_CLASSES)
    pe = make_positional_encoding(N, HIDDEN)

    ref = gin_forward_ref(x, params, pe, num_layers=NUM_LAYERS)

    # 1) f32-MXU path: matches the module semantics tightly
    out = jax.block_until_ready(gin_forward(x, params, pe, num_layers=NUM_LAYERS))
    assert out.shape == (B, NUM_CLASSES)
    err = float(jnp.max(jnp.abs(out - ref)))
    assert err < 1e-3, err

    # 2) bf16-at-the-MXU-boundary path (v6e/v7x optimization), f32 accumulation
    out_bf16 = jax.block_until_ready(
        gin_forward(x, params, pe, num_layers=NUM_LAYERS, mxu_dtype=jnp.bfloat16))
    tol = 5e-2 * max(1.0, float(jnp.max(jnp.abs(ref))))
    err_bf16 = float(jnp.max(jnp.abs(out_bf16 - ref)))
    assert err_bf16 < tol, (err_bf16, tol)

    # 3) fully-connected variant with a non-8-aligned node count (exercises node padding)
    B2, N2 = 64, 5
    x2 = jax.random.normal(k_x2, (B2, N2, D_IN), jnp.float32)
    pe2 = make_positional_encoding(N2, HIDDEN)
    out_fc = jax.block_until_ready(
        gin_forward(x2, params, pe2, num_layers=NUM_LAYERS, fully_connected=True))
    ref_fc = gin_forward_ref(x2, params, pe2, num_layers=NUM_LAYERS, fully_connected=True)
    err_fc = float(jnp.max(jnp.abs(out_fc - ref_fc)))
    assert err_fc < 1e-3, err_fc

    print("KERNEL_OK")
</pallas_src>

<mosaic_0001>
module attributes {stable_mosaic.version = 11 : i64} {
  func.func @_gin_kernel(%arg0: i32, %arg1: memref<256x4xf32, #tpu.memory_space<vmem>>, %arg2: memref<256x32xf32, #tpu.memory_space<vmem>>, %arg3: memref<4x32xf32, #tpu.memory_space<vmem>>, %arg4: memref<2x32x32xf32, #tpu.memory_space<vmem>>, %arg5: memref<2x1x32xf32, #tpu.memory_space<vmem>>, %arg6: memref<2x32x32xf32, #tpu.memory_space<vmem>>, %arg7: memref<2x1x32xf32, #tpu.memory_space<vmem>>, %arg8: memref<32x32xf32, #tpu.memory_space<vmem>>) attributes {dimension_semantics = [#tpu.dimension_semantics<parallel>], iteration_bounds = array<i64: 4>, scalar_prefetch = 0 : i64, scratch_operands = 0 : i64, tpu.core_type = #tpu.core_type<tc>, window_params = [{transform_indices = @transform_0, window_bounds = array<i64: 256, 4>}, {pipeline_mode = #tpu.pipeline_mode<synchronous>, transform_indices = @transform_1, window_bounds = array<i64: 256, 32>}, {pipeline_mode = #tpu.pipeline_mode<synchronous>, transform_indices = @transform_2, window_bounds = array<i64: 4, 32>}, {pipeline_mode = #tpu.pipeline_mode<synchronous>, transform_indices = @transform_3, window_bounds = array<i64: 2, 32, 32>}, {pipeline_mode = #tpu.pipeline_mode<synchronous>, transform_indices = @transform_4, window_bounds = array<i64: 2, 1, 32>}, {pipeline_mode = #tpu.pipeline_mode<synchronous>, transform_indices = @transform_5, window_bounds = array<i64: 2, 32, 32>}, {pipeline_mode = #tpu.pipeline_mode<synchronous>, transform_indices = @transform_6, window_bounds = array<i64: 2, 1, 32>}, {transform_indices = @transform_7, window_bounds = array<i64: 32, 32>}]} {
    %c0 = arith.constant 0 : index
    %c0_0 = arith.constant 0 : index
    %0 = vector.load %arg1[%c0, %c0_0] : memref<256x4xf32, #tpu.memory_space<vmem>>, vector<256x4xf32>
    %c0_1 = arith.constant 0 : index
    %c0_2 = arith.constant 0 : index
    %1 = vector.load %arg3[%c0_1, %c0_2] : memref<4x32xf32, #tpu.memory_space<vmem>>, vector<4x32xf32>
    %cst = arith.constant dense<0.000000e+00> : vector<256x32xf32>
    %2 = tpu.matmul %0, %1, %cst {dimension_numbers = #tpu.dot_dimension_numbers<[1], [0], [0], [1], [0, 0, 1, 1], [], []>} : vector<256x4xf32>, vector<4x32xf32>, vector<256x32xf32> -> vector<256x32xf32>
    %c0_3 = arith.constant 0 : index
    %c0_4 = arith.constant 0 : index
    %3 = vector.load %arg2[%c0_3, %c0_4] : memref<256x32xf32, #tpu.memory_space<vmem>>, vector<256x32xf32>
    %4 = arith.addf %2, %3 : vector<256x32xf32>
    %5 = tpu.iota {dimensions = array<i32: 0>} : vector<256x32xi32>
    %c8_i32 = arith.constant 8 : i32
    %c0_i32 = arith.constant 0 : i32
    %6 = arith.cmpi eq, %c8_i32, %c0_i32 : i32
    %c1_i32 = arith.constant 1 : i32
    %7 = arith.select %6, %c1_i32, %c8_i32 : i32
    %8 = vector.broadcast %7 : i32 to vector<256x32xi32>
    %9 = arith.remsi %5, %8 : vector<256x32xi32>
    %c0_i32_5 = arith.constant 0 : i32
    %10 = vector.broadcast %c0_i32_5 : i32 to vector<256x32xi32>
    %11 = arith.cmpi ne, %9, %10 : vector<256x32xi32>
    %c0_i32_6 = arith.constant 0 : i32
    %12 = vector.broadcast %c0_i32_6 : i32 to vector<256x32xi32>
    %13 = arith.cmpi slt, %9, %12 : vector<256x32xi32>
    %c0_i32_7 = arith.constant 0 : i32
    %14 = arith.cmpi slt, %7, %c0_i32_7 : i32
    %15 = vector.broadcast %14 : i1 to vector<256x32xi1>
    %16 = vector.broadcast %15 : vector<256x32xi1> to vector<256x32xi1>
    %17 = arith.xori %13, %16 : vector<256x32xi1>
    %18 = arith.andi %17, %11 : vector<256x32xi1>
    %19 = vector.broadcast %7 : i32 to vector<256x32xi32>
    %20 = arith.addi %9, %19 : vector<256x32xi32>
    %21 = arith.select %18, %20, %9 : vector<256x32xi1>, vector<256x32xi32>
    %c8_i32_8 = arith.constant 8 : i32
    %22 = vector.broadcast %c8_i32_8 : i32 to vector<256x32xi32>
    %23 = arith.cmpi slt, %21, %22 : vector<256x32xi32>
    %c0_i32_9 = arith.constant 0 : i32
    %24 = vector.broadcast %c0_i32_9 : i32 to vector<256x32xi32>
    %25 = arith.cmpi eq, %21, %24 : vector<256x32xi32>
    %c7_i32 = arith.constant 7 : i32
    %26 = vector.broadcast %c7_i32 : i32 to vector<256x32xi32>
    %27 = arith.cmpi eq, %21, %26 : vector<256x32xi32>
    %c1_i32_10 = arith.constant 1 : i32
    %28 = tpu.dynamic_rotate %4 by %c1_i32_10 dim 0 : vector<256x32xf32>, i32 -> vector<256x32xf32>
    %c255_i32 = arith.constant 255 : i32
    %29 = tpu.dynamic_rotate %4 by %c255_i32 dim 0 : vector<256x32xf32>, i32 -> vector<256x32xf32>
    %cst_11 = arith.constant 0.000000e+00 : f32
    %30 = vector.broadcast %cst_11 : f32 to vector<256x32xf32>
    %31 = arith.select %25, %30, %28 : vector<256x32xi1>, vector<256x32xf32>
    %cst_12 = arith.constant 0.000000e+00 : f32
    %32 = vector.broadcast %cst_12 : f32 to vector<256x32xf32>
    %33 = arith.select %27, %32, %29 : vector<256x32xi1>, vector<256x32xf32>
    %34 = arith.addf %31, %33 : vector<256x32xf32>
    %35 = arith.addf %4, %34 : vector<256x32xf32>
    %c0_13 = arith.constant 0 : index
    %c0_14 = arith.constant 0 : index
    %c0_15 = arith.constant 0 : index
    %36 = vector.load %arg4[%c0_13, %c0_14, %c0_15] : memref<2x32x32xf32, #tpu.memory_space<vmem>>, vector<1x32x32xf32>
    %37 = vector.shape_cast %36 : vector<1x32x32xf32> to vector<32x32xf32>
    %cst_16 = arith.constant dense<0.000000e+00> : vector<256x32xf32>
    %38 = tpu.matmul %35, %37, %cst_16 {dimension_numbers = #tpu.dot_dimension_numbers<[1], [0], [0], [1], [0, 0, 1, 1], [], []>} : vector<256x32xf32>, vector<32x32xf32>, vector<256x32xf32> -> vector<256x32xf32>
    %c0_17 = arith.constant 0 : index
    %c0_18 = arith.constant 0 : index
    %c0_19 = arith.constant 0 : index
    %39 = vector.load %arg5[%c0_17, %c0_18, %c0_19] : memref<2x1x32xf32, #tpu.memory_space<vmem>>, vector<1x1x32xf32>
    %40 = vector.shape_cast %39 : vector<1x1x32xf32> to vector<1x32xf32>
    %41 = vector.broadcast %40 : vector<1x32xf32> to vector<256x32xf32>
    %42 = arith.addf %38, %41 : vector<256x32xf32>
    %cst_20 = arith.constant 0.000000e+00 : f32
    %43 = vector.broadcast %cst_20 : f32 to vector<256x32xf32>
    %44 = arith.maximumf %42, %43 : vector<256x32xf32>
    %c0_21 = arith.constant 0 : index
    %c0_22 = arith.constant 0 : index
    %c0_23 = arith.constant 0 : index
    %45 = vector.load %arg6[%c0_21, %c0_22, %c0_23] : memref<2x32x32xf32, #tpu.memory_space<vmem>>, vector<1x32x32xf32>
    %46 = vector.shape_cast %45 : vector<1x32x32xf32> to vector<32x32xf32>
    %cst_24 = arith.constant dense<0.000000e+00> : vector<256x32xf32>
    %47 = tpu.matmul %44, %46, %cst_24 {dimension_numbers = #tpu.dot_dimension_numbers<[1], [0], [0], [1], [0, 0, 1, 1], [], []>} : vector<256x32xf32>, vector<32x32xf32>, vector<256x32xf32> -> vector<256x32xf32>
    %c0_25 = arith.constant 0 : index
    %c0_26 = arith.constant 0 : index
    %c0_27 = arith.constant 0 : index
    %48 = vector.load %arg7[%c0_25, %c0_26, %c0_27] : memref<2x1x32xf32, #tpu.memory_space<vmem>>, vector<1x1x32xf32>
    %49 = vector.shape_cast %48 : vector<1x1x32xf32> to vector<1x32xf32>
    %50 = vector.broadcast %49 : vector<1x32xf32> to vector<256x32xf32>
    %51 = arith.addf %47, %50 : vector<256x32xf32>
    %cst_28 = arith.constant 0.000000e+00 : f32
    %52 = vector.broadcast %cst_28 : f32 to vector<256x32xf32>
    %53 = arith.maximumf %51, %52 : vector<256x32xf32>
    %c1_i32_29 = arith.constant 1 : i32
    %54 = tpu.dynamic_rotate %53 by %c1_i32_29 dim 0 : vector<256x32xf32>, i32 -> vector<256x32xf32>
    %c255_i32_30 = arith.constant 255 : i32
    %55 = tpu.dynamic_rotate %53 by %c255_i32_30 dim 0 : vector<256x32xf32>, i32 -> vector<256x32xf32>
    %cst_31 = arith.constant 0.000000e+00 : f32
    %56 = vector.broadcast %cst_31 : f32 to vector<256x32xf32>
    %57 = arith.select %25, %56, %54 : vector<256x32xi1>, vector<256x32xf32>
    %cst_32 = arith.constant 0.000000e+00 : f32
    %58 = vector.broadcast %cst_32 : f32 to vector<256x32xf32>
    %59 = arith.select %27, %58, %55 : vector<256x32xi1>, vector<256x32xf32>
    %60 = arith.addf %57, %59 : vector<256x32xf32>
    %61 = arith.addf %53, %60 : vector<256x32xf32>
    %c1 = arith.constant 1 : index
    %c0_33 = arith.constant 0 : index
    %c0_34 = arith.constant 0 : index
    %62 = vector.load %arg4[%c1, %c0_33, %c0_34] : memref<2x32x32xf32, #tpu.memory_space<vmem>>, vector<1x32x32xf32>
    %63 = vector.shape_cast %62 : vector<1x32x32xf32> to vector<32x32xf32>
    %cst_35 = arith.constant dense<0.000000e+00> : vector<256x32xf32>
    %64 = tpu.matmul %61, %63, %cst_35 {dimension_numbers = #tpu.dot_dimension_numbers<[1], [0], [0], [1], [0, 0, 1, 1], [], []>} : vector<256x32xf32>, vector<32x32xf32>, vector<256x32xf32> -> vector<256x32xf32>
    %c1_36 = arith.constant 1 : index
    %c0_37 = arith.constant 0 : index
    %c0_38 = arith.constant 0 : index
    %65 = vector.load %arg5[%c1_36, %c0_37, %c0_38] : memref<2x1x32xf32, #tpu.memory_space<vmem>>, vector<1x1x32xf32>
    %66 = vector.shape_cast %65 : vector<1x1x32xf32> to vector<1x32xf32>
    %67 = vector.broadcast %66 : vector<1x32xf32> to vector<256x32xf32>
    %68 = arith.addf %64, %67 : vector<256x32xf32>
    %cst_39 = arith.constant 0.000000e+00 : f32
    %69 = vector.broadcast %cst_39 : f32 to vector<256x32xf32>
    %70 = arith.maximumf %68, %69 : vector<256x32xf32>
    %c1_40 = arith.constant 1 : index
    %c0_41 = arith.constant 0 : index
    %c0_42 = arith.constant 0 : index
    %71 = vector.load %arg6[%c1_40, %c0_41, %c0_42] : memref<2x32x32xf32, #tpu.memory_space<vmem>>, vector<1x32x32xf32>
    %72 = vector.shape_cast %71 : vector<1x32x32xf32> to vector<32x32xf32>
    %cst_43 = arith.constant dense<0.000000e+00> : vector<256x32xf32>
    %73 = tpu.matmul %70, %72, %cst_43 {dimension_numbers = #tpu.dot_dimension_numbers<[1], [0], [0], [1], [0, 0, 1, 1], [], []>} : vector<256x32xf32>, vector<32x32xf32>, vector<256x32xf32> -> vector<256x32xf32>
    %c1_44 = arith.constant 1 : index
    %c0_45 = arith.constant 0 : index
    %c0_46 = arith.constant 0 : index
    %74 = vector.load %arg7[%c1_44, %c0_45, %c0_46] : memref<2x1x32xf32, #tpu.memory_space<vmem>>, vector<1x1x32xf32>
    %75 = vector.shape_cast %74 : vector<1x1x32xf32> to vector<1x32xf32>
    %76 = vector.broadcast %75 : vector<1x32xf32> to vector<256x32xf32>
    %77 = arith.addf %73, %76 : vector<256x32xf32>
    %cst_47 = arith.constant 0.000000e+00 : f32
    %78 = vector.broadcast %cst_47 : f32 to vector<256x32xf32>
    %79 = arith.select %23, %77, %78 : vector<256x32xi1>, vector<256x32xf32>
    %80 = vector.shape_cast %79 : vector<256x32xf32> to vector<32x8x32xf32>
    %cst_48 = arith.constant dense<0.000000e+00> : vector<32x32xf32>
    %81 = vector.multi_reduction <add>, %80, %cst_48 [1] : vector<32x8x32xf32> to vector<32x32xf32>
    %c0_49 = arith.constant 0 : index
    %c0_50 = arith.constant 0 : index
    %82 = vector.load %arg8[%c0_49, %c0_50] : memref<32x32xf32, #tpu.memory_space<vmem>>, vector<32x32xf32>
    tpu.vector_store %arg8[%c0_49, %c0_50], %81 {strides = array<i32>} : memref<32x32xf32, #tpu.memory_space<vmem>>, vector<32x32xf32>,
    return
  }
  func.func @transform_0(%arg0: i32) -> (i32, i32) {
    %c0_i32 = arith.constant 0 : i32
    %c0_i32_0 = arith.constant 0 : i32
    return %arg0, %c0_i32 : i32, i32
  }
  func.func @transform_1(%arg0: i32) -> (i32, i32) {
    %c0_i32 = arith.constant 0 : i32
    %c0_i32_0 = arith.constant 0 : i32
    %c0_i32_1 = arith.constant 0 : i32
    return %c0_i32, %c0_i32_0 : i32, i32
  }
  func.func @transform_2(%arg0: i32) -> (i32, i32) {
    %c0_i32 = arith.constant 0 : i32
    %c0_i32_0 = arith.constant 0 : i32
    %c0_i32_1 = arith.constant 0 : i32
    return %c0_i32, %c0_i32_0 : i32, i32
  }
  func.func @transform_3(%arg0: i32) -> (i32, i32, i32) {
    %c0_i32 = arith.constant 0 : i32
    %c0_i32_0 = arith.constant 0 : i32
    %c0_i32_1 = arith.constant 0 : i32
    %c0_i32_2 = arith.constant 0 : i32
    return %c0_i32, %c0_i32_0, %c0_i32_1 : i32, i32, i32
  }
  func.func @transform_4(%arg0: i32) -> (i32, i32, i32) {
    %c0_i32 = arith.constant 0 : i32
    %c0_i32_0 = arith.constant 0 : i32
    %c0_i32_1 = arith.constant 0 : i32
    %c0_i32_2 = arith.constant 0 : i32
    return %c0_i32, %c0_i32_0, %c0_i32_1 : i32, i32, i32
  }
  func.func @transform_5(%arg0: i32) -> (i32, i32, i32) {
    %c0_i32 = arith.constant 0 : i32
    %c0_i32_0 = arith.constant 0 : i32
    %c0_i32_1 = arith.constant 0 : i32
    %c0_i32_2 = arith.constant 0 : i32
    return %c0_i32, %c0_i32_0, %c0_i32_1 : i32, i32, i32
  }
  func.func @transform_6(%arg0: i32) -> (i32, i32, i32) {
    %c0_i32 = arith.constant 0 : i32
    %c0_i32_0 = arith.constant 0 : i32
    %c0_i32_1 = arith.constant 0 : i32
    %c0_i32_2 = arith.constant 0 : i32
    return %c0_i32, %c0_i32_0, %c0_i32_1 : i32, i32, i32
  }
  func.func @transform_7(%arg0: i32) -> (i32, i32) {
    %c0_i32 = arith.constant 0 : i32
    %c0_i32_0 = arith.constant 0 : i32
    return %arg0, %c0_i32 : i32, i32
  }
}

module attributes {stable_mosaic.version = 11 : i64} {
  func.func @_gin_kernel(%arg0: i32, %arg1: memref<256x4xf32, #tpu.memory_space<vmem>>, %arg2: memref<256x32xf32, #tpu.memory_space<vmem>>, %arg3: memref<4x32xf32, #tpu.memory_space<vmem>>, %arg4: memref<2x32x32xf32, #tpu.memory_space<vmem>>, %arg5: memref<2x1x32xf32, #tpu.memory_space<vmem>>, %arg6: memref<2x32x32xf32, #tpu.memory_space<vmem>>, %arg7: memref<2x1x32xf32, #tpu.memory_space<vmem>>, %arg8: memref<32x32xf32, #tpu.memory_space<vmem>>) attributes {dimension_semantics = [#tpu.dimension_semantics<parallel>], iteration_bounds = array<i64: 4>, scalar_prefetch = 0 : i64, scratch_operands = 0 : i64, tpu.core_type = #tpu.core_type<tc>, window_params = [{transform_indices = @transform_0, window_bounds = array<i64: 256, 4>}, {pipeline_mode = #tpu.pipeline_mode<synchronous>, transform_indices = @transform_1, window_bounds = array<i64: 256, 32>}, {pipeline_mode = #tpu.pipeline_mode<synchronous>, transform_indices = @transform_2, window_bounds = array<i64: 4, 32>}, {pipeline_mode = #tpu.pipeline_mode<synchronous>, transform_indices = @transform_3, window_bounds = array<i64: 2, 32, 32>}, {pipeline_mode = #tpu.pipeline_mode<synchronous>, transform_indices = @transform_4, window_bounds = array<i64: 2, 1, 32>}, {pipeline_mode = #tpu.pipeline_mode<synchronous>, transform_indices = @transform_5, window_bounds = array<i64: 2, 32, 32>}, {pipeline_mode = #tpu.pipeline_mode<synchronous>, transform_indices = @transform_6, window_bounds = array<i64: 2, 1, 32>}, {transform_indices = @transform_7, window_bounds = array<i64: 32, 32>}]} {
    %c0 = arith.constant 0 : index
    %c0_0 = arith.constant 0 : index
    %0 = vector.load %arg1[%c0, %c0_0] : memref<256x4xf32, #tpu.memory_space<vmem>>, vector<256x4xf32>
    %c0_1 = arith.constant 0 : index
    %c0_2 = arith.constant 0 : index
    %1 = vector.load %arg3[%c0_1, %c0_2] : memref<4x32xf32, #tpu.memory_space<vmem>>, vector<4x32xf32>
    %cst = arith.constant dense<0.000000e+00> : vector<256x32xf32>
    %2 = tpu.matmul %0, %1, %cst {dimension_numbers = #tpu.dot_dimension_numbers<[1], [0], [0], [1], [0, 0, 1, 1], [], []>} : vector<256x4xf32>, vector<4x32xf32>, vector<256x32xf32> -> vector<256x32xf32>
    %c0_3 = arith.constant 0 : index
    %c0_4 = arith.constant 0 : index
    %3 = vector.load %arg2[%c0_3, %c0_4] : memref<256x32xf32, #tpu.memory_space<vmem>>, vector<256x32xf32>
    %4 = arith.addf %2, %3 : vector<256x32xf32>
    %5 = tpu.iota {dimensions = array<i32: 0>} : vector<256x32xi32>
    %c8_i32 = arith.constant 8 : i32
    %c0_i32 = arith.constant 0 : i32
    %6 = arith.cmpi eq, %c8_i32, %c0_i32 : i32
    %c1_i32 = arith.constant 1 : i32
    %7 = arith.select %6, %c1_i32, %c8_i32 : i32
    %8 = vector.broadcast %7 : i32 to vector<256x32xi32>
    %9 = arith.remsi %5, %8 : vector<256x32xi32>
    %c0_i32_5 = arith.constant 0 : i32
    %10 = vector.broadcast %c0_i32_5 : i32 to vector<256x32xi32>
    %11 = arith.cmpi ne, %9, %10 : vector<256x32xi32>
    %c0_i32_6 = arith.constant 0 : i32
    %12 = vector.broadcast %c0_i32_6 : i32 to vector<256x32xi32>
    %13 = arith.cmpi slt, %9, %12 : vector<256x32xi32>
    %c0_i32_7 = arith.constant 0 : i32
    %14 = arith.cmpi slt, %7, %c0_i32_7 : i32
    %15 = vector.broadcast %14 : i1 to vector<256x32xi1>
    %16 = vector.broadcast %15 : vector<256x32xi1> to vector<256x32xi1>
    %17 = arith.xori %13, %16 : vector<256x32xi1>
    %18 = arith.andi %17, %11 : vector<256x32xi1>
    %19 = vector.broadcast %7 : i32 to vector<256x32xi32>
    %20 = arith.addi %9, %19 : vector<256x32xi32>
    %21 = arith.select %18, %20, %9 : vector<256x32xi1>, vector<256x32xi32>
    %c8_i32_8 = arith.constant 8 : i32
    %22 = vector.broadcast %c8_i32_8 : i32 to vector<256x32xi32>
    %23 = arith.cmpi slt, %21, %22 : vector<256x32xi32>
    %c0_i32_9 = arith.constant 0 : i32
    %24 = vector.broadcast %c0_i32_9 : i32 to vector<256x32xi32>
    %25 = arith.cmpi eq, %21, %24 : vector<256x32xi32>
    %c7_i32 = arith.constant 7 : i32
    %26 = vector.broadcast %c7_i32 : i32 to vector<256x32xi32>
    %27 = arith.cmpi eq, %21, %26 : vector<256x32xi32>
    %c1_i32_10 = arith.constant 1 : i32
    %28 = tpu.dynamic_rotate %4 by %c1_i32_10 dim 0 : vector<256x32xf32>, i32 -> vector<256x32xf32>
    %c255_i32 = arith.constant 255 : i32
    %29 = tpu.dynamic_rotate %4 by %c255_i32 dim 0 : vector<256x32xf32>, i32 -> vector<256x32xf32>
    %cst_11 = arith.constant 0.000000e+00 : f32
    %30 = vector.broadcast %cst_11 : f32 to vector<256x32xf32>
    %31 = arith.select %25, %30, %28 : vector<256x32xi1>, vector<256x32xf32>
    %cst_12 = arith.constant 0.000000e+00 : f32
    %32 = vector.broadcast %cst_12 : f32 to vector<256x32xf32>
    %33 = arith.select %27, %32, %29 : vector<256x32xi1>, vector<256x32xf32>
    %34 = arith.addf %31, %33 : vector<256x32xf32>
    %35 = arith.addf %4, %34 : vector<256x32xf32>
    %c0_13 = arith.constant 0 : index
    %c0_14 = arith.constant 0 : index
    %c0_15 = arith.constant 0 : index
    %36 = vector.load %arg4[%c0_13, %c0_14, %c0_15] : memref<2x32x32xf32, #tpu.memory_space<vmem>>, vector<1x32x32xf32>
    %37 = vector.shape_cast %36 : vector<1x32x32xf32> to vector<32x32xf32>
    %cst_16 = arith.constant dense<0.000000e+00> : vector<256x32xf32>
    %38 = tpu.matmul %35, %37, %cst_16 {dimension_numbers = #tpu.dot_dimension_numbers<[1], [0], [0], [1], [0, 0, 1, 1], [], []>} : vector<256x32xf32>, vector<32x32xf32>, vector<256x32xf32> -> vector<256x32xf32>
    %c0_17 = arith.constant 0 : index
    %c0_18 = arith.constant 0 : index
    %c0_19 = arith.constant 0 : index
    %39 = vector.load %arg5[%c0_17, %c0_18, %c0_19] : memref<2x1x32xf32, #tpu.memory_space<vmem>>, vector<1x1x32xf32>
    %40 = vector.shape_cast %39 : vector<1x1x32xf32> to vector<1x32xf32>
    %41 = vector.broadcast %40 : vector<1x32xf32> to vector<256x32xf32>
    %42 = arith.addf %38, %41 : vector<256x32xf32>
    %cst_20 = arith.constant 0.000000e+00 : f32
    %43 = vector.broadcast %cst_20 : f32 to vector<256x32xf32>
    %44 = arith.maximumf %42, %43 : vector<256x32xf32>
    %c0_21 = arith.constant 0 : index
    %c0_22 = arith.constant 0 : index
    %c0_23 = arith.constant 0 : index
    %45 = vector.load %arg6[%c0_21, %c0_22, %c0_23] : memref<2x32x32xf32, #tpu.memory_space<vmem>>, vector<1x32x32xf32>
    %46 = vector.shape_cast %45 : vector<1x32x32xf32> to vector<32x32xf32>
    %cst_24 = arith.constant dense<0.000000e+00> : vector<256x32xf32>
    %47 = tpu.matmul %44, %46, %cst_24 {dimension_numbers = #tpu.dot_dimension_numbers<[1], [0], [0], [1], [0, 0, 1, 1], [], []>} : vector<256x32xf32>, vector<32x32xf32>, vector<256x32xf32> -> vector<256x32xf32>
    %c0_25 = arith.constant 0 : index
    %c0_26 = arith.constant 0 : index
    %c0_27 = arith.constant 0 : index
    %48 = vector.load %arg7[%c0_25, %c0_26, %c0_27] : memref<2x1x32xf32, #tpu.memory_space<vmem>>, vector<1x1x32xf32>
    %49 = vector.shape_cast %48 : vector<1x1x32xf32> to vector<1x32xf32>
    %50 = vector.broadcast %49 : vector<1x32xf32> to vector<256x32xf32>
    %51 = arith.addf %47, %50 : vector<256x32xf32>
    %cst_28 = arith.constant 0.000000e+00 : f32
    %52 = vector.broadcast %cst_28 : f32 to vector<256x32xf32>
    %53 = arith.maximumf %51, %52 : vector<256x32xf32>
    %c1_i32_29 = arith.constant 1 : i32
    %54 = tpu.dynamic_rotate %53 by %c1_i32_29 dim 0 : vector<256x32xf32>, i32 -> vector<256x32xf32>
    %c255_i32_30 = arith.constant 255 : i32
    %55 = tpu.dynamic_rotate %53 by %c255_i32_30 dim 0 : vector<256x32xf32>, i32 -> vector<256x32xf32>
    %cst_31 = arith.constant 0.000000e+00 : f32
    %56 = vector.broadcast %cst_31 : f32 to vector<256x32xf32>
    %57 = arith.select %25, %56, %54 : vector<256x32xi1>, vector<256x32xf32>
    %cst_32 = arith.constant 0.000000e+00 : f32
    %58 = vector.broadcast %cst_32 : f32 to vector<256x32xf32>
    %59 = arith.select %27, %58, %55 : vector<256x32xi1>, vector<256x32xf32>
    %60 = arith.addf %57, %59 : vector<256x32xf32>
    %61 = arith.addf %53, %60 : vector<256x32xf32>
    %c1 = arith.constant 1 : index
    %c0_33 = arith.constant 0 : index
    %c0_34 = arith.constant 0 : index
    %62 = vector.load %arg4[%c1, %c0_33, %c0_34] : memref<2x32x32xf32, #tpu.memory_space<vmem>>, vector<1x32x32xf32>
    %63 = vector.shape_cast %62 : vector<1x32x32xf32> to vector<32x32xf32>
    %cst_35 = arith.constant dense<0.000000e+00> : vector<256x32xf32>
    %64 = tpu.matmul %61, %63, %cst_35 {dimension_numbers = #tpu.dot_dimension_numbers<[1], [0], [0], [1], [0, 0, 1, 1], [], []>} : vector<256x32xf32>, vector<32x32xf32>, vector<256x32xf32> -> vector<256x32xf32>
    %c1_36 = arith.constant 1 : index
    %c0_37 = arith.constant 0 : index
    %c0_38 = arith.constant 0 : index
    %65 = vector.load %arg5[%c1_36, %c0_37, %c0_38] : memref<2x1x32xf32, #tpu.memory_space<vmem>>, vector<1x1x32xf32>
    %66 = vector.shape_cast %65 : vector<1x1x32xf32> to vector<1x32xf32>
    %67 = vector.broadcast %66 : vector<1x32xf32> to vector<256x32xf32>
    %68 = arith.addf %64, %67 : vector<256x32xf32>
    %cst_39 = arith.constant 0.000000e+00 : f32
    %69 = vector.broadcast %cst_39 : f32 to vector<256x32xf32>
    %70 = arith.maximumf %68, %69 : vector<256x32xf32>
    %c1_40 = arith.constant 1 : index
    %c0_41 = arith.constant 0 : index
    %c0_42 = arith.constant 0 : index
    %71 = vector.load %arg6[%c1_40, %c0_41, %c0_42] : memref<2x32x32xf32, #tpu.memory_space<vmem>>, vector<1x32x32xf32>
    %72 = vector.shape_cast %71 : vector<1x32x32xf32> to vector<32x32xf32>
    %cst_43 = arith.constant dense<0.000000e+00> : vector<256x32xf32>
    %73 = tpu.matmul %70, %72, %cst_43 {dimension_numbers = #tpu.dot_dimension_numbers<[1], [0], [0], [1], [0, 0, 1, 1], [], []>} : vector<256x32xf32>, vector<32x32xf32>, vector<256x32xf32> -> vector<256x32xf32>
    %c1_44 = arith.constant 1 : index
    %c0_45 = arith.constant 0 : index
    %c0_46 = arith.constant 0 : index
    %74 = vector.load %arg7[%c1_44, %c0_45, %c0_46] : memref<2x1x32xf32, #tpu.memory_space<vmem>>, vector<1x1x32xf32>
    %75 = vector.shape_cast %74 : vector<1x1x32xf32> to vector<1x32xf32>
    %76 = vector.broadcast %75 : vector<1x32xf32> to vector<256x32xf32>
    %77 = arith.addf %73, %76 : vector<256x32xf32>
    %cst_47 = arith.constant 0.000000e+00 : f32
    %78 = vector.broadcast %cst_47 : f32 to vector<256x32xf32>
    %79 = arith.select %23, %77, %78 : vector<256x32xi1>, vector<256x32xf32>
    %80 = vector.shape_cast %79 : vector<256x32xf32> to vector<32x8x32xf32>
    %cst_48 = arith.constant dense<0.000000e+00> : vector<32x32xf32>
    %81 = vector.multi_reduction <add>, %80, %cst_48 [1] : vector<32x8x32xf32> to vector<32x32xf32>
    %c0_49 = arith.constant 0 : index
    %c0_50 = arith.constant 0 : index
    %82 = vector.load %arg8[%c0_49, %c0_50] : memref<32x32xf32, #tpu.memory_space<vmem>>, vector<32x32xf32>
    tpu.vector_store %arg8[%c0_49, %c0_50], %81 {strides = array<i32>} : memref<32x32xf32, #tpu.memory_space<vmem>>, vector<32x32xf32>,
    return
  }
  func.func @transform_0(%arg0: i32) -> (i32, i32) {
    %c0_i32 = arith.constant 0 : i32
    %c0_i32_0 = arith.constant 0 : i32
    return %arg0, %c0_i32 : i32, i32
  }
  func.func @transform_1(%arg0: i32) -> (i32, i32) {
    %c0_i32 = arith.constant 0 : i32
    %c0_i32_0 = arith.constant 0 : i32
    %c0_i32_1 = arith.constant 0 : i32
    return %c0_i32, %c0_i32_0 : i32, i32
  }
  func.func @transform_2(%arg0: i32) -> (i32, i32) {
    %c0_i32 = arith.constant 0 : i32
    %c0_i32_0 = arith.constant 0 : i32
    %c0_i32_1 = arith.constant 0 : i32
    return %c0_i32, %c0_i32_0 : i32, i32
  }
  func.func @transform_3(%arg0: i32) -> (i32, i32, i32) {
    %c0_i32 = arith.constant 0 : i32
    %c0_i32_0 = arith.constant 0 : i32
    %c0_i32_1 = arith.constant 0 : i32
    %c0_i32_2 = arith.constant 0 : i32
    return %c0_i32, %c0_i32_0, %c0_i32_1 : i32, i32, i32
  }
  func.func @transform_4(%arg0: i32) -> (i32, i32, i32) {
    %c0_i32 = arith.constant 0 : i32
    %c0_i32_0 = arith.constant 0 : i32
    %c0_i32_1 = arith.constant 0 : i32
    %c0_i32_2 = arith.constant 0 : i32
    return %c0_i32, %c0_i32_0, %c0_i32_1 : i32, i32, i32
  }
  func.func @transform_5(%arg0: i32) -> (i32, i32, i32) {
    %c0_i32 = arith.constant 0 : i32
    %c0_i32_0 = arith.constant 0 : i32
    %c0_i32_1 = arith.constant 0 : i32
    %c0_i32_2 = arith.constant 0 : i32
    return %c0_i32, %c0_i32_0, %c0_i32_1 : i32, i32, i32
  }
  func.func @transform_6(%arg0: i32) -> (i32, i32, i32) {
    %c0_i32 = arith.constant 0 : i32
    %c0_i32_0 = arith.constant 0 : i32
    %c0_i32_1 = arith.constant 0 : i32
    %c0_i32_2 = arith.constant 0 : i32
    return %c0_i32, %c0_i32_0, %c0_i32_1 : i32, i32, i32
  }
  func.func @transform_7(%arg0: i32) -> (i32, i32) {
    %c0_i32 = arith.constant 0 : i32
    %c0_i32_0 = arith.constant 0 : i32
    return %arg0, %c0_i32 : i32, i32
  }
}

</mosaic_0001>

<llo_original>
// kernel: tpu_custom_call.1
$region0: #{tpu_custom_call.1}
  #allocation0 [shape = 'u32[]', space=smem, size = 0x4, offset = 0x4, fixed_abs, tag = 'smem constant byte address 0x4 - core index']
  #allocation1 [shape = 'u32[72,128]{1,0:T(1,128)}', space=vmem, size = 0x9000, scoped, tag = 'internal scratch']
  %s0 = inlined_call_operand.vmem [shape: f32[1024,4], index: 0, kind: input, shape index: {}]
  %s1 = inlined_call_operand.vmem [shape: f32[256,32], index: 1, kind: input, shape index: {}]
  %s2 = inlined_call_operand.vmem [shape: f32[4,32], index: 2, kind: input, shape index: {}]
  %s3 = inlined_call_operand.vmem [shape: f32[2,32,32], index: 3, kind: input, shape index: {}]
  %s4 = inlined_call_operand.vmem [shape: f32[2,1,32], index: 4, kind: input, shape index: {}]
  %s5 = inlined_call_operand.vmem [shape: f32[2,32,32], index: 5, kind: input, shape index: {}]
  %s6 = inlined_call_operand.vmem [shape: f32[2,1,32], index: 6, kind: input, shape index: {}]
  %s7 = inlined_call_operand.vmem [shape: f32[128,32], index: 7, kind: output, shape index: {}]
  %s8 = sld [smem:[#allocation0]]
  $region61: #{tpu_custom_call.1} parent=0
    _
  %s10 = ssub.s32 1, %s8
  %s11 = scalar_select 0, %s10, %s8
  loop: start=0, step=1, limit=6
  $region2: #{tpu_custom_call.1} parent=0 // loop_pre_header
    _
  $region3: #{tpu_custom_call.1} parent=0 // loop_header
    %s13 = sphi 0, %s17
    %p14 = scmp.ge.s32.totalorder %s13, 6
    %s23 = sphi 0, %s25
    %s26 = sphi 0, %s23
    %s27 = sphi 0, %s26
    %s43 = sphi 0, %s27
    %s47 = sphi 0, %s47
    %s49 = sphi 0, %s47
    %s50 = sphi 0, %s49
    %s64 = sphi 0, %s50
    %s68 = sphi 0, %s68
    %s70 = sphi 0, %s68
    %s71 = sphi 0, %s70
    %s85 = sphi 0, %s71
    %s89 = sphi 0, %s89
    %s91 = sphi 0, %s89
    %s92 = sphi 0, %s91
    %s106 = sphi 0, %s92
    %s110 = sphi 0, %s110
    %s112 = sphi 0, %s110
    %s113 = sphi 0, %s112
    %s127 = sphi 0, %s113
    %s131 = sphi 0, %s131
    %s133 = sphi 0, %s131
    %s134 = sphi 0, %s133
    %s148 = sphi 0, %s134
    %s152 = sphi 0, %s152
    %s154 = sphi 0, %s152
    %s155 = sphi 0, %s154
    %s169 = sphi 0, %s155
    %s175 = sphi 0, %s177
    %s178 = sphi 0, %s175
    %s179 = sphi 0, %s178
    %s195 = sphi 0, %s179
  $region4: #{tpu_custom_call.1} parent=0 // loop_header_branch
    %16 = sbr.rel (%p14) target = $region8
  $region5: #{tpu_custom_call.1} parent=0 // loop_body
    %s18 = ssub.s32 %s13, 1
    %s19 = ssub.s32 %s13, 2
    %s20 = sadd.s32 %s13, 1
    %s21 = ssub.s32 %s13, %s20
    %p22 = scmp.eq.s32.totalorder %s21, 0
    %s24 = sadd.s32 %s23, 1
    %s25 = scalar_select %p22, %s23, %s24
    %p28 = pneg %p22
    %p29 = scmp.eq.s32.totalorder %s13, 3
    %p30 = por %p28, %p29
    %p31 = scmp.ne.s32.totalorder %s23, %s26
    %p32 = scmp.eq.s32.totalorder %s13, 0
    %p33 = por %p31, %p32
    %p34 = scmp.ne.s32.totalorder %s23, %s26
    %p35 = scmp.eq.s32.totalorder %s18, 3
    %p36 = por %p34, %p35
    %p37 = scmp.ne.s32.totalorder %s26, %s27
    %p38 = scmp.eq.s32.totalorder %s18, 0
    %p39 = por %p37, %p38
    %p40 = scmp.ne.s32.totalorder %s26, %s27
    %p41 = scmp.eq.s32.totalorder %s19, 3
    %p42 = por %p40, %p41
    %p44 = scmp.ne.s32.totalorder %s27, %s43
    %p45 = scmp.eq.s32.totalorder %s19, 0
    %p46 = por %p44, %p45
    %s48 = sadd.s32 %s47, 1
    %p51 = scmp.eq.s32.totalorder %s13, 3
    %p52 = scmp.ne.s32.totalorder %s47, %s49
    %p53 = scmp.eq.s32.totalorder %s13, 0
    %p54 = por %p52, %p53
    %p55 = scmp.ne.s32.totalorder %s47, %s49
    %p56 = scmp.eq.s32.totalorder %s18, 3
    %p57 = por %p55, %p56
    %p58 = scmp.ne.s32.totalorder %s49, %s50
    %p59 = scmp.eq.s32.totalorder %s18, 0
    %p60 = por %p58, %p59
    %p61 = scmp.ne.s32.totalorder %s49, %s50
    %p62 = scmp.eq.s32.totalorder %s19, 3
    %p63 = por %p61, %p62
    %p65 = scmp.ne.s32.totalorder %s50, %s64
    %p66 = scmp.eq.s32.totalorder %s19, 0
    %p67 = por %p65, %p66
    %s69 = sadd.s32 %s68, 1
    %p72 = scmp.eq.s32.totalorder %s13, 3
    %p73 = scmp.ne.s32.totalorder %s68, %s70
    %p74 = scmp.eq.s32.totalorder %s13, 0
    %p75 = por %p73, %p74
    %p76 = scmp.ne.s32.totalorder %s68, %s70
    %p77 = scmp.eq.s32.totalorder %s18, 3
    %p78 = por %p76, %p77
    %p79 = scmp.ne.s32.totalorder %s70, %s71
    %p80 = scmp.eq.s32.totalorder %s18, 0
    %p81 = por %p79, %p80
    %p82 = scmp.ne.s32.totalorder %s70, %s71
    %p83 = scmp.eq.s32.totalorder %s19, 3
    %p84 = por %p82, %p83
    %p86 = scmp.ne.s32.totalorder %s71, %s85
    %p87 = scmp.eq.s32.totalorder %s19, 0
    %p88 = por %p86, %p87
    %s90 = sadd.s32 %s89, 1
    %p93 = scmp.eq.s32.totalorder %s13, 3
    %p94 = scmp.ne.s32.totalorder %s89, %s91
    %p95 = scmp.eq.s32.totalorder %s13, 0
    %p96 = por %p94, %p95
    %p97 = scmp.ne.s32.totalorder %s89, %s91
    %p98 = scmp.eq.s32.totalorder %s18, 3
    %p99 = por %p97, %p98
    %p100 = scmp.ne.s32.totalorder %s91, %s92
    %p101 = scmp.eq.s32.totalorder %s18, 0
    %p102 = por %p100, %p101
    %p103 = scmp.ne.s32.totalorder %s91, %s92
    %p104 = scmp.eq.s32.totalorder %s19, 3
    %p105 = por %p103, %p104
    %p107 = scmp.ne.s32.totalorder %s92, %s106
    %p108 = scmp.eq.s32.totalorder %s19, 0
    %p109 = por %p107, %p108
    %s111 = sadd.s32 %s110, 1
    %p114 = scmp.eq.s32.totalorder %s13, 3
    %p115 = scmp.ne.s32.totalorder %s110, %s112
    %p116 = scmp.eq.s32.totalorder %s13, 0
    %p117 = por %p115, %p116
    %p118 = scmp.ne.s32.totalorder %s110, %s112
    %p119 = scmp.eq.s32.totalorder %s18, 3
    %p120 = por %p118, %p119
    %p121 = scmp.ne.s32.totalorder %s112, %s113
    %p122 = scmp.eq.s32.totalorder %s18, 0
    %p123 = por %p121, %p122
    %p124 = scmp.ne.s32.totalorder %s112, %s113
    %p125 = scmp.eq.s32.totalorder %s19, 3
    %p126 = por %p124, %p125
    %p128 = scmp.ne.s32.totalorder %s113, %s127
    %p129 = scmp.eq.s32.totalorder %s19, 0
    %p130 = por %p128, %p129
    %s132 = sadd.s32 %s131, 1
    %p135 = scmp.eq.s32.totalorder %s13, 3
    %p136 = scmp.ne.s32.totalorder %s131, %s133
    %p137 = scmp.eq.s32.totalorder %s13, 0
    %p138 = por %p136, %p137
    %p139 = scmp.ne.s32.totalorder %s131, %s133
    %p140 = scmp.eq.s32.totalorder %s18, 3
    %p141 = por %p139, %p140
    %p142 = scmp.ne.s32.totalorder %s133, %s134
    %p143 = scmp.eq.s32.totalorder %s18, 0
    %p144 = por %p142, %p143
    %p145 = scmp.ne.s32.totalorder %s133, %s134
    %p146 = scmp.eq.s32.totalorder %s19, 3
    %p147 = por %p145, %p146
    %p149 = scmp.ne.s32.totalorder %s134, %s148
    %p150 = scmp.eq.s32.totalorder %s19, 0
    %p151 = por %p149, %p150
    %s153 = sadd.s32 %s152, 1
    %p156 = scmp.eq.s32.totalorder %s13, 3
    %p157 = scmp.ne.s32.totalorder %s152, %s154
    %p158 = scmp.eq.s32.totalorder %s13, 0
    %p159 = por %p157, %p158
    %p160 = scmp.ne.s32.totalorder %s152, %s154
    %p161 = scmp.eq.s32.totalorder %s18, 3
    %p162 = por %p160, %p161
    %p163 = scmp.ne.s32.totalorder %s154, %s155
    %p164 = scmp.eq.s32.totalorder %s18, 0
    %p165 = por %p163, %p164
    %p166 = scmp.ne.s32.totalorder %s154, %s155
    %p167 = scmp.eq.s32.totalorder %s19, 3
    %p168 = por %p166, %p167
    %p170 = scmp.ne.s32.totalorder %s155, %s169
    %p171 = scmp.eq.s32.totalorder %s19, 0
    %p172 = por %p170, %p171
    %s173 = ssub.s32 %s13, %s20
    %p174 = scmp.eq.s32.totalorder %s173, 0
    %s176 = sadd.s32 %s175, 1
    %s177 = scalar_select %p174, %s175, %s176
    %p180 = pneg %p174
    %p181 = scmp.eq.s32.totalorder %s13, 3
    %p182 = por %p180, %p181
    %p183 = scmp.ne.s32.totalorder %s175, %s178
    %p184 = scmp.eq.s32.totalorder %s13, 0
    %p185 = por %p183, %p184
    %p186 = scmp.ne.s32.totalorder %s175, %s178
    %p187 = scmp.eq.s32.totalorder %s18, 3
    %p188 = por %p186, %p187
    %p189 = scmp.ne.s32.totalorder %s178, %s179
    %p190 = scmp.eq.s32.totalorder %s18, 0
    %p191 = por %p189, %p190
    %p192 = scmp.ne.s32.totalorder %s178, %s179
    %p193 = scmp.eq.s32.totalorder %s19, 3
    %p194 = por %p192, %p193
    %p196 = scmp.ne.s32.totalorder %s179, %s195
    %p197 = scmp.eq.s32.totalorder %s19, 0
    %p198 = por %p196, %p197
    %p199 = scmp.le.s32.totalorder 1, %s13
    %p200 = scmp.lt.s32.totalorder %s13, 5
    %p201 = pnand %p199, %p200
    %p202 = pneg %p201
    // Predicated region
    $region9: #{tpu_custom_call.1} parent=5 // pred_check
      _
    $region10: #{tpu_custom_call.1} parent=5 // pred_check_branch
      %204 = sbr.rel (%p201) target = $region12
    $region11: #{tpu_custom_call.1} parent=5 // pred_region
      %s205 = ssub.s32 %s13, 1
      // Predicated region
      $region13: #{tpu_custom_call.1} parent=11 // pred_check
        %p206 = pneg %p60
      $region14: #{tpu_custom_call.1} parent=11 // pred_check_branch
        %208 = sbr.rel (%p206) target = $region16
      $region15: #{tpu_custom_call.1} parent=11 // pred_region
        _
      $region16: #{tpu_custom_call.1} parent=11 // pred_fallthru
        _
      // Predicated region
      $region17: #{tpu_custom_call.1} parent=11 // pred_check
        %p209 = pneg %p81
      $region18: #{tpu_custom_call.1} parent=11 // pred_check_branch
        %211 = sbr.rel (%p209) target = $region20
      $region19: #{tpu_custom_call.1} parent=11 // pred_region
        _
      $region20: #{tpu_custom_call.1} parent=11 // pred_fallthru
        _
      // Predicated region
      $region21: #{tpu_custom_call.1} parent=11 // pred_check
        %p212 = pneg %p102
      $region22: #{tpu_custom_call.1} parent=11 // pred_check_branch
        %214 = sbr.rel (%p212) target = $region24
      $region23: #{tpu_custom_call.1} parent=11 // pred_region
        _
      $region24: #{tpu_custom_call.1} parent=11 // pred_fallthru
        _
      // Predicated region
      $region25: #{tpu_custom_call.1} parent=11 // pred_check
        %p215 = pneg %p123
      $region26: #{tpu_custom_call.1} parent=11 // pred_check_branch
        %217 = sbr.rel (%p215) target = $region28
      $region27: #{tpu_custom_call.1} parent=11 // pred_region
        _
      $region28: #{tpu_custom_call.1} parent=11 // pred_fallthru
        _
      // Predicated region
      $region29: #{tpu_custom_call.1} parent=11 // pred_check
        %p218 = pneg %p144
      $region30: #{tpu_custom_call.1} parent=11 // pred_check_branch
        %220 = sbr.rel (%p218) target = $region32
      $region31: #{tpu_custom_call.1} parent=11 // pred_region
        _
      $region32: #{tpu_custom_call.1} parent=11 // pred_fallthru
        _
      // Predicated region
      $region33: #{tpu_custom_call.1} parent=11 // pred_check
        %p221 = pneg %p165
      $region34: #{tpu_custom_call.1} parent=11 // pred_check_branch
        %223 = sbr.rel (%p221) target = $region36
      $region35: #{tpu_custom_call.1} parent=11 // pred_region
        _
      $region36: #{tpu_custom_call.1} parent=11 // pred_fallthru
        _
    $region12: #{tpu_custom_call.1} parent=5 // pred_fallthru
      _
    %p224 = scmp.lt.s32.totalorder %s13, 4
    // Predicated region
    $region37: #{tpu_custom_call.1} parent=5 // pred_check
      %p225 = pneg %p224
    $region38: #{tpu_custom_call.1} parent=5 // pred_check_branch
      %227 = sbr.rel (%p225) target = $region40
    $region39: #{tpu_custom_call.1} parent=5 // pred_region
      // Predicated region
      $region41: #{tpu_custom_call.1} parent=39 // pred_check
        %p228 = pneg %p33
      $region42: #{tpu_custom_call.1} parent=39 // pred_check_branch
        %230 = sbr.rel (%p228) target = $region44
      $region43: #{tpu_custom_call.1} parent=39 // pred_region
        %s231 = smul.u32 32, %s13
        %p232 = scmp.lt.s32.totalorder %s231, 127
        %s233 = scalar_select %p232, %s231, 127
        %s234 = smul.addr %s233, 8
        %s235 = scalar_lea.vmem %s0, %s234
        %s236 = smul.u32 32, %s13
      $region44: #{tpu_custom_call.1} parent=39 // pred_fallthru
        _
    $region40: #{tpu_custom_call.1} parent=5 // pred_fallthru
      _
    %p237 = scmp.le.s32.totalorder 1, %s13
    %p238 = scmp.lt.s32.totalorder %s13, 5
    %p239 = pnand %p237, %p238
    %p240 = pneg %p239
    // Predicated region
    $region45: #{tpu_custom_call.1} parent=5 // pred_check
      _
    $region46: #{tpu_custom_call.1} parent=5 // pred_check_branch
      %242 = sbr.rel (%p239) target = $region48
    $region47: #{tpu_custom_call.1} parent=5 // pred_region
      %s243 = ssub.s32 %s13, 1
      %s244 = smul.u32 32, %s18
      %p245 = scmp.lt.s32.totalorder %s244, 127
      %s246 = scalar_select %p245, %s244, 127
      %s247 = smul.addr %s246, 8
      %s248 = scalar_lea.vmem %s0, %s247
      %p249 = pneg %p39
      %p250 = pneg %p36
      %p251 = pneg %p60
      %p252 = pneg %p57
      %p253 = pneg %p81
      %p254 = pneg %p78
      %p255 = pneg %p102
      %p256 = pneg %p99
      %p257 = pneg %p123
      %p258 = pneg %p120
      %p259 = pneg %p144
      %p260 = pneg %p141
      %p261 = pneg %p165
      %p262 = pneg %p162
      %p263 = pneg %p191
      %p264 = pneg %p188
      %s265 = smul.u32 4, %s18
      %p266 = scmp.lt.s32.totalorder %s265, 15
      %s267 = scalar_select %p266, %s265, 15
      %s268 = smul.addr %s267, 8
      %s269 = scalar_lea.vmem %s7, %s268
      %s270 = smul.u32 32, %s18
      %p271 = scmp.lt.s32.totalorder %s270, 127
      %s272 = scalar_select %p271, %s270, 127
      %s273 = smul.addr %s272, 8
      %s274 = scalar_lea.vmem %s0, %s273
      %s275 = smul.u32 32, %s18
      %s276 = smul.u32 4, %s18
      %p277 = scmp.lt.s32.totalorder %s276, 15
      %s278 = scalar_select %p277, %s276, 15
      %s279 = smul.addr %s278, 8
      %s280 = scalar_lea.vmem %s7, %s279
      %s281 = smul.u32 4, %s18
      %v282 = vld [vmem:[%s274] sm:$0xff]
      %v283 = vld [vmem:[%s274 + $0x8] sm:$0xff]
      %v284 = vld [vmem:[%s274 + $0x10] sm:$0xff]
      %v285 = vld [vmem:[%s274 + $0x18] sm:$0xff]
      %v286 = vld [vmem:[%s274 + $0x20] sm:$0xff]
      %v287 = vld [vmem:[%s274 + $0x28] sm:$0xff]
      %v288 = vld [vmem:[%s274 + $0x30] sm:$0xff]
      %v289 = vld [vmem:[%s274 + $0x38] sm:$0xff]
      %v290 = vld [vmem:[%s274 + $0x40] sm:$0xff]
      %v291 = vld [vmem:[%s274 + $0x48] sm:$0xff]
      %v292 = vld [vmem:[%s274 + $0x50] sm:$0xff]
      %v293 = vld [vmem:[%s274 + $0x58] sm:$0xff]
      %v294 = vld [vmem:[%s274 + $0x60] sm:$0xff]
      %v295 = vld [vmem:[%s274 + $0x68] sm:$0xff]
      %v296 = vld [vmem:[%s274 + $0x70] sm:$0xff]
      %v297 = vld [vmem:[%s274 + $0x78] sm:$0xff]
      %v298 = vld [vmem:[%s274 + $0x80] sm:$0xff]
      %v299 = vld [vmem:[%s274 + $0x88] sm:$0xff]
      %v300 = vld [vmem:[%s274 + $0x90] sm:$0xff]
      %v301 = vld [vmem:[%s274 + $0x98] sm:$0xff]
      %v302 = vld [vmem:[%s274 + $0xa0] sm:$0xff]
      %v303 = vld [vmem:[%s274 + $0xa8] sm:$0xff]
      %v304 = vld [vmem:[%s274 + $0xb0] sm:$0xff]
      %v305 = vld [vmem:[%s274 + $0xb8] sm:$0xff]
      %v306 = vld [vmem:[%s274 + $0xc0] sm:$0xff]
      %v307 = vld [vmem:[%s274 + $0xc8] sm:$0xff]
      %v308 = vld [vmem:[%s274 + $0xd0] sm:$0xff]
      %v309 = vld [vmem:[%s274 + $0xd8] sm:$0xff]
      %v310 = vld [vmem:[%s274 + $0xe0] sm:$0xff]
      %v311 = vld [vmem:[%s274 + $0xe8] sm:$0xff]
      %v312 = vld [vmem:[%s274 + $0xf0] sm:$0xff]
      %v313 = vld [vmem:[%s274 + $0xf8] sm:$0xff]
      %v314 = vld [vmem:[%s2] sm:$0xf]
      %v315 = vld [vmem:[%s1] sm:$0xff]
      %v316 = vld [vmem:[%s1 + $0x8] sm:$0xff]
      %v317 = vld [vmem:[%s1 + $0x10] sm:$0xff]
      %v318 = vld [vmem:[%s1 + $0x18] sm:$0xff]
      %v319 = vld [vmem:[%s1 + $0x20] sm:$0xff]
      %v320 = vld [vmem:[%s1 + $0x28] sm:$0xff]
      %v321 = vld [vmem:[%s1 + $0x30] sm:$0xff]
      %v322 = vld [vmem:[%s1 + $0x38] sm:$0xff]
      %v323 = vld [vmem:[%s1 + $0x40] sm:$0xff]
      %v324 = vld [vmem:[%s1 + $0x48] sm:$0xff]
      %v325 = vld [vmem:[%s1 + $0x50] sm:$0xff]
      %v326 = vld [vmem:[%s1 + $0x58] sm:$0xff]
      %v327 = vld [vmem:[%s1 + $0x60] sm:$0xff]
      %v328 = vld [vmem:[%s1 + $0x68] sm:$0xff]
      %v329 = vld [vmem:[%s1 + $0x70] sm:$0xff]
      %v330 = vld [vmem:[%s1 + $0x78] sm:$0xff]
      %v331 = vld [vmem:[%s1 + $0x80] sm:$0xff]
      %v332 = vld [vmem:[%s1 + $0x88] sm:$0xff]
      %v333 = vld [vmem:[%s1 + $0x90] sm:$0xff]
      %v334 = vld [vmem:[%s1 + $0x98] sm:$0xff]
      %v335 = vld [vmem:[%s1 + $0xa0] sm:$0xff]
      %v336 = vld [vmem:[%s1 + $0xa8] sm:$0xff]
      %v337 = vld [vmem:[%s1 + $0xb0] sm:$0xff]
      %v338 = vld [vmem:[%s1 + $0xb8] sm:$0xff]
      %v339 = vld [vmem:[%s1 + $0xc0] sm:$0xff]
      %v340 = vld [vmem:[%s1 + $0xc8] sm:$0xff]
      %v341 = vld [vmem:[%s1 + $0xd0] sm:$0xff]
      %v342 = vld [vmem:[%s1 + $0xd8] sm:$0xff]
      %v343 = vld [vmem:[%s1 + $0xe0] sm:$0xff]
      %v344 = vld [vmem:[%s1 + $0xe8] sm:$0xff]
      %v345 = vld [vmem:[%s1 + $0xf0] sm:$0xff]
      %v346 = vld [vmem:[%s1 + $0xf8] sm:$0xff]
      %vm347 = vcmask 31744
      %v349 = vsel %vm347, %v282, 0
      %v352 = vsel %vm347, %v283, 0
      %v355 = vsel %vm347, %v284, 0
      %v358 = vsel %vm347, %v285, 0
      %v361 = vsel %vm347, %v286, 0
      %v364 = vsel %vm347, %v287, 0
      %v367 = vsel %vm347, %v288, 0
      %v370 = vsel %vm347, %v289, 0
      %v373 = vsel %vm347, %v290, 0
      %v376 = vsel %vm347, %v291, 0
      %v379 = vsel %vm347, %v292, 0
      %v382 = vsel %vm347, %v293, 0
      %v385 = vsel %vm347, %v294, 0
      %v388 = vsel %vm347, %v295, 0
      %v391 = vsel %vm347, %v296, 0
      %v394 = vsel %vm347, %v297, 0
      %v397 = vsel %vm347, %v298, 0
      %v400 = vsel %vm347, %v299, 0
      %v403 = vsel %vm347, %v300, 0
      %v406 = vsel %vm347, %v301, 0
      %v409 = vsel %vm347, %v302, 0
      %v412 = vsel %vm347, %v303, 0
      %v415 = vsel %vm347, %v304, 0
      %v418 = vsel %vm347, %v305, 0
      %v421 = vsel %vm347, %v306, 0
      %v424 = vsel %vm347, %v307, 0
      %v427 = vsel %vm347, %v308, 0
      %v430 = vsel %vm347, %v309, 0
      %v433 = vsel %vm347, %v310, 0
      %v436 = vsel %vm347, %v311, 0
      %v439 = vsel %vm347, %v312, 0
      %v442 = vsel %vm347, %v313, 0
      %vm444 = vcmask 1043456
      %v446 = vsel %vm444, %v314, 0
      %448 = vmatpush.msra.mxu0 0.0
      %449 = vmatpush.msra.mxu0 0.0
      %450 = vmatpush.msra.mxu0 0.0
      %451 = vmatpush.msra.mxu0 0.0
      %452 = vmatpush.msra.mxu0 0.0
      %453 = vmatpush.msra.mxu0 0.0
      %454 = vmatpush.msra.mxu0 0.0
      %455 = vmatpush.msra.mxu0 0.0
      %456 = vmatpush.msra.mxu0 0.0
      %457 = vmatpush.msra.mxu0 0.0
      %458 = vmatpush.msra.mxu0 0.0
      %459 = vmatpush.msra.mxu0 0.0
      %460 = vmatpush.msra.mxu0 0.0
      %461 = vmatpush.msra.mxu0 0.0
      %462 = vmatpush.msra.mxu0 0.0
      %463 = vmatpush.msra.mxu0 %v446
      %464 = vmatmul.f32.gmra.mxu0 %v349
      %v465 = vpop.f32.mrf.mxu0
      %v466 = vadd.f32 %v315, %v465
      %467 = vmatmul.f32.gmra.mxu0 %v352
      %v468 = vpop.f32.mrf.mxu0
      %v469 = vadd.f32 %v316, %v468
      %470 = vmatmul.f32.gmra.mxu0 %v355
      %v471 = vpop.f32.mrf.mxu0
      %v472 = vadd.f32 %v317, %v471
      %473 = vmatmul.f32.gmra.mxu0 %v358
      %v474 = vpop.f32.mrf.mxu0
      %v475 = vadd.f32 %v318, %v474
      %476 = vmatmul.f32.gmra.mxu0 %v361
      %v477 = vpop.f32.mrf.mxu0
      %v478 = vadd.f32 %v319, %v477
      %479 = vmatmul.f32.gmra.mxu0 %v364
      %v480 = vpop.f32.mrf.mxu0
      %v481 = vadd.f32 %v320, %v480
      %482 = vmatmul.f32.gmra.mxu0 %v367
      %v483 = vpop.f32.mrf.mxu0
      %v484 = vadd.f32 %v321, %v483
      %485 = vmatmul.f32.gmra.mxu0 %v370
      %v486 = vpop.f32.mrf.mxu0
      %v487 = vadd.f32 %v322, %v486
      %488 = vmatmul.f32.gmra.mxu0 %v373
      %v489 = vpop.f32.mrf.mxu0
      %v490 = vadd.f32 %v323, %v489
      %491 = vmatmul.f32.gmra.mxu0 %v376
      %v492 = vpop.f32.mrf.mxu0
      %v493 = vadd.f32 %v324, %v492
      %494 = vmatmul.f32.gmra.mxu0 %v379
      %v495 = vpop.f32.mrf.mxu0
      %v496 = vadd.f32 %v325, %v495
      %497 = vmatmul.f32.gmra.mxu0 %v382
      %v498 = vpop.f32.mrf.mxu0
      %v499 = vadd.f32 %v326, %v498
      %500 = vmatmul.f32.gmra.mxu0 %v385
      %v501 = vpop.f32.mrf.mxu0
      %v502 = vadd.f32 %v327, %v501
      %503 = vmatmul.f32.gmra.mxu0 %v388
      %v504 = vpop.f32.mrf.mxu0
      %v505 = vadd.f32 %v328, %v504
      %506 = vmatmul.f32.gmra.mxu0 %v391
      %v507 = vpop.f32.mrf.mxu0
      %v508 = vadd.f32 %v329, %v507
      %509 = vmatmul.f32.gmra.mxu0 %v394
      %v510 = vpop.f32.mrf.mxu0
      %v511 = vadd.f32 %v330, %v510
      %512 = vmatmul.f32.gmra.mxu0 %v397
      %v513 = vpop.f32.mrf.mxu0
      %v514 = vadd.f32 %v331, %v513
      %515 = vmatmul.f32.gmra.mxu0 %v400
      %v516 = vpop.f32.mrf.mxu0
      %v517 = vadd.f32 %v332, %v516
      %518 = vmatmul.f32.gmra.mxu0 %v403
      %v519 = vpop.f32.mrf.mxu0
      %v520 = vadd.f32 %v333, %v519
      %521 = vmatmul.f32.gmra.mxu0 %v406
      %v522 = vpop.f32.mrf.mxu0
      %v523 = vadd.f32 %v334, %v522
      %524 = vmatmul.f32.gmra.mxu0 %v409
      %v525 = vpop.f32.mrf.mxu0
      %v526 = vadd.f32 %v335, %v525
      %527 = vmatmul.f32.gmra.mxu0 %v412
      %v528 = vpop.f32.mrf.mxu0
      %v529 = vadd.f32 %v336, %v528
      %530 = vmatmul.f32.gmra.mxu0 %v415
      %v531 = vpop.f32.mrf.mxu0
      %v532 = vadd.f32 %v337, %v531
      %533 = vmatmul.f32.gmra.mxu0 %v418
      %v534 = vpop.f32.mrf.mxu0
      %v535 = vadd.f32 %v338, %v534
      %536 = vmatmul.f32.gmra.mxu0 %v421
      %v537 = vpop.f32.mrf.mxu0
      %v538 = vadd.f32 %v339, %v537
      %539 = vmatmul.f32.gmra.mxu0 %v424
      %v540 = vpop.f32.mrf.mxu0
      %v541 = vadd.f32 %v340, %v540
      %542 = vmatmul.f32.gmra.mxu0 %v427
      %v543 = vpop.f32.mrf.mxu0
      %v544 = vadd.f32 %v341, %v543
      %545 = vmatmul.f32.gmra.mxu0 %v430
      %v546 = vpop.f32.mrf.mxu0
      %v547 = vadd.f32 %v342, %v546
      %548 = vmatmul.f32.gmra.mxu0 %v433
      %v549 = vpop.f32.mrf.mxu0
      %v550 = vadd.f32 %v343, %v549
      %551 = vmatmul.f32.gmra.mxu0 %v436
      %v552 = vpop.f32.mrf.mxu0
      %v553 = vadd.f32 %v344, %v552
      %554 = vmatmul.f32.gmra.mxu0 %v439
      %v555 = vpop.f32.mrf.mxu0
      %v556 = vadd.f32 %v345, %v555
      %557 = vmatmul.f32.gmra.mxu0 %v442
      %v558 = vpop.f32.mrf.mxu0
      %v559 = vadd.f32 %v346, %v558
      %560 = vdwg.mxu0
      %v561 = vlaneseq
      %v562 = vshrl.u32 %v561, 7
      %v563 = vadd.s32 %v562, 8
      %v564 = vadd.s32 %v562, 16
      %v565 = vadd.s32 %v562, 24
      %v566 = vadd.s32 %v562, 32
      %v567 = vadd.s32 %v562, 40
      %v568 = vadd.s32 %v562, 48
      %v569 = vadd.s32 %v562, 56
      %v570 = vadd.s32 %v562, 64
      %v571 = vadd.s32 %v562, 72
      %v572 = vadd.s32 %v562, 80
      %v573 = vadd.s32 %v562, 88
      %v574 = vadd.s32 %v562, 96
      %v575 = vadd.s32 %v562, 104
      %v576 = vadd.s32 %v562, 112
      %v577 = vadd.s32 %v562, 120
      %v578 = vadd.s32 %v562, 128
      %v579 = vadd.s32 %v562, 136
      %v580 = vadd.s32 %v562, 144
      %v581 = vadd.s32 %v562, 152
      %v582 = vadd.s32 %v562, 160
      %v583 = vadd.s32 %v562, 168
      %v584 = vadd.s32 %v562, 176
      %v585 = vadd.s32 %v562, 184
      %v586 = vadd.s32 %v562, 192
      %v587 = vadd.s32 %v562, 200
      %v588 = vadd.s32 %v562, 208
      %v589 = vadd.s32 %v562, 216
      %v590 = vadd.s32 %v562, 224
      %v591 = vadd.s32 %v562, 232
      %v592 = vadd.s32 %v562, 240
      %v593 = vadd.s32 %v562, 248
      %vm594 = vcmp.lt.s32.totalorder %v562, 0
      %v595 = vsub.s32 0, %v562
      %v596 = vsel %vm594, %v595, %v562
      %v597 = vshrl.u32 %v596, 3
      %v598 = vand.u32 %v596, 7
      %v599 = vsub.s32 0, %v598
      %v600 = vsel %vm594, %v599, %v598
      %vm601 = vcmp.lt.s32.totalorder %v563, 0
      %v602 = vsub.s32 0, %v563
      %v603 = vsel %vm601, %v602, %v563
      %v604 = vshrl.u32 %v603, 3
      %v605 = vand.u32 %v603, 7
      %v606 = vsub.s32 0, %v605
      %v607 = vsel %vm601, %v606, %v605
      %vm608 = vcmp.lt.s32.totalorder %v564, 0
      %v609 = vsub.s32 0, %v564
      %v610 = vsel %vm608, %v609, %v564
      %v611 = vshrl.u32 %v610, 3
      %v612 = vand.u32 %v610, 7
      %v613 = vsub.s32 0, %v612
      %v614 = vsel %vm608, %v613, %v612
      %vm615 = vcmp.lt.s32.totalorder %v565, 0
      %v616 = vsub.s32 0, %v565
      %v617 = vsel %vm615, %v616, %v565
      %v618 = vshrl.u32 %v617, 3
      %v619 = vand.u32 %v617, 7
      %v620 = vsub.s32 0, %v619
      %v621 = vsel %vm615, %v620, %v619
      %vm622 = vcmp.lt.s32.totalorder %v566, 0
      %v623 = vsub.s32 0, %v566
      %v624 = vsel %vm622, %v623, %v566
      %v625 = vshrl.u32 %v624, 3
      %v626 = vand.u32 %v624, 7
      %v627 = vsub.s32 0, %v626
      %v628 = vsel %vm622, %v627, %v626
      %vm629 = vcmp.lt.s32.totalorder %v567, 0
      %v630 = vsub.s32 0, %v567
      %v631 = vsel %vm629, %v630, %v567
      %v632 = vshrl.u32 %v631, 3
      %v633 = vand.u32 %v631, 7
      %v634 = vsub.s32 0, %v633
      %v635 = vsel %vm629, %v634, %v633
      %vm636 = vcmp.lt.s32.totalorder %v568, 0
      %v637 = vsub.s32 0, %v568
      %v638 = vsel %vm636, %v637, %v568
      %v639 = vshrl.u32 %v638, 3
      %v640 = vand.u32 %v638, 7
      %v641 = vsub.s32 0, %v640
      %v642 = vsel %vm636, %v641, %v640
      %vm643 = vcmp.lt.s32.totalorder %v569, 0
      %v644 = vsub.s32 0, %v569
      %v645 = vsel %vm643, %v644, %v569
      %v646 = vshrl.u32 %v645, 3
      %v647 = vand.u32 %v645, 7
      %v648 = vsub.s32 0, %v647
      %v649 = vsel %vm643, %v648, %v647
      %vm650 = vcmp.lt.s32.totalorder %v570, 0
      %v651 = vsub.s32 0, %v570
      %v652 = vsel %vm650, %v651, %v570
      %v653 = vshrl.u32 %v652, 3
      %v654 = vand.u32 %v652, 7
      %v655 = vsub.s32 0, %v654
      %v656 = vsel %vm650, %v655, %v654
      %vm657 = vcmp.lt.s32.totalorder %v571, 0
      %v658 = vsub.s32 0, %v571
      %v659 = vsel %vm657, %v658, %v571
      %v660 = vshrl.u32 %v659, 3
      %v661 = vand.u32 %v659, 7
      %v662 = vsub.s32 0, %v661
      %v663 = vsel %vm657, %v662, %v661
      %vm664 = vcmp.lt.s32.totalorder %v572, 0
      %v665 = vsub.s32 0, %v572
      %v666 = vsel %vm664, %v665, %v572
      %v667 = vshrl.u32 %v666, 3
      %v668 = vand.u32 %v666, 7
      %v669 = vsub.s32 0, %v668
      %v670 = vsel %vm664, %v669, %v668
      %vm671 = vcmp.lt.s32.totalorder %v573, 0
      %v672 = vsub.s32 0, %v573
      %v673 = vsel %vm671, %v672, %v573
      %v674 = vshrl.u32 %v673, 3
      %v675 = vand.u32 %v673, 7
      %v676 = vsub.s32 0, %v675
      %v677 = vsel %vm671, %v676, %v675
      %vm678 = vcmp.lt.s32.totalorder %v574, 0
      %v679 = vsub.s32 0, %v574
      %v680 = vsel %vm678, %v679, %v574
      %v681 = vshrl.u32 %v680, 3
      %v682 = vand.u32 %v680, 7
      %v683 = vsub.s32 0, %v682
      %v684 = vsel %vm678, %v683, %v682
      %vm685 = vcmp.lt.s32.totalorder %v575, 0
      %v686 = vsub.s32 0, %v575
      %v687 = vsel %vm685, %v686, %v575
      %v688 = vshrl.u32 %v687, 3
      %v689 = vand.u32 %v687, 7
      %v690 = vsub.s32 0, %v689
      %v691 = vsel %vm685, %v690, %v689
      %vm692 = vcmp.lt.s32.totalorder %v576, 0
      %v693 = vsub.s32 0, %v576
      %v694 = vsel %vm692, %v693, %v576
      %v695 = vshrl.u32 %v694, 3
      %v696 = vand.u32 %v694, 7
      %v697 = vsub.s32 0, %v696
      %v698 = vsel %vm692, %v697, %v696
      %vm699 = vcmp.lt.s32.totalorder %v577, 0
      %v700 = vsub.s32 0, %v577
      %v701 = vsel %vm699, %v700, %v577
      %v702 = vshrl.u32 %v701, 3
      %v703 = vand.u32 %v701, 7
      %v704 = vsub.s32 0, %v703
      %v705 = vsel %vm699, %v704, %v703
      %vm706 = vcmp.lt.s32.totalorder %v578, 0
      %v707 = vsub.s32 0, %v578
      %v708 = vsel %vm706, %v707, %v578
      %v709 = vshrl.u32 %v708, 3
      %v710 = vand.u32 %v708, 7
      %v711 = vsub.s32 0, %v710
      %v712 = vsel %vm706, %v711, %v710
      %vm713 = vcmp.lt.s32.totalorder %v579, 0
      %v714 = vsub.s32 0, %v579
      %v715 = vsel %vm713, %v714, %v579
      %v716 = vshrl.u32 %v715, 3
      %v717 = vand.u32 %v715, 7
      %v718 = vsub.s32 0, %v717
      %v719 = vsel %vm713, %v718, %v717
      %vm720 = vcmp.lt.s32.totalorder %v580, 0
      %v721 = vsub.s32 0, %v580
      %v722 = vsel %vm720, %v721, %v580
      %v723 = vshrl.u32 %v722, 3
      %v724 = vand.u32 %v722, 7
      %v725 = vsub.s32 0, %v724
      %v726 = vsel %vm720, %v725, %v724
      %vm727 = vcmp.lt.s32.totalorder %v581, 0
      %v728 = vsub.s32 0, %v581
      %v729 = vsel %vm727, %v728, %v581
      %v730 = vshrl.u32 %v729, 3
      %v731 = vand.u32 %v729, 7
      %v732 = vsub.s32 0, %v731
      %v733 = vsel %vm727, %v732, %v731
      %vm734 = vcmp.lt.s32.totalorder %v582, 0
      %v735 = vsub.s32 0, %v582
      %v736 = vsel %vm734, %v735, %v582
      %v737 = vshrl.u32 %v736, 3
      %v738 = vand.u32 %v736, 7
      %v739 = vsub.s32 0, %v738
      %v740 = vsel %vm734, %v739, %v738
      %vm741 = vcmp.lt.s32.totalorder %v583, 0
      %v742 = vsub.s32 0, %v583
      %v743 = vsel %vm741, %v742, %v583
      %v744 = vshrl.u32 %v743, 3
      %v745 = vand.u32 %v743, 7
      %v746 = vsub.s32 0, %v745
      %v747 = vsel %vm741, %v746, %v745
      %vm748 = vcmp.lt.s32.totalorder %v584, 0
      %v749 = vsub.s32 0, %v584
      %v750 = vsel %vm748, %v749, %v584
      %v751 = vshrl.u32 %v750, 3
      %v752 = vand.u32 %v750, 7
      %v753 = vsub.s32 0, %v752
      %v754 = vsel %vm748, %v753, %v752
      %vm755 = vcmp.lt.s32.totalorder %v585, 0
      %v756 = vsub.s32 0, %v585
      %v757 = vsel %vm755, %v756, %v585
      %v758 = vshrl.u32 %v757, 3
      %v759 = vand.u32 %v757, 7
      %v760 = vsub.s32 0, %v759
      %v761 = vsel %vm755, %v760, %v759
      %vm762 = vcmp.lt.s32.totalorder %v586, 0
      %v763 = vsub.s32 0, %v586
      %v764 = vsel %vm762, %v763, %v586
      %v765 = vshrl.u32 %v764, 3
      %v766 = vand.u32 %v764, 7
      %v767 = vsub.s32 0, %v766
      %v768 = vsel %vm762, %v767, %v766
      %vm769 = vcmp.lt.s32.totalorder %v587, 0
      %v770 = vsub.s32 0, %v587
      %v771 = vsel %vm769, %v770, %v587
      %v772 = vshrl.u32 %v771, 3
      %v773 = vand.u32 %v771, 7
      %v774 = vsub.s32 0, %v773
      %v775 = vsel %vm769, %v774, %v773
      %vm776 = vcmp.lt.s32.totalorder %v588, 0
      %v777 = vsub.s32 0, %v588
      %v778 = vsel %vm776, %v777, %v588
      %v779 = vshrl.u32 %v778, 3
      %v780 = vand.u32 %v778, 7
      %v781 = vsub.s32 0, %v780
      %v782 = vsel %vm776, %v781, %v780
      %vm783 = vcmp.lt.s32.totalorder %v589, 0
      %v784 = vsub.s32 0, %v589
      %v785 = vsel %vm783, %v784, %v589
      %v786 = vshrl.u32 %v785, 3
      %v787 = vand.u32 %v785, 7
      %v788 = vsub.s32 0, %v787
      %v789 = vsel %vm783, %v788, %v787
      %vm790 = vcmp.lt.s32.totalorder %v590, 0
      %v791 = vsub.s32 0, %v590
      %v792 = vsel %vm790, %v791, %v590
      %v793 = vshrl.u32 %v792, 3
      %v794 = vand.u32 %v792, 7
      %v795 = vsub.s32 0, %v794
      %v796 = vsel %vm790, %v795, %v794
      %vm797 = vcmp.lt.s32.totalorder %v591, 0
      %v798 = vsub.s32 0, %v591
      %v799 = vsel %vm797, %v798, %v591
      %v800 = vshrl.u32 %v799, 3
      %v801 = vand.u32 %v799, 7
      %v802 = vsub.s32 0, %v801
      %v803 = vsel %vm797, %v802, %v801
      %vm804 = vcmp.lt.s32.totalorder %v592, 0
      %v805 = vsub.s32 0, %v592
      %v806 = vsel %vm804, %v805, %v592
      %v807 = vshrl.u32 %v806, 3
      %v808 = vand.u32 %v806, 7
      %v809 = vsub.s32 0, %v808
      %v810 = vsel %vm804, %v809, %v808
      %vm811 = vcmp.lt.s32.totalorder %v593, 0
      %v812 = vsub.s32 0, %v593
      %v813 = vsel %vm811, %v812, %v593
      %v814 = vshrl.u32 %v813, 3
      %v815 = vand.u32 %v813, 7
      %v816 = vsub.s32 0, %v815
      %v817 = vsel %vm811, %v816, %v815
      %vm818 = vcmp.ne.s32.totalorder %v600, 0
      %vm819 = vcmp.ne.s32.totalorder %v607, 0
      %vm820 = vcmp.ne.s32.totalorder %v614, 0
      %vm821 = vcmp.ne.s32.totalorder %v621, 0
      %vm822 = vcmp.ne.s32.totalorder %v628, 0
      %vm823 = vcmp.ne.s32.totalorder %v635, 0
      %vm824 = vcmp.ne.s32.totalorder %v642, 0
      %vm825 = vcmp.ne.s32.totalorder %v649, 0
      %vm826 = vcmp.ne.s32.totalorder %v656, 0
      %vm827 = vcmp.ne.s32.totalorder %v663, 0
      %vm828 = vcmp.ne.s32.totalorder %v670, 0
      %vm829 = vcmp.ne.s32.totalorder %v677, 0
      %vm830 = vcmp.ne.s32.totalorder %v684, 0
      %vm831 = vcmp.ne.s32.totalorder %v691, 0
      %vm832 = vcmp.ne.s32.totalorder %v698, 0
      %vm833 = vcmp.ne.s32.totalorder %v705, 0
      %vm834 = vcmp.ne.s32.totalorder %v712, 0
      %vm835 = vcmp.ne.s32.totalorder %v719, 0
      %vm836 = vcmp.ne.s32.totalorder %v726, 0
      %vm837 = vcmp.ne.s32.totalorder %v733, 0
      %vm838 = vcmp.ne.s32.totalorder %v740, 0
      %vm839 = vcmp.ne.s32.totalorder %v747, 0
      %vm840 = vcmp.ne.s32.totalorder %v754, 0
      %vm841 = vcmp.ne.s32.totalorder %v761, 0
      %vm842 = vcmp.ne.s32.totalorder %v768, 0
      %vm843 = vcmp.ne.s32.totalorder %v775, 0
      %vm844 = vcmp.ne.s32.totalorder %v782, 0
      %vm845 = vcmp.ne.s32.totalorder %v789, 0
      %vm846 = vcmp.ne.s32.totalorder %v796, 0
      %vm847 = vcmp.ne.s32.totalorder %v803, 0
      %vm848 = vcmp.ne.s32.totalorder %v810, 0
      %vm849 = vcmp.ne.s32.totalorder %v817, 0
      %vm850 = vcmp.lt.s32.totalorder %v600, 0
      %vm851 = vcmp.lt.s32.totalorder %v607, 0
      %vm852 = vcmp.lt.s32.totalorder %v614, 0
      %vm853 = vcmp.lt.s32.totalorder %v621, 0
      %vm854 = vcmp.lt.s32.totalorder %v628, 0
      %vm855 = vcmp.lt.s32.totalorder %v635, 0
      %vm856 = vcmp.lt.s32.totalorder %v642, 0
      %vm857 = vcmp.lt.s32.totalorder %v649, 0
      %vm858 = vcmp.lt.s32.totalorder %v656, 0
      %vm859 = vcmp.lt.s32.totalorder %v663, 0
      %vm860 = vcmp.lt.s32.totalorder %v670, 0
      %vm861 = vcmp.lt.s32.totalorder %v677, 0
      %vm862 = vcmp.lt.s32.totalorder %v684, 0
      %vm863 = vcmp.lt.s32.totalorder %v691, 0
      %vm864 = vcmp.lt.s32.totalorder %v698, 0
      %vm865 = vcmp.lt.s32.totalorder %v705, 0
      %vm866 = vcmp.lt.s32.totalorder %v712, 0
      %vm867 = vcmp.lt.s32.totalorder %v719, 0
      %vm868 = vcmp.lt.s32.totalorder %v726, 0
      %vm869 = vcmp.lt.s32.totalorder %v733, 0
      %vm870 = vcmp.lt.s32.totalorder %v740, 0
      %vm871 = vcmp.lt.s32.totalorder %v747, 0
      %vm872 = vcmp.lt.s32.totalorder %v754, 0
      %vm873 = vcmp.lt.s32.totalorder %v761, 0
      %vm874 = vcmp.lt.s32.totalorder %v768, 0
      %vm875 = vcmp.lt.s32.totalorder %v775, 0
      %vm876 = vcmp.lt.s32.totalorder %v782, 0
      %vm877 = vcmp.lt.s32.totalorder %v789, 0
      %vm878 = vcmp.lt.s32.totalorder %v796, 0
      %vm879 = vcmp.lt.s32.totalorder %v803, 0
      %vm880 = vcmp.lt.s32.totalorder %v810, 0
      %vm881 = vcmp.lt.s32.totalorder %v817, 0
      %vm882 = vmand %vm850, %vm818
      %vm883 = vmand %vm851, %vm819
      %vm884 = vmand %vm852, %vm820
      %vm885 = vmand %vm853, %vm821
      %vm886 = vmand %vm854, %vm822
      %vm887 = vmand %vm855, %vm823
      %vm888 = vmand %vm856, %vm824
      %vm889 = vmand %vm857, %vm825
      %vm890 = vmand %vm858, %vm826
      %vm891 = vmand %vm859, %vm827
      %vm892 = vmand %vm860, %vm828
      %vm893 = vmand %vm861, %vm829
      %vm894 = vmand %vm862, %vm830
      %vm895 = vmand %vm863, %vm831
      %vm896 = vmand %vm864, %vm832
      %vm897 = vmand %vm865, %vm833
      %vm898 = vmand %vm866, %vm834
      %vm899 = vmand %vm867, %vm835
      %vm900 = vmand %vm868, %vm836
      %vm901 = vmand %vm869, %vm837
      %vm902 = vmand %vm870, %vm838
      %vm903 = vmand %vm871, %vm839
      %vm904 = vmand %vm872, %vm840
      %vm905 = vmand %vm873, %vm841
      %vm906 = vmand %vm874, %vm842
      %vm907 = vmand %vm875, %vm843
      %vm908 = vmand %vm876, %vm844
      %vm909 = vmand %vm877, %vm845
      %vm910 = vmand %vm878, %vm846
      %vm911 = vmand %vm879, %vm847
      %vm912 = vmand %vm880, %vm848
      %vm913 = vmand %vm881, %vm849
      %v914 = vadd.s32 %v600, 8
      %v915 = vadd.s32 %v607, 8
      %v916 = vadd.s32 %v614, 8
      %v917 = vadd.s32 %v621, 8
      %v918 = vadd.s32 %v628, 8
      %v919 = vadd.s32 %v635, 8
      %v920 = vadd.s32 %v642, 8
      %v921 = vadd.s32 %v649, 8
      %v922 = vadd.s32 %v656, 8
      %v923 = vadd.s32 %v663, 8
      %v924 = vadd.s32 %v670, 8
      %v925 = vadd.s32 %v677, 8
      %v926 = vadd.s32 %v684, 8
      %v927 = vadd.s32 %v691, 8
      %v928 = vadd.s32 %v698, 8
      %v929 = vadd.s32 %v705, 8
      %v930 = vadd.s32 %v712, 8
      %v931 = vadd.s32 %v719, 8
      %v932 = vadd.s32 %v726, 8
      %v933 = vadd.s32 %v733, 8
      %v934 = vadd.s32 %v740, 8
      %v935 = vadd.s32 %v747, 8
      %v936 = vadd.s32 %v754, 8
      %v937 = vadd.s32 %v761, 8
      %v938 = vadd.s32 %v768, 8
      %v939 = vadd.s32 %v775, 8
      %v940 = vadd.s32 %v782, 8
      %v941 = vadd.s32 %v789, 8
      %v942 = vadd.s32 %v796, 8
      %v943 = vadd.s32 %v803, 8
      %v944 = vadd.s32 %v810, 8
      %v945 = vadd.s32 %v817, 8
      %v946 = vsel %vm882, %v914, %v600
      %v947 = vsel %vm883, %v915, %v607
      %v948 = vsel %vm884, %v916, %v614
      %v949 = vsel %vm885, %v917, %v621
      %v950 = vsel %vm886, %v918, %v628
      %v951 = vsel %vm887, %v919, %v635
      %v952 = vsel %vm888, %v920, %v642
      %v953 = vsel %vm889, %v921, %v649
      %v954 = vsel %vm890, %v922, %v656
      %v955 = vsel %vm891, %v923, %v663
      %v956 = vsel %vm892, %v924, %v670
      %v957 = vsel %vm893, %v925, %v677
      %v958 = vsel %vm894, %v926, %v684
      %v959 = vsel %vm895, %v927, %v691
      %v960 = vsel %vm896, %v928, %v698
      %v961 = vsel %vm897, %v929, %v705
      %v962 = vsel %vm898, %v930, %v712
      %v963 = vsel %vm899, %v931, %v719
      %v964 = vsel %vm900, %v932, %v726
      %v965 = vsel %vm901, %v933, %v733
      %v966 = vsel %vm902, %v934, %v740
      %v967 = vsel %vm903, %v935, %v747
      %v968 = vsel %vm904, %v936, %v754
      %v969 = vsel %vm905, %v937, %v761
      %v970 = vsel %vm906, %v938, %v768
      %v971 = vsel %vm907, %v939, %v775
      %v972 = vsel %vm908, %v940, %v782
      %v973 = vsel %vm909, %v941, %v789
      %v974 = vsel %vm910, %v942, %v796
      %v975 = vsel %vm911, %v943, %v803
      %v976 = vsel %vm912, %v944, %v810
      %v977 = vsel %vm913, %v945, %v817
      %vm978 = vcmp.lt.s32.totalorder %v946, 8
      %vm979 = vcmp.lt.s32.totalorder %v947, 8
      %vm980 = vcmp.lt.s32.totalorder %v948, 8
      %vm981 = vcmp.lt.s32.totalorder %v949, 8
      %vm982 = vcmp.lt.s32.totalorder %v950, 8
      %vm983 = vcmp.lt.s32.totalorder %v951, 8
      %vm984 = vcmp.lt.s32.totalorder %v952, 8
      %vm985 = vcmp.lt.s32.totalorder %v953, 8
      %vm986 = vcmp.lt.s32.totalorder %v954, 8
      %vm987 = vcmp.lt.s32.totalorder %v955, 8
      %vm988 = vcmp.lt.s32.totalorder %v956, 8
      %vm989 = vcmp.lt.s32.totalorder %v957, 8
      %vm990 = vcmp.lt.s32.totalorder %v958, 8
      %vm991 = vcmp.lt.s32.totalorder %v959, 8
      %vm992 = vcmp.lt.s32.totalorder %v960, 8
      %vm993 = vcmp.lt.s32.totalorder %v961, 8
      %vm994 = vcmp.lt.s32.totalorder %v962, 8
      %vm995 = vcmp.lt.s32.totalorder %v963, 8
      %vm996 = vcmp.lt.s32.totalorder %v964, 8
      %vm997 = vcmp.lt.s32.totalorder %v965, 8
      %vm998 = vcmp.lt.s32.totalorder %v966, 8
      %vm999 = vcmp.lt.s32.totalorder %v967, 8
      %vm1000 = vcmp.lt.s32.totalorder %v968, 8
      %vm1001 = vcmp.lt.s32.totalorder %v969, 8
      %vm1002 = vcmp.lt.s32.totalorder %v970, 8
      %vm1003 = vcmp.lt.s32.totalorder %v971, 8
      %vm1004 = vcmp.lt.s32.totalorder %v972, 8
      %vm1005 = vcmp.lt.s32.totalorder %v973, 8
      %vm1006 = vcmp.lt.s32.totalorder %v974, 8
      %vm1007 = vcmp.lt.s32.totalorder %v975, 8
      %vm1008 = vcmp.lt.s32.totalorder %v976, 8
      %vm1009 = vcmp.lt.s32.totalorder %v977, 8
      %vm1010 = vcmp.eq.s32.totalorder %v946, 0
      %vm1011 = vcmp.eq.s32.totalorder %v947, 0
      %vm1012 = vcmp.eq.s32.totalorder %v948, 0
      %vm1013 = vcmp.eq.s32.totalorder %v949, 0
      %vm1014 = vcmp.eq.s32.totalorder %v950, 0
      %vm1015 = vcmp.eq.s32.totalorder %v951, 0
      %vm1016 = vcmp.eq.s32.totalorder %v952, 0
      %vm1017 = vcmp.eq.s32.totalorder %v953, 0
      %vm1018 = vcmp.eq.s32.totalorder %v954, 0
      %vm1019 = vcmp.eq.s32.totalorder %v955, 0
      %vm1020 = vcmp.eq.s32.totalorder %v956, 0
      %vm1021 = vcmp.eq.s32.totalorder %v957, 0
      %vm1022 = vcmp.eq.s32.totalorder %v958, 0
      %vm1023 = vcmp.eq.s32.totalorder %v959, 0
      %vm1024 = vcmp.eq.s32.totalorder %v960, 0
      %vm1025 = vcmp.eq.s32.totalorder %v961, 0
      %vm1026 = vcmp.eq.s32.totalorder %v962, 0
      %vm1027 = vcmp.eq.s32.totalorder %v963, 0
      %vm1028 = vcmp.eq.s32.totalorder %v964, 0
      %vm1029 = vcmp.eq.s32.totalorder %v965, 0
      %vm1030 = vcmp.eq.s32.totalorder %v966, 0
      %vm1031 = vcmp.eq.s32.totalorder %v967, 0
      %vm1032 = vcmp.eq.s32.totalorder %v968, 0
      %vm1033 = vcmp.eq.s32.totalorder %v969, 0
      %vm1034 = vcmp.eq.s32.totalorder %v970, 0
      %vm1035 = vcmp.eq.s32.totalorder %v971, 0
      %vm1036 = vcmp.eq.s32.totalorder %v972, 0
      %vm1037 = vcmp.eq.s32.totalorder %v973, 0
      %vm1038 = vcmp.eq.s32.totalorder %v974, 0
      %vm1039 = vcmp.eq.s32.totalorder %v975, 0
      %vm1040 = vcmp.eq.s32.totalorder %v976, 0
      %vm1041 = vcmp.eq.s32.totalorder %v977, 0
      %vm1042 = vcmp.eq.s32.totalorder %v946, 7
      %vm1043 = vcmp.eq.s32.totalorder %v947, 7
      %vm1044 = vcmp.eq.s32.totalorder %v948, 7
      %vm1045 = vcmp.eq.s32.totalorder %v949, 7
      %vm1046 = vcmp.eq.s32.totalorder %v950, 7
      %vm1047 = vcmp.eq.s32.totalorder %v951, 7
      %vm1048 = vcmp.eq.s32.totalorder %v952, 7
      %vm1049 = vcmp.eq.s32.totalorder %v953, 7
      %vm1050 = vcmp.eq.s32.totalorder %v954, 7
      %vm1051 = vcmp.eq.s32.totalorder %v955, 7
      %vm1052 = vcmp.eq.s32.totalorder %v956, 7
      %vm1053 = vcmp.eq.s32.totalorder %v957, 7
      %vm1054 = vcmp.eq.s32.totalorder %v958, 7
      %vm1055 = vcmp.eq.s32.totalorder %v959, 7
      %vm1056 = vcmp.eq.s32.totalorder %v960, 7
      %vm1057 = vcmp.eq.s32.totalorder %v961, 7
      %vm1058 = vcmp.eq.s32.totalorder %v962, 7
      %vm1059 = vcmp.eq.s32.totalorder %v963, 7
      %vm1060 = vcmp.eq.s32.totalorder %v964, 7
      %vm1061 = vcmp.eq.s32.totalorder %v965, 7
      %vm1062 = vcmp.eq.s32.totalorder %v966, 7
      %vm1063 = vcmp.eq.s32.totalorder %v967, 7
      %vm1064 = vcmp.eq.s32.totalorder %v968, 7
      %vm1065 = vcmp.eq.s32.totalorder %v969, 7
      %vm1066 = vcmp.eq.s32.totalorder %v970, 7
      %vm1067 = vcmp.eq.s32.totalorder %v971, 7
      %vm1068 = vcmp.eq.s32.totalorder %v972, 7
      %vm1069 = vcmp.eq.s32.totalorder %v973, 7
      %vm1070 = vcmp.eq.s32.totalorder %v974, 7
      %vm1071 = vcmp.eq.s32.totalorder %v975, 7
      %vm1072 = vcmp.eq.s32.totalorder %v976, 7
      %vm1073 = vcmp.eq.s32.totalorder %v977, 7
      %v1074 = vrot.slane %v466, 7
      %v1075 = vrot.slane %v469, 7
      %v1076 = vrot.slane %v472, 7
      %v1077 = vrot.slane %v475, 7
      %v1078 = vrot.slane %v478, 7
      %v1079 = vrot.slane %v481, 7
      %v1080 = vrot.slane %v484, 7
      %v1081 = vrot.slane %v487, 7
      %v1082 = vrot.slane %v490, 7
      %v1083 = vrot.slane %v493, 7
      %v1084 = vrot.slane %v496, 7
      %v1085 = vrot.slane %v499, 7
      %v1086 = vrot.slane %v502, 7
      %v1087 = vrot.slane %v505, 7
      %v1088 = vrot.slane %v508, 7
      %v1089 = vrot.slane %v511, 7
      %v1090 = vrot.slane %v514, 7
      %v1091 = vrot.slane %v517, 7
      %v1092 = vrot.slane %v520, 7
      %v1093 = vrot.slane %v523, 7
      %v1094 = vrot.slane %v526, 7
      %v1095 = vrot.slane %v529, 7
      %v1096 = vrot.slane %v532, 7
      %v1097 = vrot.slane %v535, 7
      %v1098 = vrot.slane %v538, 7
      %v1099 = vrot.slane %v541, 7
      %v1100 = vrot.slane %v544, 7
      %v1101 = vrot.slane %v547, 7
      %v1102 = vrot.slane %v550, 7
      %v1103 = vrot.slane %v553, 7
      %v1104 = vrot.slane %v556, 7
      %v1105 = vrot.slane %v559, 7
      %vm1106 = vcmp.lt.s32.totalorder %v562, 1
      %v1107 = vsel %vm1106, %v1104, %v1105
      %v1108 = vsel %vm1106, %v1103, %v1104
      %v1109 = vsel %vm1106, %v1102, %v1103
      %v1110 = vsel %vm1106, %v1101, %v1102
      %v1111 = vsel %vm1106, %v1100, %v1101
      %v1112 = vsel %vm1106, %v1099, %v1100
      %v1113 = vsel %vm1106, %v1098, %v1099
      %v1114 = vsel %vm1106, %v1097, %v1098
      %v1115 = vsel %vm1106, %v1096, %v1097
      %v1116 = vsel %vm1106, %v1095, %v1096
      %v1117 = vsel %vm1106, %v1094, %v1095
      %v1118 = vsel %vm1106, %v1093, %v1094
      %v1119 = vsel %vm1106, %v1092, %v1093
      %v1120 = vsel %vm1106, %v1091, %v1092
      %v1121 = vsel %vm1106, %v1090, %v1091
      %v1122 = vsel %vm1106, %v1089, %v1090
      %v1123 = vsel %vm1106, %v1088, %v1089
      %v1124 = vsel %vm1106, %v1087, %v1088
      %v1125 = vsel %vm1106, %v1086, %v1087
      %v1126 = vsel %vm1106, %v1085, %v1086
      %v1127 = vsel %vm1106, %v1084, %v1085
      %v1128 = vsel %vm1106, %v1083, %v1084
      %v1129 = vsel %vm1106, %v1082, %v1083
      %v1130 = vsel %vm1106, %v1081, %v1082
      %v1131 = vsel %vm1106, %v1080, %v1081
      %v1132 = vsel %vm1106, %v1079, %v1080
      %v1133 = vsel %vm1106, %v1078, %v1079
      %v1134 = vsel %vm1106, %v1077, %v1078
      %v1135 = vsel %vm1106, %v1076, %v1077
      %v1136 = vsel %vm1106, %v1075, %v1076
      %v1137 = vsel %vm1106, %v1074, %v1075
      %v1138 = vsel %vm1106, %v1105, %v1074
      %v1139 = vrot.slane %v466, 1
      %v1140 = vrot.slane %v469, 1
      %v1141 = vrot.slane %v472, 1
      %v1142 = vrot.slane %v475, 1
      %v1143 = vrot.slane %v478, 1
      %v1144 = vrot.slane %v481, 1
      %v1145 = vrot.slane %v484, 1
      %v1146 = vrot.slane %v487, 1
      %v1147 = vrot.slane %v490, 1
      %v1148 = vrot.slane %v493, 1
      %v1149 = vrot.slane %v496, 1
      %v1150 = vrot.slane %v499, 1
      %v1151 = vrot.slane %v502, 1
      %v1152 = vrot.slane %v505, 1
      %v1153 = vrot.slane %v508, 1
      %v1154 = vrot.slane %v511, 1
      %v1155 = vrot.slane %v514, 1
      %v1156 = vrot.slane %v517, 1
      %v1157 = vrot.slane %v520, 1
      %v1158 = vrot.slane %v523, 1
      %v1159 = vrot.slane %v526, 1
      %v1160 = vrot.slane %v529, 1
      %v1161 = vrot.slane %v532, 1
      %v1162 = vrot.slane %v535, 1
      %v1163 = vrot.slane %v538, 1
      %v1164 = vrot.slane %v541, 1
      %v1165 = vrot.slane %v544, 1
      %v1166 = vrot.slane %v547, 1
      %v1167 = vrot.slane %v550, 1
      %v1168 = vrot.slane %v553, 1
      %v1169 = vrot.slane %v556, 1
      %v1170 = vrot.slane %v559, 1
      %vm1171 = vcmp.lt.s32.totalorder %v562, 7
      %v1172 = vsel %vm1171, %v1169, %v1170
      %v1173 = vsel %vm1171, %v1168, %v1169
      %v1174 = vsel %vm1171, %v1167, %v1168
      %v1175 = vsel %vm1171, %v1166, %v1167
      %v1176 = vsel %vm1171, %v1165, %v1166
      %v1177 = vsel %vm1171, %v1164, %v1165
      %v1178 = vsel %vm1171, %v1163, %v1164
      %v1179 = vsel %vm1171, %v1162, %v1163
      %v1180 = vsel %vm1171, %v1161, %v1162
      %v1181 = vsel %vm1171, %v1160, %v1161
      %v1182 = vsel %vm1171, %v1159, %v1160
      %v1183 = vsel %vm1171, %v1158, %v1159
      %v1184 = vsel %vm1171, %v1157, %v1158
      %v1185 = vsel %vm1171, %v1156, %v1157
      %v1186 = vsel %vm1171, %v1155, %v1156
      %v1187 = vsel %vm1171, %v1154, %v1155
      %v1188 = vsel %vm1171, %v1153, %v1154
      %v1189 = vsel %vm1171, %v1152, %v1153
      %v1190 = vsel %vm1171, %v1151, %v1152
      %v1191 = vsel %vm1171, %v1150, %v1151
      %v1192 = vsel %vm1171, %v1149, %v1150
      %v1193 = vsel %vm1171, %v1148, %v1149
      %v1194 = vsel %vm1171, %v1147, %v1148
      %v1195 = vsel %vm1171, %v1146, %v1147
      %v1196 = vsel %vm1171, %v1145, %v1146
      %v1197 = vsel %vm1171, %v1144, %v1145
      %v1198 = vsel %vm1171, %v1143, %v1144
      %v1199 = vsel %vm1171, %v1142, %v1143
      %v1200 = vsel %vm1171, %v1141, %v1142
      %v1201 = vsel %vm1171, %v1140, %v1141
      %v1202 = vsel %vm1171, %v1139, %v1140
      %v1203 = vsel %vm1171, %v1170, %v1139
      %v1204 = vsel %vm1010, 0.0, %v1138
      %v1205 = vsel %vm1011, 0.0, %v1137
      %v1206 = vsel %vm1012, 0.0, %v1136
      %v1207 = vsel %vm1013, 0.0, %v1135
      %v1208 = vsel %vm1014, 0.0, %v1134
      %v1209 = vsel %vm1015, 0.0, %v1133
      %v1210 = vsel %vm1016, 0.0, %v1132
      %v1211 = vsel %vm1017, 0.0, %v1131
      %v1212 = vsel %vm1018, 0.0, %v1130
      %v1213 = vsel %vm1019, 0.0, %v1129
      %v1214 = vsel %vm1020, 0.0, %v1128
      %v1215 = vsel %vm1021, 0.0, %v1127
      %v1216 = vsel %vm1022, 0.0, %v1126
      %v1217 = vsel %vm1023, 0.0, %v1125
      %v1218 = vsel %vm1024, 0.0, %v1124
      %v1219 = vsel %vm1025, 0.0, %v1123
      %v1220 = vsel %vm1026, 0.0, %v1122
      %v1221 = vsel %vm1027, 0.0, %v1121
      %v1222 = vsel %vm1028, 0.0, %v1120
      %v1223 = vsel %vm1029, 0.0, %v1119
      %v1224 = vsel %vm1030, 0.0, %v1118
      %v1225 = vsel %vm1031, 0.0, %v1117
      %v1226 = vsel %vm1032, 0.0, %v1116
      %v1227 = vsel %vm1033, 0.0, %v1115
      %v1228 = vsel %vm1034, 0.0, %v1114
      %v1229 = vsel %vm1035, 0.0, %v1113
      %v1230 = vsel %vm1036, 0.0, %v1112
      %v1231 = vsel %vm1037, 0.0, %v1111
      %v1232 = vsel %vm1038, 0.0, %v1110
      %v1233 = vsel %vm1039, 0.0, %v1109
      %v1234 = vsel %vm1040, 0.0, %v1108
      %v1235 = vsel %vm1041, 0.0, %v1107
      %v1236 = vsel %vm1042, 0.0, %v1202
      %v1237 = vsel %vm1043, 0.0, %v1201
      %v1238 = vsel %vm1044, 0.0, %v1200
      %v1239 = vsel %vm1045, 0.0, %v1199
      %v1240 = vsel %vm1046, 0.0, %v1198
      %v1241 = vsel %vm1047, 0.0, %v1197
      %v1242 = vsel %vm1048, 0.0, %v1196
      %v1243 = vsel %vm1049, 0.0, %v1195
      %v1244 = vsel %vm1050, 0.0, %v1194
      %v1245 = vsel %vm1051, 0.0, %v1193
      %v1246 = vsel %vm1052, 0.0, %v1192
      %v1247 = vsel %vm1053, 0.0, %v1191
      %v1248 = vsel %vm1054, 0.0, %v1190
      %v1249 = vsel %vm1055, 0.0, %v1189
      %v1250 = vsel %vm1056, 0.0, %v1188
      %v1251 = vsel %vm1057, 0.0, %v1187
      %v1252 = vsel %vm1058, 0.0, %v1186
      %v1253 = vsel %vm1059, 0.0, %v1185
      %v1254 = vsel %vm1060, 0.0, %v1184
      %v1255 = vsel %vm1061, 0.0, %v1183
      %v1256 = vsel %vm1062, 0.0, %v1182
      %v1257 = vsel %vm1063, 0.0, %v1181
      %v1258 = vsel %vm1064, 0.0, %v1180
      %v1259 = vsel %vm1065, 0.0, %v1179
      %v1260 = vsel %vm1066, 0.0, %v1178
      %v1261 = vsel %vm1067, 0.0, %v1177
      %v1262 = vsel %vm1068, 0.0, %v1176
      %v1263 = vsel %vm1069, 0.0, %v1175
      %v1264 = vsel %vm1070, 0.0, %v1174
      %v1265 = vsel %vm1071, 0.0, %v1173
      %v1266 = vsel %vm1072, 0.0, %v1172
      %v1267 = vsel %vm1073, 0.0, %v1203
      %v1268 = vadd.f32 %v1204, %v1236
      %v1269 = vadd.f32 %v1205, %v1237
      %v1270 = vadd.f32 %v1206, %v1238
      %v1271 = vadd.f32 %v1207, %v1239
      %v1272 = vadd.f32 %v1208, %v1240
      %v1273 = vadd.f32 %v1209, %v1241
      %v1274 = vadd.f32 %v1210, %v1242
      %v1275 = vadd.f32 %v1211, %v1243
      %v1276 = vadd.f32 %v1212, %v1244
      %v1277 = vadd.f32 %v1213, %v1245
      %v1278 = vadd.f32 %v1214, %v1246
      %v1279 = vadd.f32 %v1215, %v1247
      %v1280 = vadd.f32 %v1216, %v1248
      %v1281 = vadd.f32 %v1217, %v1249
      %v1282 = vadd.f32 %v1218, %v1250
      %v1283 = vadd.f32 %v1219, %v1251
      %v1284 = vadd.f32 %v1220, %v1252
      %v1285 = vadd.f32 %v1221, %v1253
      %v1286 = vadd.f32 %v1222, %v1254
      %v1287 = vadd.f32 %v1223, %v1255
      %v1288 = vadd.f32 %v1224, %v1256
      %v1289 = vadd.f32 %v1225, %v1257
      %v1290 = vadd.f32 %v1226, %v1258
      %v1291 = vadd.f32 %v1227, %v1259
      %v1292 = vadd.f32 %v1228, %v1260
      %v1293 = vadd.f32 %v1229, %v1261
      %v1294 = vadd.f32 %v1230, %v1262
      %v1295 = vadd.f32 %v1231, %v1263
      %v1296 = vadd.f32 %v1232, %v1264
      %v1297 = vadd.f32 %v1233, %v1265
      %v1298 = vadd.f32 %v1234, %v1266
      %v1299 = vadd.f32 %v1235, %v1267
      %v1300 = vadd.f32 %v466, %v1268
      %v1301 = vadd.f32 %v469, %v1269
      %v1302 = vadd.f32 %v472, %v1270
      %v1303 = vadd.f32 %v475, %v1271
      %v1304 = vadd.f32 %v478, %v1272
      %v1305 = vadd.f32 %v481, %v1273
      %v1306 = vadd.f32 %v484, %v1274
      %v1307 = vadd.f32 %v487, %v1275
      %v1308 = vadd.f32 %v490, %v1276
      %v1309 = vadd.f32 %v493, %v1277
      %v1310 = vadd.f32 %v496, %v1278
      %v1311 = vadd.f32 %v499, %v1279
      %v1312 = vadd.f32 %v502, %v1280
      %v1313 = vadd.f32 %v505, %v1281
      %v1314 = vadd.f32 %v508, %v1282
      %v1315 = vadd.f32 %v511, %v1283
      %v1316 = vadd.f32 %v514, %v1284
      %v1317 = vadd.f32 %v517, %v1285
      %v1318 = vadd.f32 %v520, %v1286
      %v1319 = vadd.f32 %v523, %v1287
      %v1320 = vadd.f32 %v526, %v1288
      %v1321 = vadd.f32 %v529, %v1289
      %v1322 = vadd.f32 %v532, %v1290
      %v1323 = vadd.f32 %v535, %v1291
      %v1324 = vadd.f32 %v538, %v1292
      %v1325 = vadd.f32 %v541, %v1293
      %v1326 = vadd.f32 %v544, %v1294
      %v1327 = vadd.f32 %v547, %v1295
      %v1328 = vadd.f32 %v550, %v1296
      %v1329 = vadd.f32 %v553, %v1297
      %v1330 = vadd.f32 %v556, %v1298
      %v1331 = vadd.f32 %v559, %v1299
      %v1332 = vld [vmem:[%s3] sm:$0xff]
      %v1333 = vld [vmem:[%s3 + $0x8] sm:$0xff]
      %v1334 = vld [vmem:[%s3 + $0x10] sm:$0xff]
      %v1335 = vld [vmem:[%s3 + $0x18] sm:$0xff]
      %v1336 = vld [vmem:[%s4] sm:$0x1]
      %v1338 = vperm.slane %v1336, 0
      %vm1340 = vcmask 261120
      %v1342 = vsel %vm1340, %v1300, 0
      %v1345 = vsel %vm1340, %v1301, 0
      %v1348 = vsel %vm1340, %v1302, 0
      %v1351 = vsel %vm1340, %v1303, 0
      %v1354 = vsel %vm1340, %v1304, 0
      %v1357 = vsel %vm1340, %v1305, 0
      %v1360 = vsel %vm1340, %v1306, 0
      %v1363 = vsel %vm1340, %v1307, 0
      %v1366 = vsel %vm1340, %v1308, 0
      %v1369 = vsel %vm1340, %v1309, 0
      %v1372 = vsel %vm1340, %v1310, 0
      %v1375 = vsel %vm1340, %v1311, 0
      %v1378 = vsel %vm1340, %v1312, 0
      %v1381 = vsel %vm1340, %v1313, 0
      %v1384 = vsel %vm1340, %v1314, 0
      %v1387 = vsel %vm1340, %v1315, 0
      %v1390 = vsel %vm1340, %v1316, 0
      %v1393 = vsel %vm1340, %v1317, 0
      %v1396 = vsel %vm1340, %v1318, 0
      %v1399 = vsel %vm1340, %v1319, 0
      %v1402 = vsel %vm1340, %v1320, 0
      %v1405 = vsel %vm1340, %v1321, 0
      %v1408 = vsel %vm1340, %v1322, 0
      %v1411 = vsel %vm1340, %v1323, 0
      %v1414 = vsel %vm1340, %v1324, 0
      %v1417 = vsel %vm1340, %v1325, 0
      %v1420 = vsel %vm1340, %v1326, 0
      %v1423 = vsel %vm1340, %v1327, 0
      %v1426 = vsel %vm1340, %v1328, 0
      %v1429 = vsel %vm1340, %v1329, 0
      %v1432 = vsel %vm1340, %v1330, 0
      %v1435 = vsel %vm1340, %v1331, 0
      %1437 = vmatpush.msra.mxu0 0.0
      %1438 = vmatpush.msra.mxu0 0.0
      %1439 = vmatpush.msra.mxu0 0.0
      %1440 = vmatpush.msra.mxu0 0.0
      %1441 = vmatpush.msra.mxu0 0.0
      %1442 = vmatpush.msra.mxu0 0.0
      %1443 = vmatpush.msra.mxu0 0.0
      %1444 = vmatpush.msra.mxu0 0.0
      %1445 = vmatpush.msra.mxu0 0.0
      %1446 = vmatpush.msra.mxu0 0.0
      %1447 = vmatpush.msra.mxu0 0.0
      %1448 = vmatpush.msra.mxu0 0.0
      %1449 = vmatpush.msra.mxu0 %v1335
      %1450 = vmatpush.msra.mxu0 %v1334
      %1451 = vmatpush.msra.mxu0 %v1333
      %1452 = vmatpush.msra.mxu0 %v1332
      %1453 = vmatmul.f32.gmra.mxu0 %v1342
      %v1454 = vpop.f32.mrf.mxu0
      %v1455 = vadd.f32 %v1338, %v1454
      %1456 = vmatmul.f32.gmra.mxu0 %v1345
      %v1457 = vpop.f32.mrf.mxu0
      %v1458 = vadd.f32 %v1338, %v1457
      %1459 = vmatmul.f32.gmra.mxu0 %v1348
      %v1460 = vpop.f32.mrf.mxu0
      %v1461 = vadd.f32 %v1338, %v1460
      %1462 = vmatmul.f32.gmra.mxu0 %v1351
      %v1463 = vpop.f32.mrf.mxu0
      %v1464 = vadd.f32 %v1338, %v1463
      %1465 = vmatmul.f32.gmra.mxu0 %v1354
      %v1466 = vpop.f32.mrf.mxu0
      %v1467 = vadd.f32 %v1338, %v1466
      %1468 = vmatmul.f32.gmra.mxu0 %v1357
      %v1469 = vpop.f32.mrf.mxu0
      %v1470 = vadd.f32 %v1338, %v1469
      %1471 = vmatmul.f32.gmra.mxu0 %v1360
      %v1472 = vpop.f32.mrf.mxu0
      %v1473 = vadd.f32 %v1338, %v1472
      %1474 = vmatmul.f32.gmra.mxu0 %v1363
      %v1475 = vpop.f32.mrf.mxu0
      %v1476 = vadd.f32 %v1338, %v1475
      %1477 = vmatmul.f32.gmra.mxu0 %v1366
      %v1478 = vpop.f32.mrf.mxu0
      %v1479 = vadd.f32 %v1338, %v1478
      %1480 = vmatmul.f32.gmra.mxu0 %v1369
      %v1481 = vpop.f32.mrf.mxu0
      %v1482 = vadd.f32 %v1338, %v1481
      %1483 = vmatmul.f32.gmra.mxu0 %v1372
      %v1484 = vpop.f32.mrf.mxu0
      %v1485 = vadd.f32 %v1338, %v1484
      %1486 = vmatmul.f32.gmra.mxu0 %v1375
      %v1487 = vpop.f32.mrf.mxu0
      %v1488 = vadd.f32 %v1338, %v1487
      %1489 = vmatmul.f32.gmra.mxu0 %v1378
      %v1490 = vpop.f32.mrf.mxu0
      %v1491 = vadd.f32 %v1338, %v1490
      %1492 = vmatmul.f32.gmra.mxu0 %v1381
      %v1493 = vpop.f32.mrf.mxu0
      %v1494 = vadd.f32 %v1338, %v1493
      %1495 = vmatmul.f32.gmra.mxu0 %v1384
      %v1496 = vpop.f32.mrf.mxu0
      %v1497 = vadd.f32 %v1338, %v1496
      %1498 = vmatmul.f32.gmra.mxu0 %v1387
      %v1499 = vpop.f32.mrf.mxu0
      %v1500 = vadd.f32 %v1338, %v1499
      %1501 = vmatmul.f32.gmra.mxu0 %v1390
      %v1502 = vpop.f32.mrf.mxu0
      %v1503 = vadd.f32 %v1338, %v1502
      %1504 = vmatmul.f32.gmra.mxu0 %v1393
      %v1505 = vpop.f32.mrf.mxu0
      %v1506 = vadd.f32 %v1338, %v1505
      %1507 = vmatmul.f32.gmra.mxu0 %v1396
      %v1508 = vpop.f32.mrf.mxu0
      %v1509 = vadd.f32 %v1338, %v1508
      %1510 = vmatmul.f32.gmra.mxu0 %v1399
      %v1511 = vpop.f32.mrf.mxu0
      %v1512 = vadd.f32 %v1338, %v1511
      %1513 = vmatmul.f32.gmra.mxu0 %v1402
      %v1514 = vpop.f32.mrf.mxu0
      %v1515 = vadd.f32 %v1338, %v1514
      %1516 = vmatmul.f32.gmra.mxu0 %v1405
      %v1517 = vpop.f32.mrf.mxu0
      %v1518 = vadd.f32 %v1338, %v1517
      %1519 = vmatmul.f32.gmra.mxu0 %v1408
      %v1520 = vpop.f32.mrf.mxu0
      %v1521 = vadd.f32 %v1338, %v1520
      %1522 = vmatmul.f32.gmra.mxu0 %v1411
      %v1523 = vpop.f32.mrf.mxu0
      %v1524 = vadd.f32 %v1338, %v1523
      %1525 = vmatmul.f32.gmra.mxu0 %v1414
      %v1526 = vpop.f32.mrf.mxu0
      %v1527 = vadd.f32 %v1338, %v1526
      %1528 = vmatmul.f32.gmra.mxu0 %v1417
      %v1529 = vpop.f32.mrf.mxu0
      %v1530 = vadd.f32 %v1338, %v1529
      %1531 = vmatmul.f32.gmra.mxu0 %v1420
      %v1532 = vpop.f32.mrf.mxu0
      %v1533 = vadd.f32 %v1338, %v1532
      %1534 = vmatmul.f32.gmra.mxu0 %v1423
      %v1535 = vpop.f32.mrf.mxu0
      %v1536 = vadd.f32 %v1338, %v1535
      %1537 = vmatmul.f32.gmra.mxu0 %v1426
      %v1538 = vpop.f32.mrf.mxu0
      %v1539 = vadd.f32 %v1338, %v1538
      %1540 = vmatmul.f32.gmra.mxu0 %v1429
      %v1541 = vpop.f32.mrf.mxu0
      %v1542 = vadd.f32 %v1338, %v1541
      %1543 = vmatmul.f32.gmra.mxu0 %v1432
      %v1544 = vpop.f32.mrf.mxu0
      %v1545 = vadd.f32 %v1338, %v1544
      %1546 = vmatmul.f32.gmra.mxu0 %v1435
      %v1547 = vpop.f32.mrf.mxu0
      %v1548 = vadd.f32 %v1338, %v1547
      %1549 = vdwg.mxu0
      %v1550 = vmax.f32 %v1455, 0.0
      %v1551 = vmax.f32 %v1458, 0.0
      %v1552 = vmax.f32 %v1461, 0.0
      %v1553 = vmax.f32 %v1464, 0.0
      %v1554 = vmax.f32 %v1467, 0.0
      %v1555 = vmax.f32 %v1470, 0.0
      %v1556 = vmax.f32 %v1473, 0.0
      %v1557 = vmax.f32 %v1476, 0.0
      %v1558 = vmax.f32 %v1479, 0.0
      %v1559 = vmax.f32 %v1482, 0.0
      %v1560 = vmax.f32 %v1485, 0.0
      %v1561 = vmax.f32 %v1488, 0.0
      %v1562 = vmax.f32 %v1491, 0.0
      %v1563 = vmax.f32 %v1494, 0.0
      %v1564 = vmax.f32 %v1497, 0.0
      %v1565 = vmax.f32 %v1500, 0.0
      %v1566 = vmax.f32 %v1503, 0.0
      %v1567 = vmax.f32 %v1506, 0.0
      %v1568 = vmax.f32 %v1509, 0.0
      %v1569 = vmax.f32 %v1512, 0.0
      %v1570 = vmax.f32 %v1515, 0.0
      %v1571 = vmax.f32 %v1518, 0.0
      %v1572 = vmax.f32 %v1521, 0.0
      %v1573 = vmax.f32 %v1524, 0.0
      %v1574 = vmax.f32 %v1527, 0.0
      %v1575 = vmax.f32 %v1530, 0.0
      %v1576 = vmax.f32 %v1533, 0.0
      %v1577 = vmax.f32 %v1536, 0.0
      %v1578 = vmax.f32 %v1539, 0.0
      %v1579 = vmax.f32 %v1542, 0.0
      %v1580 = vmax.f32 %v1545, 0.0
      %v1581 = vmax.f32 %v1548, 0.0
      %v1582 = vld [vmem:[%s5] sm:$0xff]
      %v1583 = vld [vmem:[%s5 + $0x8] sm:$0xff]
      %v1584 = vld [vmem:[%s5 + $0x10] sm:$0xff]
      %v1585 = vld [vmem:[%s5 + $0x18] sm:$0xff]
      %v1586 = vld [vmem:[%s6] sm:$0x1]
      %v1588 = vperm.slane %v1586, 0
      %v1591 = vsel %vm1340, %v1550, 0
      %v1594 = vsel %vm1340, %v1551, 0
      %v1597 = vsel %vm1340, %v1552, 0
      %v1600 = vsel %vm1340, %v1553, 0
      %v1603 = vsel %vm1340, %v1554, 0
      %v1606 = vsel %vm1340, %v1555, 0
      %v1609 = vsel %vm1340, %v1556, 0
      %v1612 = vsel %vm1340, %v1557, 0
      %v1615 = vsel %vm1340, %v1558, 0
      %v1618 = vsel %vm1340, %v1559, 0
      %v1621 = vsel %vm1340, %v1560, 0
      %v1624 = vsel %vm1340, %v1561, 0
      %v1627 = vsel %vm1340, %v1562, 0
      %v1630 = vsel %vm1340, %v1563, 0
      %v1633 = vsel %vm1340, %v1564, 0
      %v1636 = vsel %vm1340, %v1565, 0
      %v1639 = vsel %vm1340, %v1566, 0
      %v1642 = vsel %vm1340, %v1567, 0
      %v1645 = vsel %vm1340, %v1568, 0
      %v1648 = vsel %vm1340, %v1569, 0
      %v1651 = vsel %vm1340, %v1570, 0
      %v1654 = vsel %vm1340, %v1571, 0
      %v1657 = vsel %vm1340, %v1572, 0
      %v1660 = vsel %vm1340, %v1573, 0
      %v1663 = vsel %vm1340, %v1574, 0
      %v1666 = vsel %vm1340, %v1575, 0
      %v1669 = vsel %vm1340, %v1576, 0
      %v1672 = vsel %vm1340, %v1577, 0
      %v1675 = vsel %vm1340, %v1578, 0
      %v1678 = vsel %vm1340, %v1579, 0
      %v1681 = vsel %vm1340, %v1580, 0
      %v1684 = vsel %vm1340, %v1581, 0
      %1686 = vmatpush.msra.mxu0 0.0
      %1687 = vmatpush.msra.mxu0 0.0
      %1688 = vmatpush.msra.mxu0 0.0
      %1689 = vmatpush.msra.mxu0 0.0
      %1690 = vmatpush.msra.mxu0 0.0
      %1691 = vmatpush.msra.mxu0 0.0
      %1692 = vmatpush.msra.mxu0 0.0
      %1693 = vmatpush.msra.mxu0 0.0
      %1694 = vmatpush.msra.mxu0 0.0
      %1695 = vmatpush.msra.mxu0 0.0
      %1696 = vmatpush.msra.mxu0 0.0
      %1697 = vmatpush.msra.mxu0 0.0
      %1698 = vmatpush.msra.mxu0 %v1585
      %1699 = vmatpush.msra.mxu0 %v1584
      %1700 = vmatpush.msra.mxu0 %v1583
      %1701 = vmatpush.msra.mxu0 %v1582
      %1702 = vmatmul.f32.gmra.mxu0 %v1591
      %v1703 = vpop.f32.mrf.mxu0
      %v1704 = vadd.f32 %v1588, %v1703
      %1705 = vmatmul.f32.gmra.mxu0 %v1594
      %v1706 = vpop.f32.mrf.mxu0
      %v1707 = vadd.f32 %v1588, %v1706
      %1708 = vmatmul.f32.gmra.mxu0 %v1597
      %v1709 = vpop.f32.mrf.mxu0
      %v1710 = vadd.f32 %v1588, %v1709
      %1711 = vmatmul.f32.gmra.mxu0 %v1600
      %v1712 = vpop.f32.mrf.mxu0
      %v1713 = vadd.f32 %v1588, %v1712
      %1714 = vmatmul.f32.gmra.mxu0 %v1603
      %v1715 = vpop.f32.mrf.mxu0
      %v1716 = vadd.f32 %v1588, %v1715
      %1717 = vmatmul.f32.gmra.mxu0 %v1606
      %v1718 = vpop.f32.mrf.mxu0
      %v1719 = vadd.f32 %v1588, %v1718
      %1720 = vmatmul.f32.gmra.mxu0 %v1609
      %v1721 = vpop.f32.mrf.mxu0
      %v1722 = vadd.f32 %v1588, %v1721
      %1723 = vmatmul.f32.gmra.mxu0 %v1612
      %v1724 = vpop.f32.mrf.mxu0
      %v1725 = vadd.f32 %v1588, %v1724
      %1726 = vmatmul.f32.gmra.mxu0 %v1615
      %v1727 = vpop.f32.mrf.mxu0
      %v1728 = vadd.f32 %v1588, %v1727
      %1729 = vmatmul.f32.gmra.mxu0 %v1618
      %v1730 = vpop.f32.mrf.mxu0
      %v1731 = vadd.f32 %v1588, %v1730
      %1732 = vmatmul.f32.gmra.mxu0 %v1621
      %v1733 = vpop.f32.mrf.mxu0
      %v1734 = vadd.f32 %v1588, %v1733
      %1735 = vmatmul.f32.gmra.mxu0 %v1624
      %v1736 = vpop.f32.mrf.mxu0
      %v1737 = vadd.f32 %v1588, %v1736
      %1738 = vmatmul.f32.gmra.mxu0 %v1627
      %v1739 = vpop.f32.mrf.mxu0
      %v1740 = vadd.f32 %v1588, %v1739
      %1741 = vmatmul.f32.gmra.mxu0 %v1630
      %v1742 = vpop.f32.mrf.mxu0
      %v1743 = vadd.f32 %v1588, %v1742
      %1744 = vmatmul.f32.gmra.mxu0 %v1633
      %v1745 = vpop.f32.mrf.mxu0
      %v1746 = vadd.f32 %v1588, %v1745
      %1747 = vmatmul.f32.gmra.mxu0 %v1636
      %v1748 = vpop.f32.mrf.mxu0
      %v1749 = vadd.f32 %v1588, %v1748
      %1750 = vmatmul.f32.gmra.mxu0 %v1639
      %v1751 = vpop.f32.mrf.mxu0
      %v1752 = vadd.f32 %v1588, %v1751
      %1753 = vmatmul.f32.gmra.mxu0 %v1642
      %v1754 = vpop.f32.mrf.mxu0
      %v1755 = vadd.f32 %v1588, %v1754
      %1756 = vmatmul.f32.gmra.mxu0 %v1645
      %v1757 = vpop.f32.mrf.mxu0
      %v1758 = vadd.f32 %v1588, %v1757
      %1759 = vmatmul.f32.gmra.mxu0 %v1648
      %v1760 = vpop.f32.mrf.mxu0
      %v1761 = vadd.f32 %v1588, %v1760
      %1762 = vmatmul.f32.gmra.mxu0 %v1651
      %v1763 = vpop.f32.mrf.mxu0
      %v1764 = vadd.f32 %v1588, %v1763
      %1765 = vmatmul.f32.gmra.mxu0 %v1654
      %v1766 = vpop.f32.mrf.mxu0
      %v1767 = vadd.f32 %v1588, %v1766
      %1768 = vmatmul.f32.gmra.mxu0 %v1657
      %v1769 = vpop.f32.mrf.mxu0
      %v1770 = vadd.f32 %v1588, %v1769
      %1771 = vmatmul.f32.gmra.mxu0 %v1660
      %v1772 = vpop.f32.mrf.mxu0
      %v1773 = vadd.f32 %v1588, %v1772
      %1774 = vmatmul.f32.gmra.mxu0 %v1663
      %v1775 = vpop.f32.mrf.mxu0
      %v1776 = vadd.f32 %v1588, %v1775
      %1777 = vmatmul.f32.gmra.mxu0 %v1666
      %v1778 = vpop.f32.mrf.mxu0
      %v1779 = vadd.f32 %v1588, %v1778
      %1780 = vmatmul.f32.gmra.mxu0 %v1669
      %v1781 = vpop.f32.mrf.mxu0
      %v1782 = vadd.f32 %v1588, %v1781
      %1783 = vmatmul.f32.gmra.mxu0 %v1672
      %v1784 = vpop.f32.mrf.mxu0
      %v1785 = vadd.f32 %v1588, %v1784
      %1786 = vmatmul.f32.gmra.mxu0 %v1675
      %v1787 = vpop.f32.mrf.mxu0
      %v1788 = vadd.f32 %v1588, %v1787
      %1789 = vmatmul.f32.gmra.mxu0 %v1678
      %v1790 = vpop.f32.mrf.mxu0
      %v1791 = vadd.f32 %v1588, %v1790
      %1792 = vmatmul.f32.gmra.mxu0 %v1681
      %v1793 = vpop.f32.mrf.mxu0
      %v1794 = vadd.f32 %v1588, %v1793
      %1795 = vmatmul.f32.gmra.mxu0 %v1684
      %v1796 = vpop.f32.mrf.mxu0
      %v1797 = vadd.f32 %v1588, %v1796
      %1798 = vdwg.mxu0
      %v1799 = vmax.f32 %v1704, 0.0
      %v1800 = vmax.f32 %v1707, 0.0
      %v1801 = vmax.f32 %v1710, 0.0
      %v1802 = vmax.f32 %v1713, 0.0
      %v1803 = vmax.f32 %v1716, 0.0
      %v1804 = vmax.f32 %v1719, 0.0
      %v1805 = vmax.f32 %v1722, 0.0
      %v1806 = vmax.f32 %v1725, 0.0
      %v1807 = vmax.f32 %v1728, 0.0
      %v1808 = vmax.f32 %v1731, 0.0
      %v1809 = vmax.f32 %v1734, 0.0
      %v1810 = vmax.f32 %v1737, 0.0
      %v1811 = vmax.f32 %v1740, 0.0
      %v1812 = vmax.f32 %v1743, 0.0
      %v1813 = vmax.f32 %v1746, 0.0
      %v1814 = vmax.f32 %v1749, 0.0
      %v1815 = vmax.f32 %v1752, 0.0
      %v1816 = vmax.f32 %v1755, 0.0
      %v1817 = vmax.f32 %v1758, 0.0
      %v1818 = vmax.f32 %v1761, 0.0
      %v1819 = vmax.f32 %v1764, 0.0
      %v1820 = vmax.f32 %v1767, 0.0
      %v1821 = vmax.f32 %v1770, 0.0
      %v1822 = vmax.f32 %v1773, 0.0
      %v1823 = vmax.f32 %v1776, 0.0
      %v1824 = vmax.f32 %v1779, 0.0
      %v1825 = vmax.f32 %v1782, 0.0
      %v1826 = vmax.f32 %v1785, 0.0
      %v1827 = vmax.f32 %v1788, 0.0
      %v1828 = vmax.f32 %v1791, 0.0
      %v1829 = vmax.f32 %v1794, 0.0
      %v1830 = vmax.f32 %v1797, 0.0
      %v1831 = vrot.slane %v1799, 7
      %v1832 = vrot.slane %v1800, 7
      %v1833 = vrot.slane %v1801, 7
      %v1834 = vrot.slane %v1802, 7
      %v1835 = vrot.slane %v1803, 7
      %v1836 = vrot.slane %v1804, 7
      %v1837 = vrot.slane %v1805, 7
      %v1838 = vrot.slane %v1806, 7
      %v1839 = vrot.slane %v1807, 7
      %v1840 = vrot.slane %v1808, 7
      %v1841 = vrot.slane %v1809, 7
      %v1842 = vrot.slane %v1810, 7
      %v1843 = vrot.slane %v1811, 7
      %v1844 = vrot.slane %v1812, 7
      %v1845 = vrot.slane %v1813, 7
      %v1846 = vrot.slane %v1814, 7
      %v1847 = vrot.slane %v1815, 7
      %v1848 = vrot.slane %v1816, 7
      %v1849 = vrot.slane %v1817, 7
      %v1850 = vrot.slane %v1818, 7
      %v1851 = vrot.slane %v1819, 7
      %v1852 = vrot.slane %v1820, 7
      %v1853 = vrot.slane %v1821, 7
      %v1854 = vrot.slane %v1822, 7
      %v1855 = vrot.slane %v1823, 7
      %v1856 = vrot.slane %v1824, 7
      %v1857 = vrot.slane %v1825, 7
      %v1858 = vrot.slane %v1826, 7
      %v1859 = vrot.slane %v1827, 7
      %v1860 = vrot.slane %v1828, 7
      %v1861 = vrot.slane %v1829, 7
      %v1862 = vrot.slane %v1830, 7
      %v1863 = vsel %vm1106, %v1861, %v1862
      %v1864 = vsel %vm1106, %v1860, %v1861
      %v1865 = vsel %vm1106, %v1859, %v1860
      %v1866 = vsel %vm1106, %v1858, %v1859
      %v1867 = vsel %vm1106, %v1857, %v1858
      %v1868 = vsel %vm1106, %v1856, %v1857
      %v1869 = vsel %vm1106, %v1855, %v1856
      %v1870 = vsel %vm1106, %v1854, %v1855
      %v1871 = vsel %vm1106, %v1853, %v1854
      %v1872 = vsel %vm1106, %v1852, %v1853
      %v1873 = vsel %vm1106, %v1851, %v1852
      %v1874 = vsel %vm1106, %v1850, %v1851
      %v1875 = vsel %vm1106, %v1849, %v1850
      %v1876 = vsel %vm1106, %v1848, %v1849
      %v1877 = vsel %vm1106, %v1847, %v1848
      %v1878 = vsel %vm1106, %v1846, %v1847
      %v1879 = vsel %vm1106, %v1845, %v1846
      %v1880 = vsel %vm1106, %v1844, %v1845
      %v1881 = vsel %vm1106, %v1843, %v1844
      %v1882 = vsel %vm1106, %v1842, %v1843
      %v1883 = vsel %vm1106, %v1841, %v1842
      %v1884 = vsel %vm1106, %v1840, %v1841
      %v1885 = vsel %vm1106, %v1839, %v1840
      %v1886 = vsel %vm1106, %v1838, %v1839
      %v1887 = vsel %vm1106, %v1837, %v1838
      %v1888 = vsel %vm1106, %v1836, %v1837
      %v1889 = vsel %vm1106, %v1835, %v1836
      %v1890 = vsel %vm1106, %v1834, %v1835
      %v1891 = vsel %vm1106, %v1833, %v1834
      %v1892 = vsel %vm1106, %v1832, %v1833
      %v1893 = vsel %vm1106, %v1831, %v1832
      %v1894 = vsel %vm1106, %v1862, %v1831
      %v1895 = vrot.slane %v1799, 1
      %v1896 = vrot.slane %v1800, 1
      %v1897 = vrot.slane %v1801, 1
      %v1898 = vrot.slane %v1802, 1
      %v1899 = vrot.slane %v1803, 1
      %v1900 = vrot.slane %v1804, 1
      %v1901 = vrot.slane %v1805, 1
      %v1902 = vrot.slane %v1806, 1
      %v1903 = vrot.slane %v1807, 1
      %v1904 = vrot.slane %v1808, 1
      %v1905 = vrot.slane %v1809, 1
      %v1906 = vrot.slane %v1810, 1
      %v1907 = vrot.slane %v1811, 1
      %v1908 = vrot.slane %v1812, 1
      %v1909 = vrot.slane %v1813, 1
      %v1910 = vrot.slane %v1814, 1
      %v1911 = vrot.slane %v1815, 1
      %v1912 = vrot.slane %v1816, 1
      %v1913 = vrot.slane %v1817, 1
      %v1914 = vrot.slane %v1818, 1
      %v1915 = vrot.slane %v1819, 1
      %v1916 = vrot.slane %v1820, 1
      %v1917 = vrot.slane %v1821, 1
      %v1918 = vrot.slane %v1822, 1
      %v1919 = vrot.slane %v1823, 1
      %v1920 = vrot.slane %v1824, 1
      %v1921 = vrot.slane %v1825, 1
      %v1922 = vrot.slane %v1826, 1
      %v1923 = vrot.slane %v1827, 1
      %v1924 = vrot.slane %v1828, 1
      %v1925 = vrot.slane %v1829, 1
      %v1926 = vrot.slane %v1830, 1
      %v1927 = vsel %vm1171, %v1925, %v1926
      %v1928 = vsel %vm1171, %v1924, %v1925
      %v1929 = vsel %vm1171, %v1923, %v1924
      %v1930 = vsel %vm1171, %v1922, %v1923
      %v1931 = vsel %vm1171, %v1921, %v1922
      %v1932 = vsel %vm1171, %v1920, %v1921
      %v1933 = vsel %vm1171, %v1919, %v1920
      %v1934 = vsel %vm1171, %v1918, %v1919
      %v1935 = vsel %vm1171, %v1917, %v1918
      %v1936 = vsel %vm1171, %v1916, %v1917
      %v1937 = vsel %vm1171, %v1915, %v1916
      %v1938 = vsel %vm1171, %v1914, %v1915
      %v1939 = vsel %vm1171, %v1913, %v1914
      %v1940 = vsel %vm1171, %v1912, %v1913
      %v1941 = vsel %vm1171, %v1911, %v1912
      %v1942 = vsel %vm1171, %v1910, %v1911
      %v1943 = vsel %vm1171, %v1909, %v1910
      %v1944 = vsel %vm1171, %v1908, %v1909
      %v1945 = vsel %vm1171, %v1907, %v1908
      %v1946 = vsel %vm1171, %v1906, %v1907
      %v1947 = vsel %vm1171, %v1905, %v1906
      %v1948 = vsel %vm1171, %v1904, %v1905
      %v1949 = vsel %vm1171, %v1903, %v1904
      %v1950 = vsel %vm1171, %v1902, %v1903
      %v1951 = vsel %vm1171, %v1901, %v1902
      %v1952 = vsel %vm1171, %v1900, %v1901
      %v1953 = vsel %vm1171, %v1899, %v1900
      %v1954 = vsel %vm1171, %v1898, %v1899
      %v1955 = vsel %vm1171, %v1897, %v1898
      %v1956 = vsel %vm1171, %v1896, %v1897
      %v1957 = vsel %vm1171, %v1895, %v1896
      %v1958 = vsel %vm1171, %v1926, %v1895
      %v1959 = vsel %vm1010, 0.0, %v1894
      %v1960 = vsel %vm1011, 0.0, %v1893
      %v1961 = vsel %vm1012, 0.0, %v1892
      %v1962 = vsel %vm1013, 0.0, %v1891
      %v1963 = vsel %vm1014, 0.0, %v1890
      %v1964 = vsel %vm1015, 0.0, %v1889
      %v1965 = vsel %vm1016, 0.0, %v1888
      %v1966 = vsel %vm1017, 0.0, %v1887
      %v1967 = vsel %vm1018, 0.0, %v1886
      %v1968 = vsel %vm1019, 0.0, %v1885
      %v1969 = vsel %vm1020, 0.0, %v1884
      %v1970 = vsel %vm1021, 0.0, %v1883
      %v1971 = vsel %vm1022, 0.0, %v1882
      %v1972 = vsel %vm1023, 0.0, %v1881
      %v1973 = vsel %vm1024, 0.0, %v1880
      %v1974 = vsel %vm1025, 0.0, %v1879
      %v1975 = vsel %vm1026, 0.0, %v1878
      %v1976 = vsel %vm1027, 0.0, %v1877
      %v1977 = vsel %vm1028, 0.0, %v1876
      %v1978 = vsel %vm1029, 0.0, %v1875
      %v1979 = vsel %vm1030, 0.0, %v1874
      %v1980 = vsel %vm1031, 0.0, %v1873
      %v1981 = vsel %vm1032, 0.0, %v1872
      %v1982 = vsel %vm1033, 0.0, %v1871
      %v1983 = vsel %vm1034, 0.0, %v1870
      %v1984 = vsel %vm1035, 0.0, %v1869
      %v1985 = vsel %vm1036, 0.0, %v1868
      %v1986 = vsel %vm1037, 0.0, %v1867
      %v1987 = vsel %vm1038, 0.0, %v1866
      %v1988 = vsel %vm1039, 0.0, %v1865
      %v1989 = vsel %vm1040, 0.0, %v1864
      %v1990 = vsel %vm1041, 0.0, %v1863
      %v1991 = vsel %vm1042, 0.0, %v1957
      %v1992 = vsel %vm1043, 0.0, %v1956
      %v1993 = vsel %vm1044, 0.0, %v1955
      %v1994 = vsel %vm1045, 0.0, %v1954
      %v1995 = vsel %vm1046, 0.0, %v1953
      %v1996 = vsel %vm1047, 0.0, %v1952
      %v1997 = vsel %vm1048, 0.0, %v1951
      %v1998 = vsel %vm1049, 0.0, %v1950
      %v1999 = vsel %vm1050, 0.0, %v1949
      %v2000 = vsel %vm1051, 0.0, %v1948
      %v2001 = vsel %vm1052, 0.0, %v1947
      %v2002 = vsel %vm1053, 0.0, %v1946
      %v2003 = vsel %vm1054, 0.0, %v1945
      %v2004 = vsel %vm1055, 0.0, %v1944
      %v2005 = vsel %vm1056, 0.0, %v1943
      %v2006 = vsel %vm1057, 0.0, %v1942
      %v2007 = vsel %vm1058, 0.0, %v1941
      %v2008 = vsel %vm1059, 0.0, %v1940
      %v2009 = vsel %vm1060, 0.0, %v1939
      %v2010 = vsel %vm1061, 0.0, %v1938
      %v2011 = vsel %vm1062, 0.0, %v1937
      %v2012 = vsel %vm1063, 0.0, %v1936
      %v2013 = vsel %vm1064, 0.0, %v1935
      %v2014 = vsel %vm1065, 0.0, %v1934
      %v2015 = vsel %vm1066, 0.0, %v1933
      %v2016 = vsel %vm1067, 0.0, %v1932
      %v2017 = vsel %vm1068, 0.0, %v1931
      %v2018 = vsel %vm1069, 0.0, %v1930
      %v2019 = vsel %vm1070, 0.0, %v1929
      %v2020 = vsel %vm1071, 0.0, %v1928
      %v2021 = vsel %vm1072, 0.0, %v1927
      %v2022 = vsel %vm1073, 0.0, %v1958
      %v2023 = vadd.f32 %v1959, %v1991
      %v2024 = vadd.f32 %v1960, %v1992
      %v2025 = vadd.f32 %v1961, %v1993
      %v2026 = vadd.f32 %v1962, %v1994
      %v2027 = vadd.f32 %v1963, %v1995
      %v2028 = vadd.f32 %v1964, %v1996
      %v2029 = vadd.f32 %v1965, %v1997
      %v2030 = vadd.f32 %v1966, %v1998
      %v2031 = vadd.f32 %v1967, %v1999
      %v2032 = vadd.f32 %v1968, %v2000
      %v2033 = vadd.f32 %v1969, %v2001
      %v2034 = vadd.f32 %v1970, %v2002
      %v2035 = vadd.f32 %v1971, %v2003
      %v2036 = vadd.f32 %v1972, %v2004
      %v2037 = vadd.f32 %v1973, %v2005
      %v2038 = vadd.f32 %v1974, %v2006
      %v2039 = vadd.f32 %v1975, %v2007
      %v2040 = vadd.f32 %v1976, %v2008
      %v2041 = vadd.f32 %v1977, %v2009
      %v2042 = vadd.f32 %v1978, %v2010
      %v2043 = vadd.f32 %v1979, %v2011
      %v2044 = vadd.f32 %v1980, %v2012
      %v2045 = vadd.f32 %v1981, %v2013
      %v2046 = vadd.f32 %v1982, %v2014
      %v2047 = vadd.f32 %v1983, %v2015
      %v2048 = vadd.f32 %v1984, %v2016
      %v2049 = vadd.f32 %v1985, %v2017
      %v2050 = vadd.f32 %v1986, %v2018
      %v2051 = vadd.f32 %v1987, %v2019
      %v2052 = vadd.f32 %v1988, %v2020
      %v2053 = vadd.f32 %v1989, %v2021
      %v2054 = vadd.f32 %v1990, %v2022
      %v2055 = vadd.f32 %v1799, %v2023
      %v2056 = vadd.f32 %v1800, %v2024
      %v2057 = vadd.f32 %v1801, %v2025
      %v2058 = vadd.f32 %v1802, %v2026
      %v2059 = vadd.f32 %v1803, %v2027
      %v2060 = vadd.f32 %v1804, %v2028
      %v2061 = vadd.f32 %v1805, %v2029
      %v2062 = vadd.f32 %v1806, %v2030
      %v2063 = vadd.f32 %v1807, %v2031
      %v2064 = vadd.f32 %v1808, %v2032
      %v2065 = vadd.f32 %v1809, %v2033
      %v2066 = vadd.f32 %v1810, %v2034
      %v2067 = vadd.f32 %v1811, %v2035
      %v2068 = vadd.f32 %v1812, %v2036
      %v2069 = vadd.f32 %v1813, %v2037
      %v2070 = vadd.f32 %v1814, %v2038
      %v2071 = vadd.f32 %v1815, %v2039
      %v2072 = vadd.f32 %v1816, %v2040
      %v2073 = vadd.f32 %v1817, %v2041
      %v2074 = vadd.f32 %v1818, %v2042
      %v2075 = vadd.f32 %v1819, %v2043
      %v2076 = vadd.f32 %v1820, %v2044
      %v2077 = vadd.f32 %v1821, %v2045
      %v2078 = vadd.f32 %v1822, %v2046
      %v2079 = vadd.f32 %v1823, %v2047
      %v2080 = vadd.f32 %v1824, %v2048
      %v2081 = vadd.f32 %v1825, %v2049
      %v2082 = vadd.f32 %v1826, %v2050
      %v2083 = vadd.f32 %v1827, %v2051
      %v2084 = vadd.f32 %v1828, %v2052
      %v2085 = vadd.f32 %v1829, %v2053
      %v2086 = vadd.f32 %v1830, %v2054
      %s2087 = scalar_lea.vmem %s3, 32
      %v2088 = vld [vmem:[%s2087] sm:$0xff]
      %v2089 = vld [vmem:[%s2087 + $0x8] sm:$0xff]
      %v2090 = vld [vmem:[%s2087 + $0x10] sm:$0xff]
      %v2091 = vld [vmem:[%s2087 + $0x18] sm:$0xff]
      %s2092 = scalar_lea.vmem %s4, 1
      %v2093 = vld [vmem:[%s2092] sm:$0x1]
      %v2095 = vperm.slane %v2093, 0
      %v2098 = vsel %vm1340, %v2055, 0
      %v2101 = vsel %vm1340, %v2056, 0
      %v2104 = vsel %vm1340, %v2057, 0
      %v2107 = vsel %vm1340, %v2058, 0
      %v2110 = vsel %vm1340, %v2059, 0
      %v2113 = vsel %vm1340, %v2060, 0
      %v2116 = vsel %vm1340, %v2061, 0
      %v2119 = vsel %vm1340, %v2062, 0
      %v2122 = vsel %vm1340, %v2063, 0
      %v2125 = vsel %vm1340, %v2064, 0
      %v2128 = vsel %vm1340, %v2065, 0
      %v2131 = vsel %vm1340, %v2066, 0
      %v2134 = vsel %vm1340, %v2067, 0
      %v2137 = vsel %vm1340, %v2068, 0
      %v2140 = vsel %vm1340, %v2069, 0
      %v2143 = vsel %vm1340, %v2070, 0
      %v2146 = vsel %vm1340, %v2071, 0
      %v2149 = vsel %vm1340, %v2072, 0
      %v2152 = vsel %vm1340, %v2073, 0
      %v2155 = vsel %vm1340, %v2074, 0
      %v2158 = vsel %vm1340, %v2075, 0
      %v2161 = vsel %vm1340, %v2076, 0
      %v2164 = vsel %vm1340, %v2077, 0
      %v2167 = vsel %vm1340, %v2078, 0
      %v2170 = vsel %vm1340, %v2079, 0
      %v2173 = vsel %vm1340, %v2080, 0
      %v2176 = vsel %vm1340, %v2081, 0
      %v2179 = vsel %vm1340, %v2082, 0
      %v2182 = vsel %vm1340, %v2083, 0
      %v2185 = vsel %vm1340, %v2084, 0
      %v2188 = vsel %vm1340, %v2085, 0
      %v2191 = vsel %vm1340, %v2086, 0
      %2193 = vmatpush.msra.mxu0 0.0
      %2194 = vmatpush.msra.mxu0 0.0
      %2195 = vmatpush.msra.mxu0 0.0
      %2196 = vmatpush.msra.mxu0 0.0
      %2197 = vmatpush.msra.mxu0 0.0
      %2198 = vmatpush.msra.mxu0 0.0
      %2199 = vmatpush.msra.mxu0 0.0
      %2200 = vmatpush.msra.mxu0 0.0
      %2201 = vmatpush.msra.mxu0 0.0
      %2202 = vmatpush.msra.mxu0 0.0
      %2203 = vmatpush.msra.mxu0 0.0
      %2204 = vmatpush.msra.mxu0 0.0
      %2205 = vmatpush.msra.mxu0 %v2091
      %2206 = vmatpush.msra.mxu0 %v2090
      %2207 = vmatpush.msra.mxu0 %v2089
      %2208 = vmatpush.msra.mxu0 %v2088
      %2209 = vmatmul.f32.gmra.mxu0 %v2098
      %v2210 = vpop.f32.mrf.mxu0
      %v2211 = vadd.f32 %v2095, %v2210
      %2212 = vmatmul.f32.gmra.mxu0 %v2101
      %v2213 = vpop.f32.mrf.mxu0
      %v2214 = vadd.f32 %v2095, %v2213
      %2215 = vmatmul.f32.gmra.mxu0 %v2104
      %v2216 = vpop.f32.mrf.mxu0
      %v2217 = vadd.f32 %v2095, %v2216
      %2218 = vmatmul.f32.gmra.mxu0 %v2107
      %v2219 = vpop.f32.mrf.mxu0
      %v2220 = vadd.f32 %v2095, %v2219
      %2221 = vmatmul.f32.gmra.mxu0 %v2110
      %v2222 = vpop.f32.mrf.mxu0
      %v2223 = vadd.f32 %v2095, %v2222
      %2224 = vmatmul.f32.gmra.mxu0 %v2113
      %v2225 = vpop.f32.mrf.mxu0
      %v2226 = vadd.f32 %v2095, %v2225
      %2227 = vmatmul.f32.gmra.mxu0 %v2116
      %v2228 = vpop.f32.mrf.mxu0
      %v2229 = vadd.f32 %v2095, %v2228
      %2230 = vmatmul.f32.gmra.mxu0 %v2119
      %v2231 = vpop.f32.mrf.mxu0
      %v2232 = vadd.f32 %v2095, %v2231
      %2233 = vmatmul.f32.gmra.mxu0 %v2122
      %v2234 = vpop.f32.mrf.mxu0
      %v2235 = vadd.f32 %v2095, %v2234
      %2236 = vmatmul.f32.gmra.mxu0 %v2125
      %v2237 = vpop.f32.mrf.mxu0
      %v2238 = vadd.f32 %v2095, %v2237
      %2239 = vmatmul.f32.gmra.mxu0 %v2128
      %v2240 = vpop.f32.mrf.mxu0
      %v2241 = vadd.f32 %v2095, %v2240
      %2242 = vmatmul.f32.gmra.mxu0 %v2131
      %v2243 = vpop.f32.mrf.mxu0
      %v2244 = vadd.f32 %v2095, %v2243
      %2245 = vmatmul.f32.gmra.mxu0 %v2134
      %v2246 = vpop.f32.mrf.mxu0
      %v2247 = vadd.f32 %v2095, %v2246
      %2248 = vmatmul.f32.gmra.mxu0 %v2137
      %v2249 = vpop.f32.mrf.mxu0
      %v2250 = vadd.f32 %v2095, %v2249
      %2251 = vmatmul.f32.gmra.mxu0 %v2140
      %v2252 = vpop.f32.mrf.mxu0
      %v2253 = vadd.f32 %v2095, %v2252
      %2254 = vmatmul.f32.gmra.mxu0 %v2143
      %v2255 = vpop.f32.mrf.mxu0
      %v2256 = vadd.f32 %v2095, %v2255
      %2257 = vmatmul.f32.gmra.mxu0 %v2146
      %v2258 = vpop.f32.mrf.mxu0
      %v2259 = vadd.f32 %v2095, %v2258
      %2260 = vmatmul.f32.gmra.mxu0 %v2149
      %v2261 = vpop.f32.mrf.mxu0
      %v2262 = vadd.f32 %v2095, %v2261
      %2263 = vmatmul.f32.gmra.mxu0 %v2152
      %v2264 = vpop.f32.mrf.mxu0
      %v2265 = vadd.f32 %v2095, %v2264
      %2266 = vmatmul.f32.gmra.mxu0 %v2155
      %v2267 = vpop.f32.mrf.mxu0
      %v2268 = vadd.f32 %v2095, %v2267
      %2269 = vmatmul.f32.gmra.mxu0 %v2158
      %v2270 = vpop.f32.mrf.mxu0
      %v2271 = vadd.f32 %v2095, %v2270
      %2272 = vmatmul.f32.gmra.mxu0 %v2161
      %v2273 = vpop.f32.mrf.mxu0
      %v2274 = vadd.f32 %v2095, %v2273
      %2275 = vmatmul.f32.gmra.mxu0 %v2164
      %v2276 = vpop.f32.mrf.mxu0
      %v2277 = vadd.f32 %v2095, %v2276
      %2278 = vmatmul.f32.gmra.mxu0 %v2167
      %v2279 = vpop.f32.mrf.mxu0
      %v2280 = vadd.f32 %v2095, %v2279
      %2281 = vmatmul.f32.gmra.mxu0 %v2170
      %v2282 = vpop.f32.mrf.mxu0
      %v2283 = vadd.f32 %v2095, %v2282
      %2284 = vmatmul.f32.gmra.mxu0 %v2173
      %v2285 = vpop.f32.mrf.mxu0
      %v2286 = vadd.f32 %v2095, %v2285
      %2287 = vmatmul.f32.gmra.mxu0 %v2176
      %v2288 = vpop.f32.mrf.mxu0
      %v2289 = vadd.f32 %v2095, %v2288
      %2290 = vmatmul.f32.gmra.mxu0 %v2179
      %v2291 = vpop.f32.mrf.mxu0
      %v2292 = vadd.f32 %v2095, %v2291
      %2293 = vmatmul.f32.gmra.mxu0 %v2182
      %v2294 = vpop.f32.mrf.mxu0
      %v2295 = vadd.f32 %v2095, %v2294
      %2296 = vmatmul.f32.gmra.mxu0 %v2185
      %v2297 = vpop.f32.mrf.mxu0
      %v2298 = vadd.f32 %v2095, %v2297
      %2299 = vmatmul.f32.gmra.mxu0 %v2188
      %v2300 = vpop.f32.mrf.mxu0
      %v2301 = vadd.f32 %v2095, %v2300
      %2302 = vmatmul.f32.gmra.mxu0 %v2191
      %v2303 = vpop.f32.mrf.mxu0
      %v2304 = vadd.f32 %v2095, %v2303
      %2305 = vdwg.mxu0
      %v2306 = vmax.f32 %v2211, 0.0
      %v2307 = vmax.f32 %v2214, 0.0
      %v2308 = vmax.f32 %v2217, 0.0
      %v2309 = vmax.f32 %v2220, 0.0
      %v2310 = vmax.f32 %v2223, 0.0
      %v2311 = vmax.f32 %v2226, 0.0
      %v2312 = vmax.f32 %v2229, 0.0
      %v2313 = vmax.f32 %v2232, 0.0
      %v2314 = vmax.f32 %v2235, 0.0
      %v2315 = vmax.f32 %v2238, 0.0
      %v2316 = vmax.f32 %v2241, 0.0
      %v2317 = vmax.f32 %v2244, 0.0
      %v2318 = vmax.f32 %v2247, 0.0
      %v2319 = vmax.f32 %v2250, 0.0
      %v2320 = vmax.f32 %v2253, 0.0
      %v2321 = vmax.f32 %v2256, 0.0
      %v2322 = vmax.f32 %v2259, 0.0
      %v2323 = vmax.f32 %v2262, 0.0
      %v2324 = vmax.f32 %v2265, 0.0
      %v2325 = vmax.f32 %v2268, 0.0
      %v2326 = vmax.f32 %v2271, 0.0
      %v2327 = vmax.f32 %v2274, 0.0
      %v2328 = vmax.f32 %v2277, 0.0
      %v2329 = vmax.f32 %v2280, 0.0
      %v2330 = vmax.f32 %v2283, 0.0
      %v2331 = vmax.f32 %v2286, 0.0
      %v2332 = vmax.f32 %v2289, 0.0
      %v2333 = vmax.f32 %v2292, 0.0
      %v2334 = vmax.f32 %v2295, 0.0
      %v2335 = vmax.f32 %v2298, 0.0
      %v2336 = vmax.f32 %v2301, 0.0
      %v2337 = vmax.f32 %v2304, 0.0
      %s2338 = scalar_lea.vmem %s5, 32
      %v2339 = vld [vmem:[%s2338] sm:$0xff]
      %v2340 = vld [vmem:[%s2338 + $0x8] sm:$0xff]
      %v2341 = vld [vmem:[%s2338 + $0x10] sm:$0xff]
      %v2342 = vld [vmem:[%s2338 + $0x18] sm:$0xff]
      %s2343 = scalar_lea.vmem %s6, 1
      %v2344 = vld [vmem:[%s2343] sm:$0x1]
      %v2346 = vperm.slane %v2344, 0
      %v2349 = vsel %vm1340, %v2306, 0
      %v2352 = vsel %vm1340, %v2307, 0
      %v2355 = vsel %vm1340, %v2308, 0
      %v2358 = vsel %vm1340, %v2309, 0
      %v2361 = vsel %vm1340, %v2310, 0
      %v2364 = vsel %vm1340, %v2311, 0
      %v2367 = vsel %vm1340, %v2312, 0
      %v2370 = vsel %vm1340, %v2313, 0
      %v2373 = vsel %vm1340, %v2314, 0
      %v2376 = vsel %vm1340, %v2315, 0
      %v2379 = vsel %vm1340, %v2316, 0
      %v2382 = vsel %vm1340, %v2317, 0
      %v2385 = vsel %vm1340, %v2318, 0
      %v2388 = vsel %vm1340, %v2319, 0
      %v2391 = vsel %vm1340, %v2320, 0
      %v2394 = vsel %vm1340, %v2321, 0
      %v2397 = vsel %vm1340, %v2322, 0
      %v2400 = vsel %vm1340, %v2323, 0
      %v2403 = vsel %vm1340, %v2324, 0
      %v2406 = vsel %vm1340, %v2325, 0
      %v2409 = vsel %vm1340, %v2326, 0
      %v2412 = vsel %vm1340, %v2327, 0
      %v2415 = vsel %vm1340, %v2328, 0
      %v2418 = vsel %vm1340, %v2329, 0
      %v2421 = vsel %vm1340, %v2330, 0
      %v2424 = vsel %vm1340, %v2331, 0
      %v2427 = vsel %vm1340, %v2332, 0
      %v2430 = vsel %vm1340, %v2333, 0
      %v2433 = vsel %vm1340, %v2334, 0
      %v2436 = vsel %vm1340, %v2335, 0
      %v2439 = vsel %vm1340, %v2336, 0
      %v2442 = vsel %vm1340, %v2337, 0
      %2444 = vmatpush.msra.mxu0 0.0
      %2445 = vmatpush.msra.mxu0 0.0
      %2446 = vmatpush.msra.mxu0 0.0
      %2447 = vmatpush.msra.mxu0 0.0
      %2448 = vmatpush.msra.mxu0 0.0
      %2449 = vmatpush.msra.mxu0 0.0
      %2450 = vmatpush.msra.mxu0 0.0
      %2451 = vmatpush.msra.mxu0 0.0
      %2452 = vmatpush.msra.mxu0 0.0
      %2453 = vmatpush.msra.mxu0 0.0
      %2454 = vmatpush.msra.mxu0 0.0
      %2455 = vmatpush.msra.mxu0 0.0
      %2456 = vmatpush.msra.mxu0 %v2342
      %2457 = vmatpush.msra.mxu0 %v2341
      %2458 = vmatpush.msra.mxu0 %v2340
      %2459 = vmatpush.msra.mxu0 %v2339
      %2460 = vmatmul.f32.gmra.mxu0 %v2349
      %v2461 = vpop.f32.mrf.mxu0
      %v2462 = vadd.f32 %v2346, %v2461
      %2463 = vmatmul.f32.gmra.mxu0 %v2352
      %v2464 = vpop.f32.mrf.mxu0
      %v2465 = vadd.f32 %v2346, %v2464
      %2466 = vmatmul.f32.gmra.mxu0 %v2355
      %v2467 = vpop.f32.mrf.mxu0
      %v2468 = vadd.f32 %v2346, %v2467
      %2469 = vmatmul.f32.gmra.mxu0 %v2358
      %v2470 = vpop.f32.mrf.mxu0
      %v2471 = vadd.f32 %v2346, %v2470
      %2472 = vmatmul.f32.gmra.mxu0 %v2361
      %v2473 = vpop.f32.mrf.mxu0
      %v2474 = vadd.f32 %v2346, %v2473
      %2475 = vmatmul.f32.gmra.mxu0 %v2364
      %v2476 = vpop.f32.mrf.mxu0
      %v2477 = vadd.f32 %v2346, %v2476
      %2478 = vmatmul.f32.gmra.mxu0 %v2367
      %v2479 = vpop.f32.mrf.mxu0
      %v2480 = vadd.f32 %v2346, %v2479
      %2481 = vmatmul.f32.gmra.mxu0 %v2370
      %v2482 = vpop.f32.mrf.mxu0
      %v2483 = vadd.f32 %v2346, %v2482
      %2484 = vmatmul.f32.gmra.mxu0 %v2373
      %v2485 = vpop.f32.mrf.mxu0
      %v2486 = vadd.f32 %v2346, %v2485
      %2487 = vmatmul.f32.gmra.mxu0 %v2376
      %v2488 = vpop.f32.mrf.mxu0
      %v2489 = vadd.f32 %v2346, %v2488
      %2490 = vmatmul.f32.gmra.mxu0 %v2379
      %v2491 = vpop.f32.mrf.mxu0
      %v2492 = vadd.f32 %v2346, %v2491
      %2493 = vmatmul.f32.gmra.mxu0 %v2382
      %v2494 = vpop.f32.mrf.mxu0
      %v2495 = vadd.f32 %v2346, %v2494
      %2496 = vmatmul.f32.gmra.mxu0 %v2385
      %v2497 = vpop.f32.mrf.mxu0
      %v2498 = vadd.f32 %v2346, %v2497
      %2499 = vmatmul.f32.gmra.mxu0 %v2388
      %v2500 = vpop.f32.mrf.mxu0
      %v2501 = vadd.f32 %v2346, %v2500
      %2502 = vmatmul.f32.gmra.mxu0 %v2391
      %v2503 = vpop.f32.mrf.mxu0
      %v2504 = vadd.f32 %v2346, %v2503
      %2505 = vmatmul.f32.gmra.mxu0 %v2394
      %v2506 = vpop.f32.mrf.mxu0
      %v2507 = vadd.f32 %v2346, %v2506
      %2508 = vmatmul.f32.gmra.mxu0 %v2397
      %v2509 = vpop.f32.mrf.mxu0
      %v2510 = vadd.f32 %v2346, %v2509
      %2511 = vmatmul.f32.gmra.mxu0 %v2400
      %v2512 = vpop.f32.mrf.mxu0
      %v2513 = vadd.f32 %v2346, %v2512
      %2514 = vmatmul.f32.gmra.mxu0 %v2403
      %v2515 = vpop.f32.mrf.mxu0
      %v2516 = vadd.f32 %v2346, %v2515
      %2517 = vmatmul.f32.gmra.mxu0 %v2406
      %v2518 = vpop.f32.mrf.mxu0
      %v2519 = vadd.f32 %v2346, %v2518
      %2520 = vmatmul.f32.gmra.mxu0 %v2409
      %v2521 = vpop.f32.mrf.mxu0
      %v2522 = vadd.f32 %v2346, %v2521
      %2523 = vmatmul.f32.gmra.mxu0 %v2412
      %v2524 = vpop.f32.mrf.mxu0
      %v2525 = vadd.f32 %v2346, %v2524
      %2526 = vmatmul.f32.gmra.mxu0 %v2415
      %v2527 = vpop.f32.mrf.mxu0
      %v2528 = vadd.f32 %v2346, %v2527
      %2529 = vmatmul.f32.gmra.mxu0 %v2418
      %v2530 = vpop.f32.mrf.mxu0
      %v2531 = vadd.f32 %v2346, %v2530
      %2532 = vmatmul.f32.gmra.mxu0 %v2421
      %v2533 = vpop.f32.mrf.mxu0
      %v2534 = vadd.f32 %v2346, %v2533
      %2535 = vmatmul.f32.gmra.mxu0 %v2424
      %v2536 = vpop.f32.mrf.mxu0
      %v2537 = vadd.f32 %v2346, %v2536
      %2538 = vmatmul.f32.gmra.mxu0 %v2427
      %v2539 = vpop.f32.mrf.mxu0
      %v2540 = vadd.f32 %v2346, %v2539
      %2541 = vmatmul.f32.gmra.mxu0 %v2430
      %v2542 = vpop.f32.mrf.mxu0
      %v2543 = vadd.f32 %v2346, %v2542
      %2544 = vmatmul.f32.gmra.mxu0 %v2433
      %v2545 = vpop.f32.mrf.mxu0
      %v2546 = vadd.f32 %v2346, %v2545
      %2547 = vmatmul.f32.gmra.mxu0 %v2436
      %v2548 = vpop.f32.mrf.mxu0
      %v2549 = vadd.f32 %v2346, %v2548
      %2550 = vmatmul.f32.gmra.mxu0 %v2439
      %v2551 = vpop.f32.mrf.mxu0
      %v2552 = vadd.f32 %v2346, %v2551
      %2553 = vmatmul.f32.gmra.mxu0 %v2442
      %v2554 = vpop.f32.mrf.mxu0
      %v2555 = vadd.f32 %v2346, %v2554
      %2556 = vdwg.mxu0
      %v2557 = vsel %vm978, %v2462, 0.0
      %v2558 = vsel %vm979, %v2465, 0.0
      %v2559 = vsel %vm980, %v2468, 0.0
      %v2560 = vsel %vm981, %v2471, 0.0
      %v2561 = vsel %vm982, %v2474, 0.0
      %v2562 = vsel %vm983, %v2477, 0.0
      %v2563 = vsel %vm984, %v2480, 0.0
      %v2564 = vsel %vm985, %v2483, 0.0
      %v2565 = vsel %vm986, %v2486, 0.0
      %v2566 = vsel %vm987, %v2489, 0.0
      %v2567 = vsel %vm988, %v2492, 0.0
      %v2568 = vsel %vm989, %v2495, 0.0
      %v2569 = vsel %vm990, %v2498, 0.0
      %v2570 = vsel %vm991, %v2501, 0.0
      %v2571 = vsel %vm992, %v2504, 0.0
      %v2572 = vsel %vm993, %v2507, 0.0
      %v2573 = vsel %vm994, %v2510, 0.0
      %v2574 = vsel %vm995, %v2513, 0.0
      %v2575 = vsel %vm996, %v2516, 0.0
      %v2576 = vsel %vm997, %v2519, 0.0
      %v2577 = vsel %vm998, %v2522, 0.0
      %v2578 = vsel %vm999, %v2525, 0.0
      %v2579 = vsel %vm1000, %v2528, 0.0
      %v2580 = vsel %vm1001, %v2531, 0.0
      %v2581 = vsel %vm1002, %v2534, 0.0
      %v2582 = vsel %vm1003, %v2537, 0.0
      %v2583 = vsel %vm1004, %v2540, 0.0
      %v2584 = vsel %vm1005, %v2543, 0.0
      %v2585 = vsel %vm1006, %v2546, 0.0
      %v2586 = vsel %vm1007, %v2549, 0.0
      %v2587 = vsel %vm1008, %v2552, 0.0
      %v2588 = vsel %vm1009, %v2555, 0.0
      %v2589 = vsel %vm1340, %v2557, 0.0
      %v2590 = vrot.slane %v2589, 4
      %v2591 = vadd.f32 %v2589, %v2590
      %v2592 = vrot.slane %v2591, 2
      %v2593 = vadd.f32 %v2591, %v2592
      %v2594 = vrot.slane %v2593, 1
      %v2595 = vadd.f32 %v2593, %v2594
      %v2596 = vsel %vm1340, %v2558, 0.0
      %v2597 = vrot.slane %v2596, 4
      %v2598 = vadd.f32 %v2596, %v2597
      %v2599 = vrot.slane %v2598, 2
      %v2600 = vadd.f32 %v2598, %v2599
      %v2601 = vrot.slane %v2600, 1
      %v2602 = vadd.f32 %v2600, %v2601
      %v2603 = vsel %vm1340, %v2559, 0.0
      %v2604 = vrot.slane %v2603, 4
      %v2605 = vadd.f32 %v2603, %v2604
      %v2606 = vrot.slane %v2605, 2
      %v2607 = vadd.f32 %v2605, %v2606
      %v2608 = vrot.slane %v2607, 1
      %v2609 = vadd.f32 %v2607, %v2608
      %v2610 = vsel %vm1340, %v2560, 0.0
      %v2611 = vrot.slane %v2610, 4
      %v2612 = vadd.f32 %v2610, %v2611
      %v2613 = vrot.slane %v2612, 2
      %v2614 = vadd.f32 %v2612, %v2613
      %v2615 = vrot.slane %v2614, 1
      %v2616 = vadd.f32 %v2614, %v2615
      %v2617 = vsel %vm1340, %v2561, 0.0
      %v2618 = vrot.slane %v2617, 4
      %v2619 = vadd.f32 %v2617, %v2618
      %v2620 = vrot.slane %v2619, 2
      %v2621 = vadd.f32 %v2619, %v2620
      %v2622 = vrot.slane %v2621, 1
      %v2623 = vadd.f32 %v2621, %v2622
      %v2624 = vsel %vm1340, %v2562, 0.0
      %v2625 = vrot.slane %v2624, 4
      %v2626 = vadd.f32 %v2624, %v2625
      %v2627 = vrot.slane %v2626, 2
      %v2628 = vadd.f32 %v2626, %v2627
      %v2629 = vrot.slane %v2628, 1
      %v2630 = vadd.f32 %v2628, %v2629
      %v2631 = vsel %vm1340, %v2563, 0.0
      %v2632 = vrot.slane %v2631, 4
      %v2633 = vadd.f32 %v2631, %v2632
      %v2634 = vrot.slane %v2633, 2
      %v2635 = vadd.f32 %v2633, %v2634
      %v2636 = vrot.slane %v2635, 1
      %v2637 = vadd.f32 %v2635, %v2636
      %v2638 = vsel %vm1340, %v2564, 0.0
      %v2639 = vrot.slane %v2638, 4
      %v2640 = vadd.f32 %v2638, %v2639
      %v2641 = vrot.slane %v2640, 2
      %v2642 = vadd.f32 %v2640, %v2641
      %v2643 = vrot.slane %v2642, 1
      %v2644 = vadd.f32 %v2642, %v2643
      %v2645 = vsel %vm1340, %v2565, 0.0
      %v2646 = vrot.slane %v2645, 4
      %v2647 = vadd.f32 %v2645, %v2646
      %v2648 = vrot.slane %v2647, 2
      %v2649 = vadd.f32 %v2647, %v2648
      %v2650 = vrot.slane %v2649, 1
      %v2651 = vadd.f32 %v2649, %v2650
      %v2652 = vsel %vm1340, %v2566, 0.0
      %v2653 = vrot.slane %v2652, 4
      %v2654 = vadd.f32 %v2652, %v2653
      %v2655 = vrot.slane %v2654, 2
      %v2656 = vadd.f32 %v2654, %v2655
      %v2657 = vrot.slane %v2656, 1
      %v2658 = vadd.f32 %v2656, %v2657
      %v2659 = vsel %vm1340, %v2567, 0.0
      %v2660 = vrot.slane %v2659, 4
      %v2661 = vadd.f32 %v2659, %v2660
      %v2662 = vrot.slane %v2661, 2
      %v2663 = vadd.f32 %v2661, %v2662
      %v2664 = vrot.slane %v2663, 1
      %v2665 = vadd.f32 %v2663, %v2664
      %v2666 = vsel %vm1340, %v2568, 0.0
      %v2667 = vrot.slane %v2666, 4
      %v2668 = vadd.f32 %v2666, %v2667
      %v2669 = vrot.slane %v2668, 2
      %v2670 = vadd.f32 %v2668, %v2669
      %v2671 = vrot.slane %v2670, 1
      %v2672 = vadd.f32 %v2670, %v2671
      %v2673 = vsel %vm1340, %v2569, 0.0
      %v2674 = vrot.slane %v2673, 4
      %v2675 = vadd.f32 %v2673, %v2674
      %v2676 = vrot.slane %v2675, 2
      %v2677 = vadd.f32 %v2675, %v2676
      %v2678 = vrot.slane %v2677, 1
      %v2679 = vadd.f32 %v2677, %v2678
      %v2680 = vsel %vm1340, %v2570, 0.0
      %v2681 = vrot.slane %v2680, 4
      %v2682 = vadd.f32 %v2680, %v2681
      %v2683 = vrot.slane %v2682, 2
      %v2684 = vadd.f32 %v2682, %v2683
      %v2685 = vrot.slane %v2684, 1
      %v2686 = vadd.f32 %v2684, %v2685
      %v2687 = vsel %vm1340, %v2571, 0.0
      %v2688 = vrot.slane %v2687, 4
      %v2689 = vadd.f32 %v2687, %v2688
      %v2690 = vrot.slane %v2689, 2
      %v2691 = vadd.f32 %v2689, %v2690
      %v2692 = vrot.slane %v2691, 1
      %v2693 = vadd.f32 %v2691, %v2692
      %v2694 = vsel %vm1340, %v2572, 0.0
      %v2695 = vrot.slane %v2694, 4
      %v2696 = vadd.f32 %v2694, %v2695
      %v2697 = vrot.slane %v2696, 2
      %v2698 = vadd.f32 %v2696, %v2697
      %v2699 = vrot.slane %v2698, 1
      %v2700 = vadd.f32 %v2698, %v2699
      %v2701 = vsel %vm1340, %v2573, 0.0
      %v2702 = vrot.slane %v2701, 4
      %v2703 = vadd.f32 %v2701, %v2702
      %v2704 = vrot.slane %v2703, 2
      %v2705 = vadd.f32 %v2703, %v2704
      %v2706 = vrot.slane %v2705, 1
      %v2707 = vadd.f32 %v2705, %v2706
      %v2708 = vsel %vm1340, %v2574, 0.0
      %v2709 = vrot.slane %v2708, 4
      %v2710 = vadd.f32 %v2708, %v2709
      %v2711 = vrot.slane %v2710, 2
      %v2712 = vadd.f32 %v2710, %v2711
      %v2713 = vrot.slane %v2712, 1
      %v2714 = vadd.f32 %v2712, %v2713
      %v2715 = vsel %vm1340, %v2575, 0.0
      %v2716 = vrot.slane %v2715, 4
      %v2717 = vadd.f32 %v2715, %v2716
      %v2718 = vrot.slane %v2717, 2
      %v2719 = vadd.f32 %v2717, %v2718
      %v2720 = vrot.slane %v2719, 1
      %v2721 = vadd.f32 %v2719, %v2720
      %v2722 = vsel %vm1340, %v2576, 0.0
      %v2723 = vrot.slane %v2722, 4
      %v2724 = vadd.f32 %v2722, %v2723
      %v2725 = vrot.slane %v2724, 2
      %v2726 = vadd.f32 %v2724, %v2725
      %v2727 = vrot.slane %v2726, 1
      %v2728 = vadd.f32 %v2726, %v2727
      %v2729 = vsel %vm1340, %v2577, 0.0
      %v2730 = vrot.slane %v2729, 4
      %v2731 = vadd.f32 %v2729, %v2730
      %v2732 = vrot.slane %v2731, 2
      %v2733 = vadd.f32 %v2731, %v2732
      %v2734 = vrot.slane %v2733, 1
      %v2735 = vadd.f32 %v2733, %v2734
      %v2736 = vsel %vm1340, %v2578, 0.0
      %v2737 = vrot.slane %v2736, 4
      %v2738 = vadd.f32 %v2736, %v2737
      %v2739 = vrot.slane %v2738, 2
      %v2740 = vadd.f32 %v2738, %v2739
      %v2741 = vrot.slane %v2740, 1
      %v2742 = vadd.f32 %v2740, %v2741
      %v2743 = vsel %vm1340, %v2579, 0.0
      %v2744 = vrot.slane %v2743, 4
      %v2745 = vadd.f32 %v2743, %v2744
      %v2746 = vrot.slane %v2745, 2
      %v2747 = vadd.f32 %v2745, %v2746
      %v2748 = vrot.slane %v2747, 1
      %v2749 = vadd.f32 %v2747, %v2748
      %v2750 = vsel %vm1340, %v2580, 0.0
      %v2751 = vrot.slane %v2750, 4
      %v2752 = vadd.f32 %v2750, %v2751
      %v2753 = vrot.slane %v2752, 2
      %v2754 = vadd.f32 %v2752, %v2753
      %v2755 = vrot.slane %v2754, 1
      %v2756 = vadd.f32 %v2754, %v2755
      %v2757 = vsel %vm1340, %v2581, 0.0
      %v2758 = vrot.slane %v2757, 4
      %v2759 = vadd.f32 %v2757, %v2758
      %v2760 = vrot.slane %v2759, 2
      %v2761 = vadd.f32 %v2759, %v2760
      %v2762 = vrot.slane %v2761, 1
      %v2763 = vadd.f32 %v2761, %v2762
      %v2764 = vsel %vm1340, %v2582, 0.0
      %v2765 = vrot.slane %v2764, 4
      %v2766 = vadd.f32 %v2764, %v2765
      %v2767 = vrot.slane %v2766, 2
      %v2768 = vadd.f32 %v2766, %v2767
      %v2769 = vrot.slane %v2768, 1
      %v2770 = vadd.f32 %v2768, %v2769
      %v2771 = vsel %vm1340, %v2583, 0.0
      %v2772 = vrot.slane %v2771, 4
      %v2773 = vadd.f32 %v2771, %v2772
      %v2774 = vrot.slane %v2773, 2
      %v2775 = vadd.f32 %v2773, %v2774
      %v2776 = vrot.slane %v2775, 1
      %v2777 = vadd.f32 %v2775, %v2776
      %v2778 = vsel %vm1340, %v2584, 0.0
      %v2779 = vrot.slane %v2778, 4
      %v2780 = vadd.f32 %v2778, %v2779
      %v2781 = vrot.slane %v2780, 2
      %v2782 = vadd.f32 %v2780, %v2781
      %v2783 = vrot.slane %v2782, 1
      %v2784 = vadd.f32 %v2782, %v2783
      %v2785 = vsel %vm1340, %v2585, 0.0
      %v2786 = vrot.slane %v2785, 4
      %v2787 = vadd.f32 %v2785, %v2786
      %v2788 = vrot.slane %v2787, 2
      %v2789 = vadd.f32 %v2787, %v2788
      %v2790 = vrot.slane %v2789, 1
      %v2791 = vadd.f32 %v2789, %v2790
      %v2792 = vsel %vm1340, %v2586, 0.0
      %v2793 = vrot.slane %v2792, 4
      %v2794 = vadd.f32 %v2792, %v2793
      %v2795 = vrot.slane %v2794, 2
      %v2796 = vadd.f32 %v2794, %v2795
      %v2797 = vrot.slane %v2796, 1
      %v2798 = vadd.f32 %v2796, %v2797
      %v2799 = vsel %vm1340, %v2587, 0.0
      %v2800 = vrot.slane %v2799, 4
      %v2801 = vadd.f32 %v2799, %v2800
      %v2802 = vrot.slane %v2801, 2
      %v2803 = vadd.f32 %v2801, %v2802
      %v2804 = vrot.slane %v2803, 1
      %v2805 = vadd.f32 %v2803, %v2804
      %v2806 = vsel %vm1340, %v2588, 0.0
      %v2807 = vrot.slane %v2806, 4
      %v2808 = vadd.f32 %v2806, %v2807
      %v2809 = vrot.slane %v2808, 2
      %v2810 = vadd.f32 %v2808, %v2809
      %v2811 = vrot.slane %v2810, 1
      %v2812 = vadd.f32 %v2810, %v2811
      %vm2845 = vcmask 1041409
      %v2846 = vsel %vm2845, %v2602, %v2595
      %vm2847 = vcmask 1042434
      %v2848 = vsel %vm2847, %v2609, %v2846
      %vm2849 = vcmask 1043459
      %v2850 = vsel %vm2849, %v2616, %v2848
      %vm2851 = vcmask 1044484
      %v2852 = vsel %vm2851, %v2623, %v2850
      %vm2853 = vcmask 1045509
      %v2854 = vsel %vm2853, %v2630, %v2852
      %vm2855 = vcmask 1046534
      %v2856 = vsel %vm2855, %v2637, %v2854
      %vm2857 = vcmask 1047559
      %v2858 = vsel %vm2857, %v2644, %v2856
      %v2859 = vsel %vm2845, %v2658, %v2651
      %v2860 = vsel %vm2847, %v2665, %v2859
      %v2861 = vsel %vm2849, %v2672, %v2860
      %v2862 = vsel %vm2851, %v2679, %v2861
      %v2863 = vsel %vm2853, %v2686, %v2862
      %v2864 = vsel %vm2855, %v2693, %v2863
      %v2865 = vsel %vm2857, %v2700, %v2864
      %v2866 = vsel %vm2845, %v2714, %v2707
      %v2867 = vsel %vm2847, %v2721, %v2866
      %v2868 = vsel %vm2849, %v2728, %v2867
      %v2869 = vsel %vm2851, %v2735, %v2868
      %v2870 = vsel %vm2853, %v2742, %v2869
      %v2871 = vsel %vm2855, %v2749, %v2870
      %v2872 = vsel %vm2857, %v2756, %v2871
      %v2873 = vsel %vm2845, %v2770, %v2763
      %v2874 = vsel %vm2847, %v2777, %v2873
      %v2875 = vsel %vm2849, %v2784, %v2874
      %v2876 = vsel %vm2851, %v2791, %v2875
      %v2877 = vsel %vm2853, %v2798, %v2876
      %v2878 = vsel %vm2855, %v2805, %v2877
      %v2879 = vsel %vm2857, %v2812, %v2878
      %2884 = vst.msk [vmem:[%s280] sm:$0xff] %vm1340, %v2858
      %2885 = vst.msk [vmem:[%s280 + $0x8] sm:$0xff] %vm1340, %v2865
      %2886 = vst.msk [vmem:[%s280 + $0x10] sm:$0xff] %vm1340, %v2872
      %2887 = vst.msk [vmem:[%s280 + $0x18] sm:$0xff] %vm1340, %v2879
      %s2888 = smul.u32 4, %s18
      %p2889 = scmp.lt.s32.totalorder %s2888, 15
      %s2890 = scalar_select %p2889, %s2888, 15
      %s2891 = smul.addr %s2890, 8
      %s2892 = scalar_lea.vmem %s7, %s2891
      // Predicated region
      $region49: #{tpu_custom_call.1} parent=47 // pred_check
        %p2893 = pneg %p188
      $region50: #{tpu_custom_call.1} parent=47 // pred_check_branch
        %2895 = sbr.rel (%p2893) target = $region52
      $region51: #{tpu_custom_call.1} parent=47 // pred_region
        %s2896 = smul.u32 4, %s18
      $region52: #{tpu_custom_call.1} parent=47 // pred_fallthru
        _
    $region48: #{tpu_custom_call.1} parent=5 // pred_fallthru
      _
    %p2897 = scmp.le.s32.totalorder 2, %s13
    // Predicated region
    $region53: #{tpu_custom_call.1} parent=5 // pred_check
      %p2898 = pneg %p2897
    $region54: #{tpu_custom_call.1} parent=5 // pred_check_branch
      %2900 = sbr.rel (%p2898) target = $region56
    $region55: #{tpu_custom_call.1} parent=5 // pred_region
      %s2901 = ssub.s32 %s13, 2
      // Predicated region
      $region57: #{tpu_custom_call.1} parent=55 // pred_check
        %p2902 = pneg %p194
      $region58: #{tpu_custom_call.1} parent=55 // pred_check_branch
        %2904 = sbr.rel (%p2902) target = $region60
      $region59: #{tpu_custom_call.1} parent=55 // pred_region
        %s2905 = smul.u32 4, %s19
        %p2906 = scmp.lt.s32.totalorder %s2905, 15
        %s2907 = scalar_select %p2906, %s2905, 15
        %s2908 = smul.addr %s2907, 8
        %s2909 = scalar_lea.vmem %s7, %s2908
      $region60: #{tpu_custom_call.1} parent=55 // pred_fallthru
        _
    $region56: #{tpu_custom_call.1} parent=5 // pred_fallthru
      _
  $region6: #{tpu_custom_call.1} parent=0 // loop_footer
    %s17 = sadd.s32 1, %s13
  $region7: #{tpu_custom_call.1} parent=0 // loop_footer_branch
    %12 = sbr.rel target = $region3
  $region8: #{tpu_custom_call.1} parent=0 // loop_exit
    _

// kernel: tpu_custom_call.1
$region0: #{tpu_custom_call.1}
  #allocation0 [shape = 'u32[]', space=smem, size = 0x4, offset = 0x4, fixed_abs, tag = 'smem constant byte address 0x4 - core index']
  #allocation1 [shape = 'u32[72,128]{1,0:T(1,128)}', space=vmem, size = 0x9000, scoped, tag = 'internal scratch']
  %s0 = inlined_call_operand.vmem [shape: f32[1024,4], index: 0, kind: input, shape index: {}]
  %s1 = inlined_call_operand.vmem [shape: f32[256,32], index: 1, kind: input, shape index: {}]
  %s2 = inlined_call_operand.vmem [shape: f32[4,32], index: 2, kind: input, shape index: {}]
  %s3 = inlined_call_operand.vmem [shape: f32[2,32,32], index: 3, kind: input, shape index: {}]
  %s4 = inlined_call_operand.vmem [shape: f32[2,1,32], index: 4, kind: input, shape index: {}]
  %s5 = inlined_call_operand.vmem [shape: f32[2,32,32], index: 5, kind: input, shape index: {}]
  %s6 = inlined_call_operand.vmem [shape: f32[2,1,32], index: 6, kind: input, shape index: {}]
  %s7 = inlined_call_operand.vmem [shape: f32[128,32], index: 7, kind: output, shape index: {}]
  %s8 = sld [smem:[#allocation0]]
  $region61: #{tpu_custom_call.1} parent=0
    _
  %s10 = ssub.s32 1, %s8
  %s11 = scalar_select 0, %s10, %s8
  loop: start=0, step=1, limit=6
  $region2: #{tpu_custom_call.1} parent=0 // loop_pre_header
    _
  $region3: #{tpu_custom_call.1} parent=0 // loop_header
    %s13 = sphi 0, %s17
    %p14 = scmp.ge.s32.totalorder %s13, 6
    %s23 = sphi 0, %s25
    %s26 = sphi 0, %s23
    %s27 = sphi 0, %s26
    %s43 = sphi 0, %s27
    %s47 = sphi 0, %s47
    %s49 = sphi 0, %s47
    %s50 = sphi 0, %s49
    %s64 = sphi 0, %s50
    %s68 = sphi 0, %s68
    %s70 = sphi 0, %s68
    %s71 = sphi 0, %s70
    %s85 = sphi 0, %s71
    %s89 = sphi 0, %s89
    %s91 = sphi 0, %s89
    %s92 = sphi 0, %s91
    %s106 = sphi 0, %s92
    %s110 = sphi 0, %s110
    %s112 = sphi 0, %s110
    %s113 = sphi 0, %s112
    %s127 = sphi 0, %s113
    %s131 = sphi 0, %s131
    %s133 = sphi 0, %s131
    %s134 = sphi 0, %s133
    %s148 = sphi 0, %s134
    %s152 = sphi 0, %s152
    %s154 = sphi 0, %s152
    %s155 = sphi 0, %s154
    %s169 = sphi 0, %s155
    %s175 = sphi 0, %s177
    %s178 = sphi 0, %s175
    %s179 = sphi 0, %s178
    %s195 = sphi 0, %s179
  $region4: #{tpu_custom_call.1} parent=0 // loop_header_branch
    %16 = sbr.rel (%p14) target = $region8
  $region5: #{tpu_custom_call.1} parent=0 // loop_body
    %s18 = ssub.s32 %s13, 1
    %s19 = ssub.s32 %s13, 2
    %s20 = sadd.s32 %s13, 1
    %s21 = ssub.s32 %s13, %s20
    %p22 = scmp.eq.s32.totalorder %s21, 0
    %s24 = sadd.s32 %s23, 1
    %s25 = scalar_select %p22, %s23, %s24
    %p28 = pneg %p22
    %p29 = scmp.eq.s32.totalorder %s13, 3
    %p30 = por %p28, %p29
    %p31 = scmp.ne.s32.totalorder %s23, %s26
    %p32 = scmp.eq.s32.totalorder %s13, 0
    %p33 = por %p31, %p32
    %p34 = scmp.ne.s32.totalorder %s23, %s26
    %p35 = scmp.eq.s32.totalorder %s18, 3
    %p36 = por %p34, %p35
    %p37 = scmp.ne.s32.totalorder %s26, %s27
    %p38 = scmp.eq.s32.totalorder %s18, 0
    %p39 = por %p37, %p38
    %p40 = scmp.ne.s32.totalorder %s26, %s27
    %p41 = scmp.eq.s32.totalorder %s19, 3
    %p42 = por %p40, %p41
    %p44 = scmp.ne.s32.totalorder %s27, %s43
    %p45 = scmp.eq.s32.totalorder %s19, 0
    %p46 = por %p44, %p45
    %s48 = sadd.s32 %s47, 1
    %p51 = scmp.eq.s32.totalorder %s13, 3
    %p52 = scmp.ne.s32.totalorder %s47, %s49
    %p53 = scmp.eq.s32.totalorder %s13, 0
    %p54 = por %p52, %p53
    %p55 = scmp.ne.s32.totalorder %s47, %s49
    %p56 = scmp.eq.s32.totalorder %s18, 3
    %p57 = por %p55, %p56
    %p58 = scmp.ne.s32.totalorder %s49, %s50
    %p59 = scmp.eq.s32.totalorder %s18, 0
    %p60 = por %p58, %p59
    %p61 = scmp.ne.s32.totalorder %s49, %s50
    %p62 = scmp.eq.s32.totalorder %s19, 3
    %p63 = por %p61, %p62
    %p65 = scmp.ne.s32.totalorder %s50, %s64
    %p66 = scmp.eq.s32.totalorder %s19, 0
    %p67 = por %p65, %p66
    %s69 = sadd.s32 %s68, 1
    %p72 = scmp.eq.s32.totalorder %s13, 3
    %p73 = scmp.ne.s32.totalorder %s68, %s70
    %p74 = scmp.eq.s32.totalorder %s13, 0
    %p75 = por %p73, %p74
    %p76 = scmp.ne.s32.totalorder %s68, %s70
    %p77 = scmp.eq.s32.totalorder %s18, 3
    %p78 = por %p76, %p77
    %p79 = scmp.ne.s32.totalorder %s70, %s71
    %p80 = scmp.eq.s32.totalorder %s18, 0
    %p81 = por %p79, %p80
    %p82 = scmp.ne.s32.totalorder %s70, %s71
    %p83 = scmp.eq.s32.totalorder %s19, 3
    %p84 = por %p82, %p83
    %p86 = scmp.ne.s32.totalorder %s71, %s85
    %p87 = scmp.eq.s32.totalorder %s19, 0
    %p88 = por %p86, %p87
    %s90 = sadd.s32 %s89, 1
    %p93 = scmp.eq.s32.totalorder %s13, 3
    %p94 = scmp.ne.s32.totalorder %s89, %s91
    %p95 = scmp.eq.s32.totalorder %s13, 0
    %p96 = por %p94, %p95
    %p97 = scmp.ne.s32.totalorder %s89, %s91
    %p98 = scmp.eq.s32.totalorder %s18, 3
    %p99 = por %p97, %p98
    %p100 = scmp.ne.s32.totalorder %s91, %s92
    %p101 = scmp.eq.s32.totalorder %s18, 0
    %p102 = por %p100, %p101
    %p103 = scmp.ne.s32.totalorder %s91, %s92
    %p104 = scmp.eq.s32.totalorder %s19, 3
    %p105 = por %p103, %p104
    %p107 = scmp.ne.s32.totalorder %s92, %s106
    %p108 = scmp.eq.s32.totalorder %s19, 0
    %p109 = por %p107, %p108
    %s111 = sadd.s32 %s110, 1
    %p114 = scmp.eq.s32.totalorder %s13, 3
    %p115 = scmp.ne.s32.totalorder %s110, %s112
    %p116 = scmp.eq.s32.totalorder %s13, 0
    %p117 = por %p115, %p116
    %p118 = scmp.ne.s32.totalorder %s110, %s112
    %p119 = scmp.eq.s32.totalorder %s18, 3
    %p120 = por %p118, %p119
    %p121 = scmp.ne.s32.totalorder %s112, %s113
    %p122 = scmp.eq.s32.totalorder %s18, 0
    %p123 = por %p121, %p122
    %p124 = scmp.ne.s32.totalorder %s112, %s113
    %p125 = scmp.eq.s32.totalorder %s19, 3
    %p126 = por %p124, %p125
    %p128 = scmp.ne.s32.totalorder %s113, %s127
    %p129 = scmp.eq.s32.totalorder %s19, 0
    %p130 = por %p128, %p129
    %s132 = sadd.s32 %s131, 1
    %p135 = scmp.eq.s32.totalorder %s13, 3
    %p136 = scmp.ne.s32.totalorder %s131, %s133
    %p137 = scmp.eq.s32.totalorder %s13, 0
    %p138 = por %p136, %p137
    %p139 = scmp.ne.s32.totalorder %s131, %s133
    %p140 = scmp.eq.s32.totalorder %s18, 3
    %p141 = por %p139, %p140
    %p142 = scmp.ne.s32.totalorder %s133, %s134
    %p143 = scmp.eq.s32.totalorder %s18, 0
    %p144 = por %p142, %p143
    %p145 = scmp.ne.s32.totalorder %s133, %s134
    %p146 = scmp.eq.s32.totalorder %s19, 3
    %p147 = por %p145, %p146
    %p149 = scmp.ne.s32.totalorder %s134, %s148
    %p150 = scmp.eq.s32.totalorder %s19, 0
    %p151 = por %p149, %p150
    %s153 = sadd.s32 %s152, 1
    %p156 = scmp.eq.s32.totalorder %s13, 3
    %p157 = scmp.ne.s32.totalorder %s152, %s154
    %p158 = scmp.eq.s32.totalorder %s13, 0
    %p159 = por %p157, %p158
    %p160 = scmp.ne.s32.totalorder %s152, %s154
    %p161 = scmp.eq.s32.totalorder %s18, 3
    %p162 = por %p160, %p161
    %p163 = scmp.ne.s32.totalorder %s154, %s155
    %p164 = scmp.eq.s32.totalorder %s18, 0
    %p165 = por %p163, %p164
    %p166 = scmp.ne.s32.totalorder %s154, %s155
    %p167 = scmp.eq.s32.totalorder %s19, 3
    %p168 = por %p166, %p167
    %p170 = scmp.ne.s32.totalorder %s155, %s169
    %p171 = scmp.eq.s32.totalorder %s19, 0
    %p172 = por %p170, %p171
    %s173 = ssub.s32 %s13, %s20
    %p174 = scmp.eq.s32.totalorder %s173, 0
    %s176 = sadd.s32 %s175, 1
    %s177 = scalar_select %p174, %s175, %s176
    %p180 = pneg %p174
    %p181 = scmp.eq.s32.totalorder %s13, 3
    %p182 = por %p180, %p181
    %p183 = scmp.ne.s32.totalorder %s175, %s178
    %p184 = scmp.eq.s32.totalorder %s13, 0
    %p185 = por %p183, %p184
    %p186 = scmp.ne.s32.totalorder %s175, %s178
    %p187 = scmp.eq.s32.totalorder %s18, 3
    %p188 = por %p186, %p187
    %p189 = scmp.ne.s32.totalorder %s178, %s179
    %p190 = scmp.eq.s32.totalorder %s18, 0
    %p191 = por %p189, %p190
    %p192 = scmp.ne.s32.totalorder %s178, %s179
    %p193 = scmp.eq.s32.totalorder %s19, 3
    %p194 = por %p192, %p193
    %p196 = scmp.ne.s32.totalorder %s179, %s195
    %p197 = scmp.eq.s32.totalorder %s19, 0
    %p198 = por %p196, %p197
    %p199 = scmp.le.s32.totalorder 1, %s13
    %p200 = scmp.lt.s32.totalorder %s13, 5
    %p201 = pnand %p199, %p200
    %p202 = pneg %p201
    // Predicated region
    $region9: #{tpu_custom_call.1} parent=5 // pred_check
      _
    $region10: #{tpu_custom_call.1} parent=5 // pred_check_branch
      %204 = sbr.rel (%p201) target = $region12
    $region11: #{tpu_custom_call.1} parent=5 // pred_region
      %s205 = ssub.s32 %s13, 1
      // Predicated region
      $region13: #{tpu_custom_call.1} parent=11 // pred_check
        %p206 = pneg %p60
      $region14: #{tpu_custom_call.1} parent=11 // pred_check_branch
        %208 = sbr.rel (%p206) target = $region16
      $region15: #{tpu_custom_call.1} parent=11 // pred_region
        _
      $region16: #{tpu_custom_call.1} parent=11 // pred_fallthru
        _
      // Predicated region
      $region17: #{tpu_custom_call.1} parent=11 // pred_check
        %p209 = pneg %p81
      $region18: #{tpu_custom_call.1} parent=11 // pred_check_branch
        %211 = sbr.rel (%p209) target = $region20
      $region19: #{tpu_custom_call.1} parent=11 // pred_region
        _
      $region20: #{tpu_custom_call.1} parent=11 // pred_fallthru
        _
      // Predicated region
      $region21: #{tpu_custom_call.1} parent=11 // pred_check
        %p212 = pneg %p102
      $region22: #{tpu_custom_call.1} parent=11 // pred_check_branch
        %214 = sbr.rel (%p212) target = $region24
      $region23: #{tpu_custom_call.1} parent=11 // pred_region
        _
      $region24: #{tpu_custom_call.1} parent=11 // pred_fallthru
        _
      // Predicated region
      $region25: #{tpu_custom_call.1} parent=11 // pred_check
        %p215 = pneg %p123
      $region26: #{tpu_custom_call.1} parent=11 // pred_check_branch
        %217 = sbr.rel (%p215) target = $region28
      $region27: #{tpu_custom_call.1} parent=11 // pred_region
        _
      $region28: #{tpu_custom_call.1} parent=11 // pred_fallthru
        _
      // Predicated region
      $region29: #{tpu_custom_call.1} parent=11 // pred_check
        %p218 = pneg %p144
      $region30: #{tpu_custom_call.1} parent=11 // pred_check_branch
        %220 = sbr.rel (%p218) target = $region32
      $region31: #{tpu_custom_call.1} parent=11 // pred_region
        _
      $region32: #{tpu_custom_call.1} parent=11 // pred_fallthru
        _
      // Predicated region
      $region33: #{tpu_custom_call.1} parent=11 // pred_check
        %p221 = pneg %p165
      $region34: #{tpu_custom_call.1} parent=11 // pred_check_branch
        %223 = sbr.rel (%p221) target = $region36
      $region35: #{tpu_custom_call.1} parent=11 // pred_region
        _
      $region36: #{tpu_custom_call.1} parent=11 // pred_fallthru
        _
    $region12: #{tpu_custom_call.1} parent=5 // pred_fallthru
      _
    %p224 = scmp.lt.s32.totalorder %s13, 4
    // Predicated region
    $region37: #{tpu_custom_call.1} parent=5 // pred_check
      %p225 = pneg %p224
    $region38: #{tpu_custom_call.1} parent=5 // pred_check_branch
      %227 = sbr.rel (%p225) target = $region40
    $region39: #{tpu_custom_call.1} parent=5 // pred_region
      // Predicated region
      $region41: #{tpu_custom_call.1} parent=39 // pred_check
        %p228 = pneg %p33
      $region42: #{tpu_custom_call.1} parent=39 // pred_check_branch
        %230 = sbr.rel (%p228) target = $region44
      $region43: #{tpu_custom_call.1} parent=39 // pred_region
        %s231 = smul.u32 32, %s13
        %p232 = scmp.lt.s32.totalorder %s231, 127
        %s233 = scalar_select %p232, %s231, 127
        %s234 = smul.addr %s233, 8
        %s235 = scalar_lea.vmem %s0, %s234
        %s236 = smul.u32 32, %s13
      $region44: #{tpu_custom_call.1} parent=39 // pred_fallthru
        _
    $region40: #{tpu_custom_call.1} parent=5 // pred_fallthru
      _
    %p237 = scmp.le.s32.totalorder 1, %s13
    %p238 = scmp.lt.s32.totalorder %s13, 5
    %p239 = pnand %p237, %p238
    %p240 = pneg %p239
    // Predicated region
    $region45: #{tpu_custom_call.1} parent=5 // pred_check
      _
    $region46: #{tpu_custom_call.1} parent=5 // pred_check_branch
      %242 = sbr.rel (%p239) target = $region48
    $region47: #{tpu_custom_call.1} parent=5 // pred_region
      %s243 = ssub.s32 %s13, 1
      %s244 = smul.u32 32, %s18
      %p245 = scmp.lt.s32.totalorder %s244, 127
      %s246 = scalar_select %p245, %s244, 127
      %s247 = smul.addr %s246, 8
      %s248 = scalar_lea.vmem %s0, %s247
      %p249 = pneg %p39
      %p250 = pneg %p36
      %p251 = pneg %p60
      %p252 = pneg %p57
      %p253 = pneg %p81
      %p254 = pneg %p78
      %p255 = pneg %p102
      %p256 = pneg %p99
      %p257 = pneg %p123
      %p258 = pneg %p120
      %p259 = pneg %p144
      %p260 = pneg %p141
      %p261 = pneg %p165
      %p262 = pneg %p162
      %p263 = pneg %p191
      %p264 = pneg %p188
      %s265 = smul.u32 4, %s18
      %p266 = scmp.lt.s32.totalorder %s265, 15
      %s267 = scalar_select %p266, %s265, 15
      %s268 = smul.addr %s267, 8
      %s269 = scalar_lea.vmem %s7, %s268
      %s270 = smul.u32 32, %s18
      %p271 = scmp.lt.s32.totalorder %s270, 127
      %s272 = scalar_select %p271, %s270, 127
      %s273 = smul.addr %s272, 8
      %s274 = scalar_lea.vmem %s0, %s273
      %s275 = smul.u32 32, %s18
      %s276 = smul.u32 4, %s18
      %p277 = scmp.lt.s32.totalorder %s276, 15
      %s278 = scalar_select %p277, %s276, 15
      %s279 = smul.addr %s278, 8
      %s280 = scalar_lea.vmem %s7, %s279
      %s281 = smul.u32 4, %s18
      %v282 = vld [vmem:[%s274] sm:$0xff]
      %v283 = vld [vmem:[%s274 + $0x8] sm:$0xff]
      %v284 = vld [vmem:[%s274 + $0x10] sm:$0xff]
      %v285 = vld [vmem:[%s274 + $0x18] sm:$0xff]
      %v286 = vld [vmem:[%s274 + $0x20] sm:$0xff]
      %v287 = vld [vmem:[%s274 + $0x28] sm:$0xff]
      %v288 = vld [vmem:[%s274 + $0x30] sm:$0xff]
      %v289 = vld [vmem:[%s274 + $0x38] sm:$0xff]
      %v290 = vld [vmem:[%s274 + $0x40] sm:$0xff]
      %v291 = vld [vmem:[%s274 + $0x48] sm:$0xff]
      %v292 = vld [vmem:[%s274 + $0x50] sm:$0xff]
      %v293 = vld [vmem:[%s274 + $0x58] sm:$0xff]
      %v294 = vld [vmem:[%s274 + $0x60] sm:$0xff]
      %v295 = vld [vmem:[%s274 + $0x68] sm:$0xff]
      %v296 = vld [vmem:[%s274 + $0x70] sm:$0xff]
      %v297 = vld [vmem:[%s274 + $0x78] sm:$0xff]
      %v298 = vld [vmem:[%s274 + $0x80] sm:$0xff]
      %v299 = vld [vmem:[%s274 + $0x88] sm:$0xff]
      %v300 = vld [vmem:[%s274 + $0x90] sm:$0xff]
      %v301 = vld [vmem:[%s274 + $0x98] sm:$0xff]
      %v302 = vld [vmem:[%s274 + $0xa0] sm:$0xff]
      %v303 = vld [vmem:[%s274 + $0xa8] sm:$0xff]
      %v304 = vld [vmem:[%s274 + $0xb0] sm:$0xff]
      %v305 = vld [vmem:[%s274 + $0xb8] sm:$0xff]
      %v306 = vld [vmem:[%s274 + $0xc0] sm:$0xff]
      %v307 = vld [vmem:[%s274 + $0xc8] sm:$0xff]
      %v308 = vld [vmem:[%s274 + $0xd0] sm:$0xff]
      %v309 = vld [vmem:[%s274 + $0xd8] sm:$0xff]
      %v310 = vld [vmem:[%s274 + $0xe0] sm:$0xff]
      %v311 = vld [vmem:[%s274 + $0xe8] sm:$0xff]
      %v312 = vld [vmem:[%s274 + $0xf0] sm:$0xff]
      %v313 = vld [vmem:[%s274 + $0xf8] sm:$0xff]
      %v314 = vld [vmem:[%s2] sm:$0xf]
      %v315 = vld [vmem:[%s1] sm:$0xff]
      %v316 = vld [vmem:[%s1 + $0x8] sm:$0xff]
      %v317 = vld [vmem:[%s1 + $0x10] sm:$0xff]
      %v318 = vld [vmem:[%s1 + $0x18] sm:$0xff]
      %v319 = vld [vmem:[%s1 + $0x20] sm:$0xff]
      %v320 = vld [vmem:[%s1 + $0x28] sm:$0xff]
      %v321 = vld [vmem:[%s1 + $0x30] sm:$0xff]
      %v322 = vld [vmem:[%s1 + $0x38] sm:$0xff]
      %v323 = vld [vmem:[%s1 + $0x40] sm:$0xff]
      %v324 = vld [vmem:[%s1 + $0x48] sm:$0xff]
      %v325 = vld [vmem:[%s1 + $0x50] sm:$0xff]
      %v326 = vld [vmem:[%s1 + $0x58] sm:$0xff]
      %v327 = vld [vmem:[%s1 + $0x60] sm:$0xff]
      %v328 = vld [vmem:[%s1 + $0x68] sm:$0xff]
      %v329 = vld [vmem:[%s1 + $0x70] sm:$0xff]
      %v330 = vld [vmem:[%s1 + $0x78] sm:$0xff]
      %v331 = vld [vmem:[%s1 + $0x80] sm:$0xff]
      %v332 = vld [vmem:[%s1 + $0x88] sm:$0xff]
      %v333 = vld [vmem:[%s1 + $0x90] sm:$0xff]
      %v334 = vld [vmem:[%s1 + $0x98] sm:$0xff]
      %v335 = vld [vmem:[%s1 + $0xa0] sm:$0xff]
      %v336 = vld [vmem:[%s1 + $0xa8] sm:$0xff]
      %v337 = vld [vmem:[%s1 + $0xb0] sm:$0xff]
      %v338 = vld [vmem:[%s1 + $0xb8] sm:$0xff]
      %v339 = vld [vmem:[%s1 + $0xc0] sm:$0xff]
      %v340 = vld [vmem:[%s1 + $0xc8] sm:$0xff]
      %v341 = vld [vmem:[%s1 + $0xd0] sm:$0xff]
      %v342 = vld [vmem:[%s1 + $0xd8] sm:$0xff]
      %v343 = vld [vmem:[%s1 + $0xe0] sm:$0xff]
      %v344 = vld [vmem:[%s1 + $0xe8] sm:$0xff]
      %v345 = vld [vmem:[%s1 + $0xf0] sm:$0xff]
      %v346 = vld [vmem:[%s1 + $0xf8] sm:$0xff]
      %vm347 = vcmask 31744
      %v349 = vsel %vm347, %v282, 0
      %v352 = vsel %vm347, %v283, 0
      %v355 = vsel %vm347, %v284, 0
      %v358 = vsel %vm347, %v285, 0
      %v361 = vsel %vm347, %v286, 0
      %v364 = vsel %vm347, %v287, 0
      %v367 = vsel %vm347, %v288, 0
      %v370 = vsel %vm347, %v289, 0
      %v373 = vsel %vm347, %v290, 0
      %v376 = vsel %vm347, %v291, 0
      %v379 = vsel %vm347, %v292, 0
      %v382 = vsel %vm347, %v293, 0
      %v385 = vsel %vm347, %v294, 0
      %v388 = vsel %vm347, %v295, 0
      %v391 = vsel %vm347, %v296, 0
      %v394 = vsel %vm347, %v297, 0
      %v397 = vsel %vm347, %v298, 0
      %v400 = vsel %vm347, %v299, 0
      %v403 = vsel %vm347, %v300, 0
      %v406 = vsel %vm347, %v301, 0
      %v409 = vsel %vm347, %v302, 0
      %v412 = vsel %vm347, %v303, 0
      %v415 = vsel %vm347, %v304, 0
      %v418 = vsel %vm347, %v305, 0
      %v421 = vsel %vm347, %v306, 0
      %v424 = vsel %vm347, %v307, 0
      %v427 = vsel %vm347, %v308, 0
      %v430 = vsel %vm347, %v309, 0
      %v433 = vsel %vm347, %v310, 0
      %v436 = vsel %vm347, %v311, 0
      %v439 = vsel %vm347, %v312, 0
      %v442 = vsel %vm347, %v313, 0
      %vm444 = vcmask 1043456
      %v446 = vsel %vm444, %v314, 0
      %448 = vmatpush.msra.mxu0 0.0
      %449 = vmatpush.msra.mxu0 0.0
      %450 = vmatpush.msra.mxu0 0.0
      %451 = vmatpush.msra.mxu0 0.0
      %452 = vmatpush.msra.mxu0 0.0
      %453 = vmatpush.msra.mxu0 0.0
      %454 = vmatpush.msra.mxu0 0.0
      %455 = vmatpush.msra.mxu0 0.0
      %456 = vmatpush.msra.mxu0 0.0
      %457 = vmatpush.msra.mxu0 0.0
      %458 = vmatpush.msra.mxu0 0.0
      %459 = vmatpush.msra.mxu0 0.0
      %460 = vmatpush.msra.mxu0 0.0
      %461 = vmatpush.msra.mxu0 0.0
      %462 = vmatpush.msra.mxu0 0.0
      %463 = vmatpush.msra.mxu0 %v446
      %464 = vmatmul.f32.gmra.mxu0 %v349
      %v465 = vpop.f32.mrf.mxu0
      %v466 = vadd.f32 %v315, %v465
      %467 = vmatmul.f32.gmra.mxu0 %v352
      %v468 = vpop.f32.mrf.mxu0
      %v469 = vadd.f32 %v316, %v468
      %470 = vmatmul.f32.gmra.mxu0 %v355
      %v471 = vpop.f32.mrf.mxu0
      %v472 = vadd.f32 %v317, %v471
      %473 = vmatmul.f32.gmra.mxu0 %v358
      %v474 = vpop.f32.mrf.mxu0
      %v475 = vadd.f32 %v318, %v474
      %476 = vmatmul.f32.gmra.mxu0 %v361
      %v477 = vpop.f32.mrf.mxu0
      %v478 = vadd.f32 %v319, %v477
      %479 = vmatmul.f32.gmra.mxu0 %v364
      %v480 = vpop.f32.mrf.mxu0
      %v481 = vadd.f32 %v320, %v480
      %482 = vmatmul.f32.gmra.mxu0 %v367
      %v483 = vpop.f32.mrf.mxu0
      %v484 = vadd.f32 %v321, %v483
      %485 = vmatmul.f32.gmra.mxu0 %v370
      %v486 = vpop.f32.mrf.mxu0
      %v487 = vadd.f32 %v322, %v486
      %488 = vmatmul.f32.gmra.mxu0 %v373
      %v489 = vpop.f32.mrf.mxu0
      %v490 = vadd.f32 %v323, %v489
      %491 = vmatmul.f32.gmra.mxu0 %v376
      %v492 = vpop.f32.mrf.mxu0
      %v493 = vadd.f32 %v324, %v492
      %494 = vmatmul.f32.gmra.mxu0 %v379
      %v495 = vpop.f32.mrf.mxu0
      %v496 = vadd.f32 %v325, %v495
      %497 = vmatmul.f32.gmra.mxu0 %v382
      %v498 = vpop.f32.mrf.mxu0
      %v499 = vadd.f32 %v326, %v498
      %500 = vmatmul.f32.gmra.mxu0 %v385
      %v501 = vpop.f32.mrf.mxu0
      %v502 = vadd.f32 %v327, %v501
      %503 = vmatmul.f32.gmra.mxu0 %v388
      %v504 = vpop.f32.mrf.mxu0
      %v505 = vadd.f32 %v328, %v504
      %506 = vmatmul.f32.gmra.mxu0 %v391
      %v507 = vpop.f32.mrf.mxu0
      %v508 = vadd.f32 %v329, %v507
      %509 = vmatmul.f32.gmra.mxu0 %v394
      %v510 = vpop.f32.mrf.mxu0
      %v511 = vadd.f32 %v330, %v510
      %512 = vmatmul.f32.gmra.mxu0 %v397
      %v513 = vpop.f32.mrf.mxu0
      %v514 = vadd.f32 %v331, %v513
      %515 = vmatmul.f32.gmra.mxu0 %v400
      %v516 = vpop.f32.mrf.mxu0
      %v517 = vadd.f32 %v332, %v516
      %518 = vmatmul.f32.gmra.mxu0 %v403
      %v519 = vpop.f32.mrf.mxu0
      %v520 = vadd.f32 %v333, %v519
      %521 = vmatmul.f32.gmra.mxu0 %v406
      %v522 = vpop.f32.mrf.mxu0
      %v523 = vadd.f32 %v334, %v522
      %524 = vmatmul.f32.gmra.mxu0 %v409
      %v525 = vpop.f32.mrf.mxu0
      %v526 = vadd.f32 %v335, %v525
      %527 = vmatmul.f32.gmra.mxu0 %v412
      %v528 = vpop.f32.mrf.mxu0
      %v529 = vadd.f32 %v336, %v528
      %530 = vmatmul.f32.gmra.mxu0 %v415
      %v531 = vpop.f32.mrf.mxu0
      %v532 = vadd.f32 %v337, %v531
      %533 = vmatmul.f32.gmra.mxu0 %v418
      %v534 = vpop.f32.mrf.mxu0
      %v535 = vadd.f32 %v338, %v534
      %536 = vmatmul.f32.gmra.mxu0 %v421
      %v537 = vpop.f32.mrf.mxu0
      %v538 = vadd.f32 %v339, %v537
      %539 = vmatmul.f32.gmra.mxu0 %v424
      %v540 = vpop.f32.mrf.mxu0
      %v541 = vadd.f32 %v340, %v540
      %542 = vmatmul.f32.gmra.mxu0 %v427
      %v543 = vpop.f32.mrf.mxu0
      %v544 = vadd.f32 %v341, %v543
      %545 = vmatmul.f32.gmra.mxu0 %v430
      %v546 = vpop.f32.mrf.mxu0
      %v547 = vadd.f32 %v342, %v546
      %548 = vmatmul.f32.gmra.mxu0 %v433
      %v549 = vpop.f32.mrf.mxu0
      %v550 = vadd.f32 %v343, %v549
      %551 = vmatmul.f32.gmra.mxu0 %v436
      %v552 = vpop.f32.mrf.mxu0
      %v553 = vadd.f32 %v344, %v552
      %554 = vmatmul.f32.gmra.mxu0 %v439
      %v555 = vpop.f32.mrf.mxu0
      %v556 = vadd.f32 %v345, %v555
      %557 = vmatmul.f32.gmra.mxu0 %v442
      %v558 = vpop.f32.mrf.mxu0
      %v559 = vadd.f32 %v346, %v558
      %560 = vdwg.mxu0
      %v561 = vlaneseq
      %v562 = vshrl.u32 %v561, 7
      %v563 = vadd.s32 %v562, 8
      %v564 = vadd.s32 %v562, 16
      %v565 = vadd.s32 %v562, 24
      %v566 = vadd.s32 %v562, 32
      %v567 = vadd.s32 %v562, 40
      %v568 = vadd.s32 %v562, 48
      %v569 = vadd.s32 %v562, 56
      %v570 = vadd.s32 %v562, 64
      %v571 = vadd.s32 %v562, 72
      %v572 = vadd.s32 %v562, 80
      %v573 = vadd.s32 %v562, 88
      %v574 = vadd.s32 %v562, 96
      %v575 = vadd.s32 %v562, 104
      %v576 = vadd.s32 %v562, 112
      %v577 = vadd.s32 %v562, 120
      %v578 = vadd.s32 %v562, 128
      %v579 = vadd.s32 %v562, 136
      %v580 = vadd.s32 %v562, 144
      %v581 = vadd.s32 %v562, 152
      %v582 = vadd.s32 %v562, 160
      %v583 = vadd.s32 %v562, 168
      %v584 = vadd.s32 %v562, 176
      %v585 = vadd.s32 %v562, 184
      %v586 = vadd.s32 %v562, 192
      %v587 = vadd.s32 %v562, 200
      %v588 = vadd.s32 %v562, 208
      %v589 = vadd.s32 %v562, 216
      %v590 = vadd.s32 %v562, 224
      %v591 = vadd.s32 %v562, 232
      %v592 = vadd.s32 %v562, 240
      %v593 = vadd.s32 %v562, 248
      %vm594 = vcmp.lt.s32.totalorder %v562, 0
      %v595 = vsub.s32 0, %v562
      %v596 = vsel %vm594, %v595, %v562
      %v597 = vshrl.u32 %v596, 3
      %v598 = vand.u32 %v596, 7
      %v599 = vsub.s32 0, %v598
      %v600 = vsel %vm594, %v599, %v598
      %vm601 = vcmp.lt.s32.totalorder %v563, 0
      %v602 = vsub.s32 0, %v563
      %v603 = vsel %vm601, %v602, %v563
      %v604 = vshrl.u32 %v603, 3
      %v605 = vand.u32 %v603, 7
      %v606 = vsub.s32 0, %v605
      %v607 = vsel %vm601, %v606, %v605
      %vm608 = vcmp.lt.s32.totalorder %v564, 0
      %v609 = vsub.s32 0, %v564
      %v610 = vsel %vm608, %v609, %v564
      %v611 = vshrl.u32 %v610, 3
      %v612 = vand.u32 %v610, 7
      %v613 = vsub.s32 0, %v612
      %v614 = vsel %vm608, %v613, %v612
      %vm615 = vcmp.lt.s32.totalorder %v565, 0
      %v616 = vsub.s32 0, %v565
      %v617 = vsel %vm615, %v616, %v565
      %v618 = vshrl.u32 %v617, 3
      %v619 = vand.u32 %v617, 7
      %v620 = vsub.s32 0, %v619
      %v621 = vsel %vm615, %v620, %v619
      %vm622 = vcmp.lt.s32.totalorder %v566, 0
      %v623 = vsub.s32 0, %v566
      %v624 = vsel %vm622, %v623, %v566
      %v625 = vshrl.u32 %v624, 3
      %v626 = vand.u32 %v624, 7
      %v627 = vsub.s32 0, %v626
      %v628 = vsel %vm622, %v627, %v626
      %vm629 = vcmp.lt.s32.totalorder %v567, 0
      %v630 = vsub.s32 0, %v567
      %v631 = vsel %vm629, %v630, %v567
      %v632 = vshrl.u32 %v631, 3
      %v633 = vand.u32 %v631, 7
      %v634 = vsub.s32 0, %v633
      %v635 = vsel %vm629, %v634, %v633
      %vm636 = vcmp.lt.s32.totalorder %v568, 0
      %v637 = vsub.s32 0, %v568
      %v638 = vsel %vm636, %v637, %v568
      %v639 = vshrl.u32 %v638, 3
      %v640 = vand.u32 %v638, 7
      %v641 = vsub.s32 0, %v640
      %v642 = vsel %vm636, %v641, %v640
      %vm643 = vcmp.lt.s32.totalorder %v569, 0
      %v644 = vsub.s32 0, %v569
      %v645 = vsel %vm643, %v644, %v569
      %v646 = vshrl.u32 %v645, 3
      %v647 = vand.u32 %v645, 7
      %v648 = vsub.s32 0, %v647
      %v649 = vsel %vm643, %v648, %v647
      %vm650 = vcmp.lt.s32.totalorder %v570, 0
      %v651 = vsub.s32 0, %v570
      %v652 = vsel %vm650, %v651, %v570
      %v653 = vshrl.u32 %v652, 3
      %v654 = vand.u32 %v652, 7
      %v655 = vsub.s32 0, %v654
      %v656 = vsel %vm650, %v655, %v654
      %vm657 = vcmp.lt.s32.totalorder %v571, 0
      %v658 = vsub.s32 0, %v571
      %v659 = vsel %vm657, %v658, %v571
      %v660 = vshrl.u32 %v659, 3
      %v661 = vand.u32 %v659, 7
      %v662 = vsub.s32 0, %v661
      %v663 = vsel %vm657, %v662, %v661
      %vm664 = vcmp.lt.s32.totalorder %v572, 0
      %v665 = vsub.s32 0, %v572
      %v666 = vsel %vm664, %v665, %v572
      %v667 = vshrl.u32 %v666, 3
      %v668 = vand.u32 %v666, 7
      %v669 = vsub.s32 0, %v668
      %v670 = vsel %vm664, %v669, %v668
      %vm671 = vcmp.lt.s32.totalorder %v573, 0
      %v672 = vsub.s32 0, %v573
      %v673 = vsel %vm671, %v672, %v573
      %v674 = vshrl.u32 %v673, 3
      %v675 = vand.u32 %v673, 7
      %v676 = vsub.s32 0, %v675
      %v677 = vsel %vm671, %v676, %v675
      %vm678 = vcmp.lt.s32.totalorder %v574, 0
      %v679 = vsub.s32 0, %v574
      %v680 = vsel %vm678, %v679, %v574
      %v681 = vshrl.u32 %v680, 3
      %v682 = vand.u32 %v680, 7
      %v683 = vsub.s32 0, %v682
      %v684 = vsel %vm678, %v683, %v682
      %vm685 = vcmp.lt.s32.totalorder %v575, 0
      %v686 = vsub.s32 0, %v575
      %v687 = vsel %vm685, %v686, %v575
      %v688 = vshrl.u32 %v687, 3
      %v689 = vand.u32 %v687, 7
      %v690 = vsub.s32 0, %v689
      %v691 = vsel %vm685, %v690, %v689
      %vm692 = vcmp.lt.s32.totalorder %v576, 0
      %v693 = vsub.s32 0, %v576
      %v694 = vsel %vm692, %v693, %v576
      %v695 = vshrl.u32 %v694, 3
      %v696 = vand.u32 %v694, 7
      %v697 = vsub.s32 0, %v696
      %v698 = vsel %vm692, %v697, %v696
      %vm699 = vcmp.lt.s32.totalorder %v577, 0
      %v700 = vsub.s32 0, %v577
      %v701 = vsel %vm699, %v700, %v577
      %v702 = vshrl.u32 %v701, 3
      %v703 = vand.u32 %v701, 7
      %v704 = vsub.s32 0, %v703
      %v705 = vsel %vm699, %v704, %v703
      %vm706 = vcmp.lt.s32.totalorder %v578, 0
      %v707 = vsub.s32 0, %v578
      %v708 = vsel %vm706, %v707, %v578
      %v709 = vshrl.u32 %v708, 3
      %v710 = vand.u32 %v708, 7
      %v711 = vsub.s32 0, %v710
      %v712 = vsel %vm706, %v711, %v710
      %vm713 = vcmp.lt.s32.totalorder %v579, 0
      %v714 = vsub.s32 0, %v579
      %v715 = vsel %vm713, %v714, %v579
      %v716 = vshrl.u32 %v715, 3
      %v717 = vand.u32 %v715, 7
      %v718 = vsub.s32 0, %v717
      %v719 = vsel %vm713, %v718, %v717
      %vm720 = vcmp.lt.s32.totalorder %v580, 0
      %v721 = vsub.s32 0, %v580
      %v722 = vsel %vm720, %v721, %v580
      %v723 = vshrl.u32 %v722, 3
      %v724 = vand.u32 %v722, 7
      %v725 = vsub.s32 0, %v724
      %v726 = vsel %vm720, %v725, %v724
      %vm727 = vcmp.lt.s32.totalorder %v581, 0
      %v728 = vsub.s32 0, %v581
      %v729 = vsel %vm727, %v728, %v581
      %v730 = vshrl.u32 %v729, 3
      %v731 = vand.u32 %v729, 7
      %v732 = vsub.s32 0, %v731
      %v733 = vsel %vm727, %v732, %v731
      %vm734 = vcmp.lt.s32.totalorder %v582, 0
      %v735 = vsub.s32 0, %v582
      %v736 = vsel %vm734, %v735, %v582
      %v737 = vshrl.u32 %v736, 3
      %v738 = vand.u32 %v736, 7
      %v739 = vsub.s32 0, %v738
      %v740 = vsel %vm734, %v739, %v738
      %vm741 = vcmp.lt.s32.totalorder %v583, 0
      %v742 = vsub.s32 0, %v583
      %v743 = vsel %vm741, %v742, %v583
      %v744 = vshrl.u32 %v743, 3
      %v745 = vand.u32 %v743, 7
      %v746 = vsub.s32 0, %v745
      %v747 = vsel %vm741, %v746, %v745
      %vm748 = vcmp.lt.s32.totalorder %v584, 0
      %v749 = vsub.s32 0, %v584
      %v750 = vsel %vm748, %v749, %v584
      %v751 = vshrl.u32 %v750, 3
      %v752 = vand.u32 %v750, 7
      %v753 = vsub.s32 0, %v752
      %v754 = vsel %vm748, %v753, %v752
      %vm755 = vcmp.lt.s32.totalorder %v585, 0
      %v756 = vsub.s32 0, %v585
      %v757 = vsel %vm755, %v756, %v585
      %v758 = vshrl.u32 %v757, 3
      %v759 = vand.u32 %v757, 7
      %v760 = vsub.s32 0, %v759
      %v761 = vsel %vm755, %v760, %v759
      %vm762 = vcmp.lt.s32.totalorder %v586, 0
      %v763 = vsub.s32 0, %v586
      %v764 = vsel %vm762, %v763, %v586
      %v765 = vshrl.u32 %v764, 3
      %v766 = vand.u32 %v764, 7
      %v767 = vsub.s32 0, %v766
      %v768 = vsel %vm762, %v767, %v766
      %vm769 = vcmp.lt.s32.totalorder %v587, 0
      %v770 = vsub.s32 0, %v587
      %v771 = vsel %vm769, %v770, %v587
      %v772 = vshrl.u32 %v771, 3
      %v773 = vand.u32 %v771, 7
      %v774 = vsub.s32 0, %v773
      %v775 = vsel %vm769, %v774, %v773
      %vm776 = vcmp.lt.s32.totalorder %v588, 0
      %v777 = vsub.s32 0, %v588
      %v778 = vsel %vm776, %v777, %v588
      %v779 = vshrl.u32 %v778, 3
      %v780 = vand.u32 %v778, 7
      %v781 = vsub.s32 0, %v780
      %v782 = vsel %vm776, %v781, %v780
      %vm783 = vcmp.lt.s32.totalorder %v589, 0
      %v784 = vsub.s32 0, %v589
      %v785 = vsel %vm783, %v784, %v589
      %v786 = vshrl.u32 %v785, 3
      %v787 = vand.u32 %v785, 7
      %v788 = vsub.s32 0, %v787
      %v789 = vsel %vm783, %v788, %v787
      %vm790 = vcmp.lt.s32.totalorder %v590, 0
      %v791 = vsub.s32 0, %v590
      %v792 = vsel %vm790, %v791, %v590
      %v793 = vshrl.u32 %v792, 3
      %v794 = vand.u32 %v792, 7
      %v795 = vsub.s32 0, %v794
      %v796 = vsel %vm790, %v795, %v794
      %vm797 = vcmp.lt.s32.totalorder %v591, 0
      %v798 = vsub.s32 0, %v591
      %v799 = vsel %vm797, %v798, %v591
      %v800 = vshrl.u32 %v799, 3
      %v801 = vand.u32 %v799, 7
      %v802 = vsub.s32 0, %v801
      %v803 = vsel %vm797, %v802, %v801
      %vm804 = vcmp.lt.s32.totalorder %v592, 0
      %v805 = vsub.s32 0, %v592
      %v806 = vsel %vm804, %v805, %v592
      %v807 = vshrl.u32 %v806, 3
      %v808 = vand.u32 %v806, 7
      %v809 = vsub.s32 0, %v808
      %v810 = vsel %vm804, %v809, %v808
      %vm811 = vcmp.lt.s32.totalorder %v593, 0
      %v812 = vsub.s32 0, %v593
      %v813 = vsel %vm811, %v812, %v593
      %v814 = vshrl.u32 %v813, 3
      %v815 = vand.u32 %v813, 7
      %v816 = vsub.s32 0, %v815
      %v817 = vsel %vm811, %v816, %v815
      %vm818 = vcmp.ne.s32.totalorder %v600, 0
      %vm819 = vcmp.ne.s32.totalorder %v607, 0
      %vm820 = vcmp.ne.s32.totalorder %v614, 0
      %vm821 = vcmp.ne.s32.totalorder %v621, 0
      %vm822 = vcmp.ne.s32.totalorder %v628, 0
      %vm823 = vcmp.ne.s32.totalorder %v635, 0
      %vm824 = vcmp.ne.s32.totalorder %v642, 0
      %vm825 = vcmp.ne.s32.totalorder %v649, 0
      %vm826 = vcmp.ne.s32.totalorder %v656, 0
      %vm827 = vcmp.ne.s32.totalorder %v663, 0
      %vm828 = vcmp.ne.s32.totalorder %v670, 0
      %vm829 = vcmp.ne.s32.totalorder %v677, 0
      %vm830 = vcmp.ne.s32.totalorder %v684, 0
      %vm831 = vcmp.ne.s32.totalorder %v691, 0
      %vm832 = vcmp.ne.s32.totalorder %v698, 0
      %vm833 = vcmp.ne.s32.totalorder %v705, 0
      %vm834 = vcmp.ne.s32.totalorder %v712, 0
      %vm835 = vcmp.ne.s32.totalorder %v719, 0
      %vm836 = vcmp.ne.s32.totalorder %v726, 0
      %vm837 = vcmp.ne.s32.totalorder %v733, 0
      %vm838 = vcmp.ne.s32.totalorder %v740, 0
      %vm839 = vcmp.ne.s32.totalorder %v747, 0
      %vm840 = vcmp.ne.s32.totalorder %v754, 0
      %vm841 = vcmp.ne.s32.totalorder %v761, 0
      %vm842 = vcmp.ne.s32.totalorder %v768, 0
      %vm843 = vcmp.ne.s32.totalorder %v775, 0
      %vm844 = vcmp.ne.s32.totalorder %v782, 0
      %vm845 = vcmp.ne.s32.totalorder %v789, 0
      %vm846 = vcmp.ne.s32.totalorder %v796, 0
      %vm847 = vcmp.ne.s32.totalorder %v803, 0
      %vm848 = vcmp.ne.s32.totalorder %v810, 0
      %vm849 = vcmp.ne.s32.totalorder %v817, 0
      %vm850 = vcmp.lt.s32.totalorder %v600, 0
      %vm851 = vcmp.lt.s32.totalorder %v607, 0
      %vm852 = vcmp.lt.s32.totalorder %v614, 0
      %vm853 = vcmp.lt.s32.totalorder %v621, 0
      %vm854 = vcmp.lt.s32.totalorder %v628, 0
      %vm855 = vcmp.lt.s32.totalorder %v635, 0
      %vm856 = vcmp.lt.s32.totalorder %v642, 0
      %vm857 = vcmp.lt.s32.totalorder %v649, 0
      %vm858 = vcmp.lt.s32.totalorder %v656, 0
      %vm859 = vcmp.lt.s32.totalorder %v663, 0
      %vm860 = vcmp.lt.s32.totalorder %v670, 0
      %vm861 = vcmp.lt.s32.totalorder %v677, 0
      %vm862 = vcmp.lt.s32.totalorder %v684, 0
      %vm863 = vcmp.lt.s32.totalorder %v691, 0
      %vm864 = vcmp.lt.s32.totalorder %v698, 0
      %vm865 = vcmp.lt.s32.totalorder %v705, 0
      %vm866 = vcmp.lt.s32.totalorder %v712, 0
      %vm867 = vcmp.lt.s32.totalorder %v719, 0
      %vm868 = vcmp.lt.s32.totalorder %v726, 0
      %vm869 = vcmp.lt.s32.totalorder %v733, 0
      %vm870 = vcmp.lt.s32.totalorder %v740, 0
      %vm871 = vcmp.lt.s32.totalorder %v747, 0
      %vm872 = vcmp.lt.s32.totalorder %v754, 0
      %vm873 = vcmp.lt.s32.totalorder %v761, 0
      %vm874 = vcmp.lt.s32.totalorder %v768, 0
      %vm875 = vcmp.lt.s32.totalorder %v775, 0
      %vm876 = vcmp.lt.s32.totalorder %v782, 0
      %vm877 = vcmp.lt.s32.totalorder %v789, 0
      %vm878 = vcmp.lt.s32.totalorder %v796, 0
      %vm879 = vcmp.lt.s32.totalorder %v803, 0
      %vm880 = vcmp.lt.s32.totalorder %v810, 0
      %vm881 = vcmp.lt.s32.totalorder %v817, 0
      %vm882 = vmand %vm850, %vm818
      %vm883 = vmand %vm851, %vm819
      %vm884 = vmand %vm852, %vm820
      %vm885 = vmand %vm853, %vm821
      %vm886 = vmand %vm854, %vm822
      %vm887 = vmand %vm855, %vm823
      %vm888 = vmand %vm856, %vm824
      %vm889 = vmand %vm857, %vm825
      %vm890 = vmand %vm858, %vm826
      %vm891 = vmand %vm859, %vm827
      %vm892 = vmand %vm860, %vm828
      %vm893 = vmand %vm861, %vm829
      %vm894 = vmand %vm862, %vm830
      %vm895 = vmand %vm863, %vm831
      %vm896 = vmand %vm864, %vm832
      %vm897 = vmand %vm865, %vm833
      %vm898 = vmand %vm866, %vm834
      %vm899 = vmand %vm867, %vm835
      %vm900 = vmand %vm868, %vm836
      %vm901 = vmand %vm869, %vm837
      %vm902 = vmand %vm870, %vm838
      %vm903 = vmand %vm871, %vm839
      %vm904 = vmand %vm872, %vm840
      %vm905 = vmand %vm873, %vm841
      %vm906 = vmand %vm874, %vm842
      %vm907 = vmand %vm875, %vm843
      %vm908 = vmand %vm876, %vm844
      %vm909 = vmand %vm877, %vm845
      %vm910 = vmand %vm878, %vm846
      %vm911 = vmand %vm879, %vm847
      %vm912 = vmand %vm880, %vm848
      %vm913 = vmand %vm881, %vm849
      %v914 = vadd.s32 %v600, 8
      %v915 = vadd.s32 %v607, 8
      %v916 = vadd.s32 %v614, 8
      %v917 = vadd.s32 %v621, 8
      %v918 = vadd.s32 %v628, 8
      %v919 = vadd.s32 %v635, 8
      %v920 = vadd.s32 %v642, 8
      %v921 = vadd.s32 %v649, 8
      %v922 = vadd.s32 %v656, 8
      %v923 = vadd.s32 %v663, 8
      %v924 = vadd.s32 %v670, 8
      %v925 = vadd.s32 %v677, 8
      %v926 = vadd.s32 %v684, 8
      %v927 = vadd.s32 %v691, 8
      %v928 = vadd.s32 %v698, 8
      %v929 = vadd.s32 %v705, 8
      %v930 = vadd.s32 %v712, 8
      %v931 = vadd.s32 %v719, 8
      %v932 = vadd.s32 %v726, 8
      %v933 = vadd.s32 %v733, 8
      %v934 = vadd.s32 %v740, 8
      %v935 = vadd.s32 %v747, 8
      %v936 = vadd.s32 %v754, 8
      %v937 = vadd.s32 %v761, 8
      %v938 = vadd.s32 %v768, 8
      %v939 = vadd.s32 %v775, 8
      %v940 = vadd.s32 %v782, 8
      %v941 = vadd.s32 %v789, 8
      %v942 = vadd.s32 %v796, 8
      %v943 = vadd.s32 %v803, 8
      %v944 = vadd.s32 %v810, 8
      %v945 = vadd.s32 %v817, 8
      %v946 = vsel %vm882, %v914, %v600
      %v947 = vsel %vm883, %v915, %v607
      %v948 = vsel %vm884, %v916, %v614
      %v949 = vsel %vm885, %v917, %v621
      %v950 = vsel %vm886, %v918, %v628
      %v951 = vsel %vm887, %v919, %v635
      %v952 = vsel %vm888, %v920, %v642
      %v953 = vsel %vm889, %v921, %v649
      %v954 = vsel %vm890, %v922, %v656
      %v955 = vsel %vm891, %v923, %v663
      %v956 = vsel %vm892, %v924, %v670
      %v957 = vsel %vm893, %v925, %v677
      %v958 = vsel %vm894, %v926, %v684
      %v959 = vsel %vm895, %v927, %v691
      %v960 = vsel %vm896, %v928, %v698
      %v961 = vsel %vm897, %v929, %v705
      %v962 = vsel %vm898, %v930, %v712
      %v963 = vsel %vm899, %v931, %v719
      %v964 = vsel %vm900, %v932, %v726
      %v965 = vsel %vm901, %v933, %v733
      %v966 = vsel %vm902, %v934, %v740
      %v967 = vsel %vm903, %v935, %v747
      %v968 = vsel %vm904, %v936, %v754
      %v969 = vsel %vm905, %v937, %v761
      %v970 = vsel %vm906, %v938, %v768
      %v971 = vsel %vm907, %v939, %v775
      %v972 = vsel %vm908, %v940, %v782
      %v973 = vsel %vm909, %v941, %v789
      %v974 = vsel %vm910, %v942, %v796
      %v975 = vsel %vm911, %v943, %v803
      %v976 = vsel %vm912, %v944, %v810
      %v977 = vsel %vm913, %v945, %v817
      %vm978 = vcmp.lt.s32.totalorder %v946, 8
      %vm979 = vcmp.lt.s32.totalorder %v947, 8
      %vm980 = vcmp.lt.s32.totalorder %v948, 8
      %vm981 = vcmp.lt.s32.totalorder %v949, 8
      %vm982 = vcmp.lt.s32.totalorder %v950, 8
      %vm983 = vcmp.lt.s32.totalorder %v951, 8
      %vm984 = vcmp.lt.s32.totalorder %v952, 8
      %vm985 = vcmp.lt.s32.totalorder %v953, 8
      %vm986 = vcmp.lt.s32.totalorder %v954, 8
      %vm987 = vcmp.lt.s32.totalorder %v955, 8
      %vm988 = vcmp.lt.s32.totalorder %v956, 8
      %vm989 = vcmp.lt.s32.totalorder %v957, 8
      %vm990 = vcmp.lt.s32.totalorder %v958, 8
      %vm991 = vcmp.lt.s32.totalorder %v959, 8
      %vm992 = vcmp.lt.s32.totalorder %v960, 8
      %vm993 = vcmp.lt.s32.totalorder %v961, 8
      %vm994 = vcmp.lt.s32.totalorder %v962, 8
      %vm995 = vcmp.lt.s32.totalorder %v963, 8
      %vm996 = vcmp.lt.s32.totalorder %v964, 8
      %vm997 = vcmp.lt.s32.totalorder %v965, 8
      %vm998 = vcmp.lt.s32.totalorder %v966, 8
      %vm999 = vcmp.lt.s32.totalorder %v967, 8
      %vm1000 = vcmp.lt.s32.totalorder %v968, 8
      %vm1001 = vcmp.lt.s32.totalorder %v969, 8
      %vm1002 = vcmp.lt.s32.totalorder %v970, 8
      %vm1003 = vcmp.lt.s32.totalorder %v971, 8
      %vm1004 = vcmp.lt.s32.totalorder %v972, 8
      %vm1005 = vcmp.lt.s32.totalorder %v973, 8
      %vm1006 = vcmp.lt.s32.totalorder %v974, 8
      %vm1007 = vcmp.lt.s32.totalorder %v975, 8
      %vm1008 = vcmp.lt.s32.totalorder %v976, 8
      %vm1009 = vcmp.lt.s32.totalorder %v977, 8
      %vm1010 = vcmp.eq.s32.totalorder %v946, 0
      %vm1011 = vcmp.eq.s32.totalorder %v947, 0
      %vm1012 = vcmp.eq.s32.totalorder %v948, 0
      %vm1013 = vcmp.eq.s32.totalorder %v949, 0
      %vm1014 = vcmp.eq.s32.totalorder %v950, 0
      %vm1015 = vcmp.eq.s32.totalorder %v951, 0
      %vm1016 = vcmp.eq.s32.totalorder %v952, 0
      %vm1017 = vcmp.eq.s32.totalorder %v953, 0
      %vm1018 = vcmp.eq.s32.totalorder %v954, 0
      %vm1019 = vcmp.eq.s32.totalorder %v955, 0
      %vm1020 = vcmp.eq.s32.totalorder %v956, 0
      %vm1021 = vcmp.eq.s32.totalorder %v957, 0
      %vm1022 = vcmp.eq.s32.totalorder %v958, 0
      %vm1023 = vcmp.eq.s32.totalorder %v959, 0
      %vm1024 = vcmp.eq.s32.totalorder %v960, 0
      %vm1025 = vcmp.eq.s32.totalorder %v961, 0
      %vm1026 = vcmp.eq.s32.totalorder %v962, 0
      %vm1027 = vcmp.eq.s32.totalorder %v963, 0
      %vm1028 = vcmp.eq.s32.totalorder %v964, 0
      %vm1029 = vcmp.eq.s32.totalorder %v965, 0
      %vm1030 = vcmp.eq.s32.totalorder %v966, 0
      %vm1031 = vcmp.eq.s32.totalorder %v967, 0
      %vm1032 = vcmp.eq.s32.totalorder %v968, 0
      %vm1033 = vcmp.eq.s32.totalorder %v969, 0
      %vm1034 = vcmp.eq.s32.totalorder %v970, 0
      %vm1035 = vcmp.eq.s32.totalorder %v971, 0
      %vm1036 = vcmp.eq.s32.totalorder %v972, 0
      %vm1037 = vcmp.eq.s32.totalorder %v973, 0
      %vm1038 = vcmp.eq.s32.totalorder %v974, 0
      %vm1039 = vcmp.eq.s32.totalorder %v975, 0
      %vm1040 = vcmp.eq.s32.totalorder %v976, 0
      %vm1041 = vcmp.eq.s32.totalorder %v977, 0
      %vm1042 = vcmp.eq.s32.totalorder %v946, 7
      %vm1043 = vcmp.eq.s32.totalorder %v947, 7
      %vm1044 = vcmp.eq.s32.totalorder %v948, 7
      %vm1045 = vcmp.eq.s32.totalorder %v949, 7
      %vm1046 = vcmp.eq.s32.totalorder %v950, 7
      %vm1047 = vcmp.eq.s32.totalorder %v951, 7
      %vm1048 = vcmp.eq.s32.totalorder %v952, 7
      %vm1049 = vcmp.eq.s32.totalorder %v953, 7
      %vm1050 = vcmp.eq.s32.totalorder %v954, 7
      %vm1051 = vcmp.eq.s32.totalorder %v955, 7
      %vm1052 = vcmp.eq.s32.totalorder %v956, 7
      %vm1053 = vcmp.eq.s32.totalorder %v957, 7
      %vm1054 = vcmp.eq.s32.totalorder %v958, 7
      %vm1055 = vcmp.eq.s32.totalorder %v959, 7
      %vm1056 = vcmp.eq.s32.totalorder %v960, 7
      %vm1057 = vcmp.eq.s32.totalorder %v961, 7
      %vm1058 = vcmp.eq.s32.totalorder %v962, 7
      %vm1059 = vcmp.eq.s32.totalorder %v963, 7
      %vm1060 = vcmp.eq.s32.totalorder %v964, 7
      %vm1061 = vcmp.eq.s32.totalorder %v965, 7
      %vm1062 = vcmp.eq.s32.totalorder %v966, 7
      %vm1063 = vcmp.eq.s32.totalorder %v967, 7
      %vm1064 = vcmp.eq.s32.totalorder %v968, 7
      %vm1065 = vcmp.eq.s32.totalorder %v969, 7
      %vm1066 = vcmp.eq.s32.totalorder %v970, 7
      %vm1067 = vcmp.eq.s32.totalorder %v971, 7
      %vm1068 = vcmp.eq.s32.totalorder %v972, 7
      %vm1069 = vcmp.eq.s32.totalorder %v973, 7
      %vm1070 = vcmp.eq.s32.totalorder %v974, 7
      %vm1071 = vcmp.eq.s32.totalorder %v975, 7
      %vm1072 = vcmp.eq.s32.totalorder %v976, 7
      %vm1073 = vcmp.eq.s32.totalorder %v977, 7
      %v1074 = vrot.slane %v466, 7
      %v1075 = vrot.slane %v469, 7
      %v1076 = vrot.slane %v472, 7
      %v1077 = vrot.slane %v475, 7
      %v1078 = vrot.slane %v478, 7
      %v1079 = vrot.slane %v481, 7
      %v1080 = vrot.slane %v484, 7
      %v1081 = vrot.slane %v487, 7
      %v1082 = vrot.slane %v490, 7
      %v1083 = vrot.slane %v493, 7
      %v1084 = vrot.slane %v496, 7
      %v1085 = vrot.slane %v499, 7
      %v1086 = vrot.slane %v502, 7
      %v1087 = vrot.slane %v505, 7
      %v1088 = vrot.slane %v508, 7
      %v1089 = vrot.slane %v511, 7
      %v1090 = vrot.slane %v514, 7
      %v1091 = vrot.slane %v517, 7
      %v1092 = vrot.slane %v520, 7
      %v1093 = vrot.slane %v523, 7
      %v1094 = vrot.slane %v526, 7
      %v1095 = vrot.slane %v529, 7
      %v1096 = vrot.slane %v532, 7
      %v1097 = vrot.slane %v535, 7
      %v1098 = vrot.slane %v538, 7
      %v1099 = vrot.slane %v541, 7
      %v1100 = vrot.slane %v544, 7
      %v1101 = vrot.slane %v547, 7
      %v1102 = vrot.slane %v550, 7
      %v1103 = vrot.slane %v553, 7
      %v1104 = vrot.slane %v556, 7
      %v1105 = vrot.slane %v559, 7
      %vm1106 = vcmp.lt.s32.totalorder %v562, 1
      %v1107 = vsel %vm1106, %v1104, %v1105
      %v1108 = vsel %vm1106, %v1103, %v1104
      %v1109 = vsel %vm1106, %v1102, %v1103
      %v1110 = vsel %vm1106, %v1101, %v1102
      %v1111 = vsel %vm1106, %v1100, %v1101
      %v1112 = vsel %vm1106, %v1099, %v1100
      %v1113 = vsel %vm1106, %v1098, %v1099
      %v1114 = vsel %vm1106, %v1097, %v1098
      %v1115 = vsel %vm1106, %v1096, %v1097
      %v1116 = vsel %vm1106, %v1095, %v1096
      %v1117 = vsel %vm1106, %v1094, %v1095
      %v1118 = vsel %vm1106, %v1093, %v1094
      %v1119 = vsel %vm1106, %v1092, %v1093
      %v1120 = vsel %vm1106, %v1091, %v1092
      %v1121 = vsel %vm1106, %v1090, %v1091
      %v1122 = vsel %vm1106, %v1089, %v1090
      %v1123 = vsel %vm1106, %v1088, %v1089
      %v1124 = vsel %vm1106, %v1087, %v1088
      %v1125 = vsel %vm1106, %v1086, %v1087
      %v1126 = vsel %vm1106, %v1085, %v1086
      %v1127 = vsel %vm1106, %v1084, %v1085
      %v1128 = vsel %vm1106, %v1083, %v1084
      %v1129 = vsel %vm1106, %v1082, %v1083
      %v1130 = vsel %vm1106, %v1081, %v1082
      %v1131 = vsel %vm1106, %v1080, %v1081
      %v1132 = vsel %vm1106, %v1079, %v1080
      %v1133 = vsel %vm1106, %v1078, %v1079
      %v1134 = vsel %vm1106, %v1077, %v1078
      %v1135 = vsel %vm1106, %v1076, %v1077
      %v1136 = vsel %vm1106, %v1075, %v1076
      %v1137 = vsel %vm1106, %v1074, %v1075
      %v1138 = vsel %vm1106, %v1105, %v1074
      %v1139 = vrot.slane %v466, 1
      %v1140 = vrot.slane %v469, 1
      %v1141 = vrot.slane %v472, 1
      %v1142 = vrot.slane %v475, 1
      %v1143 = vrot.slane %v478, 1
      %v1144 = vrot.slane %v481, 1
      %v1145 = vrot.slane %v484, 1
      %v1146 = vrot.slane %v487, 1
      %v1147 = vrot.slane %v490, 1
      %v1148 = vrot.slane %v493, 1
      %v1149 = vrot.slane %v496, 1
      %v1150 = vrot.slane %v499, 1
      %v1151 = vrot.slane %v502, 1
      %v1152 = vrot.slane %v505, 1
      %v1153 = vrot.slane %v508, 1
      %v1154 = vrot.slane %v511, 1
      %v1155 = vrot.slane %v514, 1
      %v1156 = vrot.slane %v517, 1
      %v1157 = vrot.slane %v520, 1
      %v1158 = vrot.slane %v523, 1
      %v1159 = vrot.slane %v526, 1
      %v1160 = vrot.slane %v529, 1
      %v1161 = vrot.slane %v532, 1
      %v1162 = vrot.slane %v535, 1
      %v1163 = vrot.slane %v538, 1
      %v1164 = vrot.slane %v541, 1
      %v1165 = vrot.slane %v544, 1
      %v1166 = vrot.slane %v547, 1
      %v1167 = vrot.slane %v550, 1
      %v1168 = vrot.slane %v553, 1
      %v1169 = vrot.slane %v556, 1
      %v1170 = vrot.slane %v559, 1
      %vm1171 = vcmp.lt.s32.totalorder %v562, 7
      %v1172 = vsel %vm1171, %v1169, %v1170
      %v1173 = vsel %vm1171, %v1168, %v1169
      %v1174 = vsel %vm1171, %v1167, %v1168
      %v1175 = vsel %vm1171, %v1166, %v1167
      %v1176 = vsel %vm1171, %v1165, %v1166
      %v1177 = vsel %vm1171, %v1164, %v1165
      %v1178 = vsel %vm1171, %v1163, %v1164
      %v1179 = vsel %vm1171, %v1162, %v1163
      %v1180 = vsel %vm1171, %v1161, %v1162
      %v1181 = vsel %vm1171, %v1160, %v1161
      %v1182 = vsel %vm1171, %v1159, %v1160
      %v1183 = vsel %vm1171, %v1158, %v1159
      %v1184 = vsel %vm1171, %v1157, %v1158
      %v1185 = vsel %vm1171, %v1156, %v1157
      %v1186 = vsel %vm1171, %v1155, %v1156
      %v1187 = vsel %vm1171, %v1154, %v1155
      %v1188 = vsel %vm1171, %v1153, %v1154
      %v1189 = vsel %vm1171, %v1152, %v1153
      %v1190 = vsel %vm1171, %v1151, %v1152
      %v1191 = vsel %vm1171, %v1150, %v1151
      %v1192 = vsel %vm1171, %v1149, %v1150
      %v1193 = vsel %vm1171, %v1148, %v1149
      %v1194 = vsel %vm1171, %v1147, %v1148
      %v1195 = vsel %vm1171, %v1146, %v1147
      %v1196 = vsel %vm1171, %v1145, %v1146
      %v1197 = vsel %vm1171, %v1144, %v1145
      %v1198 = vsel %vm1171, %v1143, %v1144
      %v1199 = vsel %vm1171, %v1142, %v1143
      %v1200 = vsel %vm1171, %v1141, %v1142
      %v1201 = vsel %vm1171, %v1140, %v1141
      %v1202 = vsel %vm1171, %v1139, %v1140
      %v1203 = vsel %vm1171, %v1170, %v1139
      %v1204 = vsel %vm1010, 0.0, %v1138
      %v1205 = vsel %vm1011, 0.0, %v1137
      %v1206 = vsel %vm1012, 0.0, %v1136
      %v1207 = vsel %vm1013, 0.0, %v1135
      %v1208 = vsel %vm1014, 0.0, %v1134
      %v1209 = vsel %vm1015, 0.0, %v1133
      %v1210 = vsel %vm1016, 0.0, %v1132
      %v1211 = vsel %vm1017, 0.0, %v1131
      %v1212 = vsel %vm1018, 0.0, %v1130
      %v1213 = vsel %vm1019, 0.0, %v1129
      %v1214 = vsel %vm1020, 0.0, %v1128
      %v1215 = vsel %vm1021, 0.0, %v1127
      %v1216 = vsel %vm1022, 0.0, %v1126
      %v1217 = vsel %vm1023, 0.0, %v1125
      %v1218 = vsel %vm1024, 0.0, %v1124
      %v1219 = vsel %vm1025, 0.0, %v1123
      %v1220 = vsel %vm1026, 0.0, %v1122
      %v1221 = vsel %vm1027, 0.0, %v1121
      %v1222 = vsel %vm1028, 0.0, %v1120
      %v1223 = vsel %vm1029, 0.0, %v1119
      %v1224 = vsel %vm1030, 0.0, %v1118
      %v1225 = vsel %vm1031, 0.0, %v1117
      %v1226 = vsel %vm1032, 0.0, %v1116
      %v1227 = vsel %vm1033, 0.0, %v1115
      %v1228 = vsel %vm1034, 0.0, %v1114
      %v1229 = vsel %vm1035, 0.0, %v1113
      %v1230 = vsel %vm1036, 0.0, %v1112
      %v1231 = vsel %vm1037, 0.0, %v1111
      %v1232 = vsel %vm1038, 0.0, %v1110
      %v1233 = vsel %vm1039, 0.0, %v1109
      %v1234 = vsel %vm1040, 0.0, %v1108
      %v1235 = vsel %vm1041, 0.0, %v1107
      %v1236 = vsel %vm1042, 0.0, %v1202
      %v1237 = vsel %vm1043, 0.0, %v1201
      %v1238 = vsel %vm1044, 0.0, %v1200
      %v1239 = vsel %vm1045, 0.0, %v1199
      %v1240 = vsel %vm1046, 0.0, %v1198
      %v1241 = vsel %vm1047, 0.0, %v1197
      %v1242 = vsel %vm1048, 0.0, %v1196
      %v1243 = vsel %vm1049, 0.0, %v1195
      %v1244 = vsel %vm1050, 0.0, %v1194
      %v1245 = vsel %vm1051, 0.0, %v1193
      %v1246 = vsel %vm1052, 0.0, %v1192
      %v1247 = vsel %vm1053, 0.0, %v1191
      %v1248 = vsel %vm1054, 0.0, %v1190
      %v1249 = vsel %vm1055, 0.0, %v1189
      %v1250 = vsel %vm1056, 0.0, %v1188
      %v1251 = vsel %vm1057, 0.0, %v1187
      %v1252 = vsel %vm1058, 0.0, %v1186
      %v1253 = vsel %vm1059, 0.0, %v1185
      %v1254 = vsel %vm1060, 0.0, %v1184
      %v1255 = vsel %vm1061, 0.0, %v1183
      %v1256 = vsel %vm1062, 0.0, %v1182
      %v1257 = vsel %vm1063, 0.0, %v1181
      %v1258 = vsel %vm1064, 0.0, %v1180
      %v1259 = vsel %vm1065, 0.0, %v1179
      %v1260 = vsel %vm1066, 0.0, %v1178
      %v1261 = vsel %vm1067, 0.0, %v1177
      %v1262 = vsel %vm1068, 0.0, %v1176
      %v1263 = vsel %vm1069, 0.0, %v1175
      %v1264 = vsel %vm1070, 0.0, %v1174
      %v1265 = vsel %vm1071, 0.0, %v1173
      %v1266 = vsel %vm1072, 0.0, %v1172
      %v1267 = vsel %vm1073, 0.0, %v1203
      %v1268 = vadd.f32 %v1204, %v1236
      %v1269 = vadd.f32 %v1205, %v1237
      %v1270 = vadd.f32 %v1206, %v1238
      %v1271 = vadd.f32 %v1207, %v1239
      %v1272 = vadd.f32 %v1208, %v1240
      %v1273 = vadd.f32 %v1209, %v1241
      %v1274 = vadd.f32 %v1210, %v1242
      %v1275 = vadd.f32 %v1211, %v1243
      %v1276 = vadd.f32 %v1212, %v1244
      %v1277 = vadd.f32 %v1213, %v1245
      %v1278 = vadd.f32 %v1214, %v1246
      %v1279 = vadd.f32 %v1215, %v1247
      %v1280 = vadd.f32 %v1216, %v1248
      %v1281 = vadd.f32 %v1217, %v1249
      %v1282 = vadd.f32 %v1218, %v1250
      %v1283 = vadd.f32 %v1219, %v1251
      %v1284 = vadd.f32 %v1220, %v1252
      %v1285 = vadd.f32 %v1221, %v1253
      %v1286 = vadd.f32 %v1222, %v1254
      %v1287 = vadd.f32 %v1223, %v1255
      %v1288 = vadd.f32 %v1224, %v1256
      %v1289 = vadd.f32 %v1225, %v1257
      %v1290 = vadd.f32 %v1226, %v1258
      %v1291 = vadd.f32 %v1227, %v1259
      %v1292 = vadd.f32 %v1228, %v1260
      %v1293 = vadd.f32 %v1229, %v1261
      %v1294 = vadd.f32 %v1230, %v1262
      %v1295 = vadd.f32 %v1231, %v1263
      %v1296 = vadd.f32 %v1232, %v1264
      %v1297 = vadd.f32 %v1233, %v1265
      %v1298 = vadd.f32 %v1234, %v1266
      %v1299 = vadd.f32 %v1235, %v1267
      %v1300 = vadd.f32 %v466, %v1268
      %v1301 = vadd.f32 %v469, %v1269
      %v1302 = vadd.f32 %v472, %v1270
      %v1303 = vadd.f32 %v475, %v1271
      %v1304 = vadd.f32 %v478, %v1272
      %v1305 = vadd.f32 %v481, %v1273
      %v1306 = vadd.f32 %v484, %v1274
      %v1307 = vadd.f32 %v487, %v1275
      %v1308 = vadd.f32 %v490, %v1276
      %v1309 = vadd.f32 %v493, %v1277
      %v1310 = vadd.f32 %v496, %v1278
      %v1311 = vadd.f32 %v499, %v1279
      %v1312 = vadd.f32 %v502, %v1280
      %v1313 = vadd.f32 %v505, %v1281
      %v1314 = vadd.f32 %v508, %v1282
      %v1315 = vadd.f32 %v511, %v1283
      %v1316 = vadd.f32 %v514, %v1284
      %v1317 = vadd.f32 %v517, %v1285
      %v1318 = vadd.f32 %v520, %v1286
      %v1319 = vadd.f32 %v523, %v1287
      %v1320 = vadd.f32 %v526, %v1288
      %v1321 = vadd.f32 %v529, %v1289
      %v1322 = vadd.f32 %v532, %v1290
      %v1323 = vadd.f32 %v535, %v1291
      %v1324 = vadd.f32 %v538, %v1292
      %v1325 = vadd.f32 %v541, %v1293
      %v1326 = vadd.f32 %v544, %v1294
      %v1327 = vadd.f32 %v547, %v1295
      %v1328 = vadd.f32 %v550, %v1296
      %v1329 = vadd.f32 %v553, %v1297
      %v1330 = vadd.f32 %v556, %v1298
      %v1331 = vadd.f32 %v559, %v1299
      %v1332 = vld [vmem:[%s3] sm:$0xff]
      %v1333 = vld [vmem:[%s3 + $0x8] sm:$0xff]
      %v1334 = vld [vmem:[%s3 + $0x10] sm:$0xff]
      %v1335 = vld [vmem:[%s3 + $0x18] sm:$0xff]
      %v1336 = vld [vmem:[%s4] sm:$0x1]
      %v1338 = vperm.slane %v1336, 0
      %vm1340 = vcmask 261120
      %v1342 = vsel %vm1340, %v1300, 0
      %v1345 = vsel %vm1340, %v1301, 0
      %v1348 = vsel %vm1340, %v1302, 0
      %v1351 = vsel %vm1340, %v1303, 0
      %v1354 = vsel %vm1340, %v1304, 0
      %v1357 = vsel %vm1340, %v1305, 0
      %v1360 = vsel %vm1340, %v1306, 0
      %v1363 = vsel %vm1340, %v1307, 0
      %v1366 = vsel %vm1340, %v1308, 0
      %v1369 = vsel %vm1340, %v1309, 0
      %v1372 = vsel %vm1340, %v1310, 0
      %v1375 = vsel %vm1340, %v1311, 0
      %v1378 = vsel %vm1340, %v1312, 0
      %v1381 = vsel %vm1340, %v1313, 0
      %v1384 = vsel %vm1340, %v1314, 0
      %v1387 = vsel %vm1340, %v1315, 0
      %v1390 = vsel %vm1340, %v1316, 0
      %v1393 = vsel %vm1340, %v1317, 0
      %v1396 = vsel %vm1340, %v1318, 0
      %v1399 = vsel %vm1340, %v1319, 0
      %v1402 = vsel %vm1340, %v1320, 0
      %v1405 = vsel %vm1340, %v1321, 0
      %v1408 = vsel %vm1340, %v1322, 0
      %v1411 = vsel %vm1340, %v1323, 0
      %v1414 = vsel %vm1340, %v1324, 0
      %v1417 = vsel %vm1340, %v1325, 0
      %v1420 = vsel %vm1340, %v1326, 0
      %v1423 = vsel %vm1340, %v1327, 0
      %v1426 = vsel %vm1340, %v1328, 0
      %v1429 = vsel %vm1340, %v1329, 0
      %v1432 = vsel %vm1340, %v1330, 0
      %v1435 = vsel %vm1340, %v1331, 0
      %1437 = vmatpush.msra.mxu0 0.0
      %1438 = vmatpush.msra.mxu0 0.0
      %1439 = vmatpush.msra.mxu0 0.0
      %1440 = vmatpush.msra.mxu0 0.0
      %1441 = vmatpush.msra.mxu0 0.0
      %1442 = vmatpush.msra.mxu0 0.0
      %1443 = vmatpush.msra.mxu0 0.0
      %1444 = vmatpush.msra.mxu0 0.0
      %1445 = vmatpush.msra.mxu0 0.0
      %1446 = vmatpush.msra.mxu0 0.0
      %1447 = vmatpush.msra.mxu0 0.0
      %1448 = vmatpush.msra.mxu0 0.0
      %1449 = vmatpush.msra.mxu0 %v1335
      %1450 = vmatpush.msra.mxu0 %v1334
      %1451 = vmatpush.msra.mxu0 %v1333
      %1452 = vmatpush.msra.mxu0 %v1332
      %1453 = vmatmul.f32.gmra.mxu0 %v1342
      %v1454 = vpop.f32.mrf.mxu0
      %v1455 = vadd.f32 %v1338, %v1454
      %1456 = vmatmul.f32.gmra.mxu0 %v1345
      %v1457 = vpop.f32.mrf.mxu0
      %v1458 = vadd.f32 %v1338, %v1457
      %1459 = vmatmul.f32.gmra.mxu0 %v1348
      %v1460 = vpop.f32.mrf.mxu0
      %v1461 = vadd.f32 %v1338, %v1460
      %1462 = vmatmul.f32.gmra.mxu0 %v1351
      %v1463 = vpop.f32.mrf.mxu0
      %v1464 = vadd.f32 %v1338, %v1463
      %1465 = vmatmul.f32.gmra.mxu0 %v1354
      %v1466 = vpop.f32.mrf.mxu0
      %v1467 = vadd.f32 %v1338, %v1466
      %1468 = vmatmul.f32.gmra.mxu0 %v1357
      %v1469 = vpop.f32.mrf.mxu0
      %v1470 = vadd.f32 %v1338, %v1469
      %1471 = vmatmul.f32.gmra.mxu0 %v1360
      %v1472 = vpop.f32.mrf.mxu0
      %v1473 = vadd.f32 %v1338, %v1472
      %1474 = vmatmul.f32.gmra.mxu0 %v1363
      %v1475 = vpop.f32.mrf.mxu0
      %v1476 = vadd.f32 %v1338, %v1475
      %1477 = vmatmul.f32.gmra.mxu0 %v1366
      %v1478 = vpop.f32.mrf.mxu0
      %v1479 = vadd.f32 %v1338, %v1478
      %1480 = vmatmul.f32.gmra.mxu0 %v1369
      %v1481 = vpop.f32.mrf.mxu0
      %v1482 = vadd.f32 %v1338, %v1481
      %1483 = vmatmul.f32.gmra.mxu0 %v1372
      %v1484 = vpop.f32.mrf.mxu0
      %v1485 = vadd.f32 %v1338, %v1484
      %1486 = vmatmul.f32.gmra.mxu0 %v1375
      %v1487 = vpop.f32.mrf.mxu0
      %v1488 = vadd.f32 %v1338, %v1487
      %1489 = vmatmul.f32.gmra.mxu0 %v1378
      %v1490 = vpop.f32.mrf.mxu0
      %v1491 = vadd.f32 %v1338, %v1490
      %1492 = vmatmul.f32.gmra.mxu0 %v1381
      %v1493 = vpop.f32.mrf.mxu0
      %v1494 = vadd.f32 %v1338, %v1493
      %1495 = vmatmul.f32.gmra.mxu0 %v1384
      %v1496 = vpop.f32.mrf.mxu0
      %v1497 = vadd.f32 %v1338, %v1496
      %1498 = vmatmul.f32.gmra.mxu0 %v1387
      %v1499 = vpop.f32.mrf.mxu0
      %v1500 = vadd.f32 %v1338, %v1499
      %1501 = vmatmul.f32.gmra.mxu0 %v1390
      %v1502 = vpop.f32.mrf.mxu0
      %v1503 = vadd.f32 %v1338, %v1502
      %1504 = vmatmul.f32.gmra.mxu0 %v1393
      %v1505 = vpop.f32.mrf.mxu0
      %v1506 = vadd.f32 %v1338, %v1505
      %1507 = vmatmul.f32.gmra.mxu0 %v1396
      %v1508 = vpop.f32.mrf.mxu0
      %v1509 = vadd.f32 %v1338, %v1508
      %1510 = vmatmul.f32.gmra.mxu0 %v1399
      %v1511 = vpop.f32.mrf.mxu0
      %v1512 = vadd.f32 %v1338, %v1511
      %1513 = vmatmul.f32.gmra.mxu0 %v1402
      %v1514 = vpop.f32.mrf.mxu0
      %v1515 = vadd.f32 %v1338, %v1514
      %1516 = vmatmul.f32.gmra.mxu0 %v1405
      %v1517 = vpop.f32.mrf.mxu0
      %v1518 = vadd.f32 %v1338, %v1517
      %1519 = vmatmul.f32.gmra.mxu0 %v1408
      %v1520 = vpop.f32.mrf.mxu0
      %v1521 = vadd.f32 %v1338, %v1520
      %1522 = vmatmul.f32.gmra.mxu0 %v1411
      %v1523 = vpop.f32.mrf.mxu0
      %v1524 = vadd.f32 %v1338, %v1523
      %1525 = vmatmul.f32.gmra.mxu0 %v1414
      %v1526 = vpop.f32.mrf.mxu0
      %v1527 = vadd.f32 %v1338, %v1526
      %1528 = vmatmul.f32.gmra.mxu0 %v1417
      %v1529 = vpop.f32.mrf.mxu0
      %v1530 = vadd.f32 %v1338, %v1529
      %1531 = vmatmul.f32.gmra.mxu0 %v1420
      %v1532 = vpop.f32.mrf.mxu0
      %v1533 = vadd.f32 %v1338, %v1532
      %1534 = vmatmul.f32.gmra.mxu0 %v1423
      %v1535 = vpop.f32.mrf.mxu0
      %v1536 = vadd.f32 %v1338, %v1535
      %1537 = vmatmul.f32.gmra.mxu0 %v1426
      %v1538 = vpop.f32.mrf.mxu0
      %v1539 = vadd.f32 %v1338, %v1538
      %1540 = vmatmul.f32.gmra.mxu0 %v1429
      %v1541 = vpop.f32.mrf.mxu0
      %v1542 = vadd.f32 %v1338, %v1541
      %1543 = vmatmul.f32.gmra.mxu0 %v1432
      %v1544 = vpop.f32.mrf.mxu0
      %v1545 = vadd.f32 %v1338, %v1544
      %1546 = vmatmul.f32.gmra.mxu0 %v1435
      %v1547 = vpop.f32.mrf.mxu0
      %v1548 = vadd.f32 %v1338, %v1547
      %1549 = vdwg.mxu0
      %v1550 = vmax.f32 %v1455, 0.0
      %v1551 = vmax.f32 %v1458, 0.0
      %v1552 = vmax.f32 %v1461, 0.0
      %v1553 = vmax.f32 %v1464, 0.0
      %v1554 = vmax.f32 %v1467, 0.0
      %v1555 = vmax.f32 %v1470, 0.0
      %v1556 = vmax.f32 %v1473, 0.0
      %v1557 = vmax.f32 %v1476, 0.0
      %v1558 = vmax.f32 %v1479, 0.0
      %v1559 = vmax.f32 %v1482, 0.0
      %v1560 = vmax.f32 %v1485, 0.0
      %v1561 = vmax.f32 %v1488, 0.0
      %v1562 = vmax.f32 %v1491, 0.0
      %v1563 = vmax.f32 %v1494, 0.0
      %v1564 = vmax.f32 %v1497, 0.0
      %v1565 = vmax.f32 %v1500, 0.0
      %v1566 = vmax.f32 %v1503, 0.0
      %v1567 = vmax.f32 %v1506, 0.0
      %v1568 = vmax.f32 %v1509, 0.0
      %v1569 = vmax.f32 %v1512, 0.0
      %v1570 = vmax.f32 %v1515, 0.0
      %v1571 = vmax.f32 %v1518, 0.0
      %v1572 = vmax.f32 %v1521, 0.0
      %v1573 = vmax.f32 %v1524, 0.0
      %v1574 = vmax.f32 %v1527, 0.0
      %v1575 = vmax.f32 %v1530, 0.0
      %v1576 = vmax.f32 %v1533, 0.0
      %v1577 = vmax.f32 %v1536, 0.0
      %v1578 = vmax.f32 %v1539, 0.0
      %v1579 = vmax.f32 %v1542, 0.0
      %v1580 = vmax.f32 %v1545, 0.0
      %v1581 = vmax.f32 %v1548, 0.0
      %v1582 = vld [vmem:[%s5] sm:$0xff]
      %v1583 = vld [vmem:[%s5 + $0x8] sm:$0xff]
      %v1584 = vld [vmem:[%s5 + $0x10] sm:$0xff]
      %v1585 = vld [vmem:[%s5 + $0x18] sm:$0xff]
      %v1586 = vld [vmem:[%s6] sm:$0x1]
      %v1588 = vperm.slane %v1586, 0
      %v1591 = vsel %vm1340, %v1550, 0
      %v1594 = vsel %vm1340, %v1551, 0
      %v1597 = vsel %vm1340, %v1552, 0
      %v1600 = vsel %vm1340, %v1553, 0
      %v1603 = vsel %vm1340, %v1554, 0
      %v1606 = vsel %vm1340, %v1555, 0
      %v1609 = vsel %vm1340, %v1556, 0
      %v1612 = vsel %vm1340, %v1557, 0
      %v1615 = vsel %vm1340, %v1558, 0
      %v1618 = vsel %vm1340, %v1559, 0
      %v1621 = vsel %vm1340, %v1560, 0
      %v1624 = vsel %vm1340, %v1561, 0
      %v1627 = vsel %vm1340, %v1562, 0
      %v1630 = vsel %vm1340, %v1563, 0
      %v1633 = vsel %vm1340, %v1564, 0
      %v1636 = vsel %vm1340, %v1565, 0
      %v1639 = vsel %vm1340, %v1566, 0
      %v1642 = vsel %vm1340, %v1567, 0
      %v1645 = vsel %vm1340, %v1568, 0
      %v1648 = vsel %vm1340, %v1569, 0
      %v1651 = vsel %vm1340, %v1570, 0
      %v1654 = vsel %vm1340, %v1571, 0
      %v1657 = vsel %vm1340, %v1572, 0
      %v1660 = vsel %vm1340, %v1573, 0
      %v1663 = vsel %vm1340, %v1574, 0
      %v1666 = vsel %vm1340, %v1575, 0
      %v1669 = vsel %vm1340, %v1576, 0
      %v1672 = vsel %vm1340, %v1577, 0
      %v1675 = vsel %vm1340, %v1578, 0
      %v1678 = vsel %vm1340, %v1579, 0
      %v1681 = vsel %vm1340, %v1580, 0
      %v1684 = vsel %vm1340, %v1581, 0
      %1686 = vmatpush.msra.mxu0 0.0
      %1687 = vmatpush.msra.mxu0 0.0
      %1688 = vmatpush.msra.mxu0 0.0
      %1689 = vmatpush.msra.mxu0 0.0
      %1690 = vmatpush.msra.mxu0 0.0
      %1691 = vmatpush.msra.mxu0 0.0
      %1692 = vmatpush.msra.mxu0 0.0
      %1693 = vmatpush.msra.mxu0 0.0
      %1694 = vmatpush.msra.mxu0 0.0
      %1695 = vmatpush.msra.mxu0 0.0
      %1696 = vmatpush.msra.mxu0 0.0
      %1697 = vmatpush.msra.mxu0 0.0
      %1698 = vmatpush.msra.mxu0 %v1585
      %1699 = vmatpush.msra.mxu0 %v1584
      %1700 = vmatpush.msra.mxu0 %v1583
      %1701 = vmatpush.msra.mxu0 %v1582
      %1702 = vmatmul.f32.gmra.mxu0 %v1591
      %v1703 = vpop.f32.mrf.mxu0
      %v1704 = vadd.f32 %v1588, %v1703
      %1705 = vmatmul.f32.gmra.mxu0 %v1594
      %v1706 = vpop.f32.mrf.mxu0
      %v1707 = vadd.f32 %v1588, %v1706
      %1708 = vmatmul.f32.gmra.mxu0 %v1597
      %v1709 = vpop.f32.mrf.mxu0
      %v1710 = vadd.f32 %v1588, %v1709
      %1711 = vmatmul.f32.gmra.mxu0 %v1600
      %v1712 = vpop.f32.mrf.mxu0
      %v1713 = vadd.f32 %v1588, %v1712
      %1714 = vmatmul.f32.gmra.mxu0 %v1603
      %v1715 = vpop.f32.mrf.mxu0
      %v1716 = vadd.f32 %v1588, %v1715
      %1717 = vmatmul.f32.gmra.mxu0 %v1606
      %v1718 = vpop.f32.mrf.mxu0
      %v1719 = vadd.f32 %v1588, %v1718
      %1720 = vmatmul.f32.gmra.mxu0 %v1609
      %v1721 = vpop.f32.mrf.mxu0
      %v1722 = vadd.f32 %v1588, %v1721
      %1723 = vmatmul.f32.gmra.mxu0 %v1612
      %v1724 = vpop.f32.mrf.mxu0
      %v1725 = vadd.f32 %v1588, %v1724
      %1726 = vmatmul.f32.gmra.mxu0 %v1615
      %v1727 = vpop.f32.mrf.mxu0
      %v1728 = vadd.f32 %v1588, %v1727
      %1729 = vmatmul.f32.gmra.mxu0 %v1618
      %v1730 = vpop.f32.mrf.mxu0
      %v1731 = vadd.f32 %v1588, %v1730
      %1732 = vmatmul.f32.gmra.mxu0 %v1621
      %v1733 = vpop.f32.mrf.mxu0
      %v1734 = vadd.f32 %v1588, %v1733
      %1735 = vmatmul.f32.gmra.mxu0 %v1624
      %v1736 = vpop.f32.mrf.mxu0
      %v1737 = vadd.f32 %v1588, %v1736
      %1738 = vmatmul.f32.gmra.mxu0 %v1627
      %v1739 = vpop.f32.mrf.mxu0
      %v1740 = vadd.f32 %v1588, %v1739
      %1741 = vmatmul.f32.gmra.mxu0 %v1630
      %v1742 = vpop.f32.mrf.mxu0
      %v1743 = vadd.f32 %v1588, %v1742
      %1744 = vmatmul.f32.gmra.mxu0 %v1633
      %v1745 = vpop.f32.mrf.mxu0
      %v1746 = vadd.f32 %v1588, %v1745
      %1747 = vmatmul.f32.gmra.mxu0 %v1636
      %v1748 = vpop.f32.mrf.mxu0
      %v1749 = vadd.f32 %v1588, %v1748
      %1750 = vmatmul.f32.gmra.mxu0 %v1639
      %v1751 = vpop.f32.mrf.mxu0
      %v1752 = vadd.f32 %v1588, %v1751
      %1753 = vmatmul.f32.gmra.mxu0 %v1642
      %v1754 = vpop.f32.mrf.mxu0
      %v1755 = vadd.f32 %v1588, %v1754
      %1756 = vmatmul.f32.gmra.mxu0 %v1645
      %v1757 = vpop.f32.mrf.mxu0
      %v1758 = vadd.f32 %v1588, %v1757
      %1759 = vmatmul.f32.gmra.mxu0 %v1648
      %v1760 = vpop.f32.mrf.mxu0
      %v1761 = vadd.f32 %v1588, %v1760
      %1762 = vmatmul.f32.gmra.mxu0 %v1651
      %v1763 = vpop.f32.mrf.mxu0
      %v1764 = vadd.f32 %v1588, %v1763
      %1765 = vmatmul.f32.gmra.mxu0 %v1654
      %v1766 = vpop.f32.mrf.mxu0
      %v1767 = vadd.f32 %v1588, %v1766
      %1768 = vmatmul.f32.gmra.mxu0 %v1657
      %v1769 = vpop.f32.mrf.mxu0
      %v1770 = vadd.f32 %v1588, %v1769
      %1771 = vmatmul.f32.gmra.mxu0 %v1660
      %v1772 = vpop.f32.mrf.mxu0
      %v1773 = vadd.f32 %v1588, %v1772
      %1774 = vmatmul.f32.gmra.mxu0 %v1663
      %v1775 = vpop.f32.mrf.mxu0
      %v1776 = vadd.f32 %v1588, %v1775
      %1777 = vmatmul.f32.gmra.mxu0 %v1666
      %v1778 = vpop.f32.mrf.mxu0
      %v1779 = vadd.f32 %v1588, %v1778
      %1780 = vmatmul.f32.gmra.mxu0 %v1669
      %v1781 = vpop.f32.mrf.mxu0
      %v1782 = vadd.f32 %v1588, %v1781
      %1783 = vmatmul.f32.gmra.mxu0 %v1672
      %v1784 = vpop.f32.mrf.mxu0
      %v1785 = vadd.f32 %v1588, %v1784
      %1786 = vmatmul.f32.gmra.mxu0 %v1675
      %v1787 = vpop.f32.mrf.mxu0
      %v1788 = vadd.f32 %v1588, %v1787
      %1789 = vmatmul.f32.gmra.mxu0 %v1678
      %v1790 = vpop.f32.mrf.mxu0
      %v1791 = vadd.f32 %v1588, %v1790
      %1792 = vmatmul.f32.gmra.mxu0 %v1681
      %v1793 = vpop.f32.mrf.mxu0
      %v1794 = vadd.f32 %v1588, %v1793
      %1795 = vmatmul.f32.gmra.mxu0 %v1684
      %v1796 = vpop.f32.mrf.mxu0
      %v1797 = vadd.f32 %v1588, %v1796
      %1798 = vdwg.mxu0
      %v1799 = vmax.f32 %v1704, 0.0
      %v1800 = vmax.f32 %v1707, 0.0
      %v1801 = vmax.f32 %v1710, 0.0
      %v1802 = vmax.f32 %v1713, 0.0
      %v1803 = vmax.f32 %v1716, 0.0
      %v1804 = vmax.f32 %v1719, 0.0
      %v1805 = vmax.f32 %v1722, 0.0
      %v1806 = vmax.f32 %v1725, 0.0
      %v1807 = vmax.f32 %v1728, 0.0
      %v1808 = vmax.f32 %v1731, 0.0
      %v1809 = vmax.f32 %v1734, 0.0
      %v1810 = vmax.f32 %v1737, 0.0
      %v1811 = vmax.f32 %v1740, 0.0
      %v1812 = vmax.f32 %v1743, 0.0
      %v1813 = vmax.f32 %v1746, 0.0
      %v1814 = vmax.f32 %v1749, 0.0
      %v1815 = vmax.f32 %v1752, 0.0
      %v1816 = vmax.f32 %v1755, 0.0
      %v1817 = vmax.f32 %v1758, 0.0
      %v1818 = vmax.f32 %v1761, 0.0
      %v1819 = vmax.f32 %v1764, 0.0
      %v1820 = vmax.f32 %v1767, 0.0
      %v1821 = vmax.f32 %v1770, 0.0
      %v1822 = vmax.f32 %v1773, 0.0
      %v1823 = vmax.f32 %v1776, 0.0
      %v1824 = vmax.f32 %v1779, 0.0
      %v1825 = vmax.f32 %v1782, 0.0
      %v1826 = vmax.f32 %v1785, 0.0
      %v1827 = vmax.f32 %v1788, 0.0
      %v1828 = vmax.f32 %v1791, 0.0
      %v1829 = vmax.f32 %v1794, 0.0
      %v1830 = vmax.f32 %v1797, 0.0
      %v1831 = vrot.slane %v1799, 7
      %v1832 = vrot.slane %v1800, 7
      %v1833 = vrot.slane %v1801, 7
      %v1834 = vrot.slane %v1802, 7
      %v1835 = vrot.slane %v1803, 7
      %v1836 = vrot.slane %v1804, 7
      %v1837 = vrot.slane %v1805, 7
      %v1838 = vrot.slane %v1806, 7
      %v1839 = vrot.slane %v1807, 7
      %v1840 = vrot.slane %v1808, 7
      %v1841 = vrot.slane %v1809, 7
      %v1842 = vrot.slane %v1810, 7
      %v1843 = vrot.slane %v1811, 7
      %v1844 = vrot.slane %v1812, 7
      %v1845 = vrot.slane %v1813, 7
      %v1846 = vrot.slane %v1814, 7
      %v1847 = vrot.slane %v1815, 7
      %v1848 = vrot.slane %v1816, 7
      %v1849 = vrot.slane %v1817, 7
      %v1850 = vrot.slane %v1818, 7
      %v1851 = vrot.slane %v1819, 7
      %v1852 = vrot.slane %v1820, 7
      %v1853 = vrot.slane %v1821, 7
      %v1854 = vrot.slane %v1822, 7
      %v1855 = vrot.slane %v1823, 7
      %v1856 = vrot.slane %v1824, 7
      %v1857 = vrot.slane %v1825, 7
      %v1858 = vrot.slane %v1826, 7
      %v1859 = vrot.slane %v1827, 7
      %v1860 = vrot.slane %v1828, 7
      %v1861 = vrot.slane %v1829, 7
      %v1862 = vrot.slane %v1830, 7
      %v1863 = vsel %vm1106, %v1861, %v1862
      %v1864 = vsel %vm1106, %v1860, %v1861
      %v1865 = vsel %vm1106, %v1859, %v1860
      %v1866 = vsel %vm1106, %v1858, %v1859
      %v1867 = vsel %vm1106, %v1857, %v1858
      %v1868 = vsel %vm1106, %v1856, %v1857
      %v1869 = vsel %vm1106, %v1855, %v1856
      %v1870 = vsel %vm1106, %v1854, %v1855
      %v1871 = vsel %vm1106, %v1853, %v1854
      %v1872 = vsel %vm1106, %v1852, %v1853
      %v1873 = vsel %vm1106, %v1851, %v1852
      %v1874 = vsel %vm1106, %v1850, %v1851
      %v1875 = vsel %vm1106, %v1849, %v1850
      %v1876 = vsel %vm1106, %v1848, %v1849
      %v1877 = vsel %vm1106, %v1847, %v1848
      %v1878 = vsel %vm1106, %v1846, %v1847
      %v1879 = vsel %vm1106, %v1845, %v1846
      %v1880 = vsel %vm1106, %v1844, %v1845
      %v1881 = vsel %vm1106, %v1843, %v1844
      %v1882 = vsel %vm1106, %v1842, %v1843
      %v1883 = vsel %vm1106, %v1841, %v1842
      %v1884 = vsel %vm1106, %v1840, %v1841
      %v1885 = vsel %vm1106, %v1839, %v1840
      %v1886 = vsel %vm1106, %v1838, %v1839
      %v1887 = vsel %vm1106, %v1837, %v1838
      %v1888 = vsel %vm1106, %v1836, %v1837
      %v1889 = vsel %vm1106, %v1835, %v1836
      %v1890 = vsel %vm1106, %v1834, %v1835
      %v1891 = vsel %vm1106, %v1833, %v1834
      %v1892 = vsel %vm1106, %v1832, %v1833
      %v1893 = vsel %vm1106, %v1831, %v1832
      %v1894 = vsel %vm1106, %v1862, %v1831
      %v1895 = vrot.slane %v1799, 1
      %v1896 = vrot.slane %v1800, 1
      %v1897 = vrot.slane %v1801, 1
      %v1898 = vrot.slane %v1802, 1
      %v1899 = vrot.slane %v1803, 1
      %v1900 = vrot.slane %v1804, 1
      %v1901 = vrot.slane %v1805, 1
      %v1902 = vrot.slane %v1806, 1
      %v1903 = vrot.slane %v1807, 1
      %v1904 = vrot.slane %v1808, 1
      %v1905 = vrot.slane %v1809, 1
      %v1906 = vrot.slane %v1810, 1
      %v1907 = vrot.slane %v1811, 1
      %v1908 = vrot.slane %v1812, 1
      %v1909 = vrot.slane %v1813, 1
      %v1910 = vrot.slane %v1814, 1
      %v1911 = vrot.slane %v1815, 1
      %v1912 = vrot.slane %v1816, 1
      %v1913 = vrot.slane %v1817, 1
      %v1914 = vrot.slane %v1818, 1
      %v1915 = vrot.slane %v1819, 1
      %v1916 = vrot.slane %v1820, 1
      %v1917 = vrot.slane %v1821, 1
      %v1918 = vrot.slane %v1822, 1
      %v1919 = vrot.slane %v1823, 1
      %v1920 = vrot.slane %v1824, 1
      %v1921 = vrot.slane %v1825, 1
      %v1922 = vrot.slane %v1826, 1
      %v1923 = vrot.slane %v1827, 1
      %v1924 = vrot.slane %v1828, 1
      %v1925 = vrot.slane %v1829, 1
      %v1926 = vrot.slane %v1830, 1
      %v1927 = vsel %vm1171, %v1925, %v1926
      %v1928 = vsel %vm1171, %v1924, %v1925
      %v1929 = vsel %vm1171, %v1923, %v1924
      %v1930 = vsel %vm1171, %v1922, %v1923
      %v1931 = vsel %vm1171, %v1921, %v1922
      %v1932 = vsel %vm1171, %v1920, %v1921
      %v1933 = vsel %vm1171, %v1919, %v1920
      %v1934 = vsel %vm1171, %v1918, %v1919
      %v1935 = vsel %vm1171, %v1917, %v1918
      %v1936 = vsel %vm1171, %v1916, %v1917
      %v1937 = vsel %vm1171, %v1915, %v1916
      %v1938 = vsel %vm1171, %v1914, %v1915
      %v1939 = vsel %vm1171, %v1913, %v1914
      %v1940 = vsel %vm1171, %v1912, %v1913
      %v1941 = vsel %vm1171, %v1911, %v1912
      %v1942 = vsel %vm1171, %v1910, %v1911
      %v1943 = vsel %vm1171, %v1909, %v1910
      %v1944 = vsel %vm1171, %v1908, %v1909
      %v1945 = vsel %vm1171, %v1907, %v1908
      %v1946 = vsel %vm1171, %v1906, %v1907
      %v1947 = vsel %vm1171, %v1905, %v1906
      %v1948 = vsel %vm1171, %v1904, %v1905
      %v1949 = vsel %vm1171, %v1903, %v1904
      %v1950 = vsel %vm1171, %v1902, %v1903
      %v1951 = vsel %vm1171, %v1901, %v1902
      %v1952 = vsel %vm1171, %v1900, %v1901
      %v1953 = vsel %vm1171, %v1899, %v1900
      %v1954 = vsel %vm1171, %v1898, %v1899
      %v1955 = vsel %vm1171, %v1897, %v1898
      %v1956 = vsel %vm1171, %v1896, %v1897
      %v1957 = vsel %vm1171, %v1895, %v1896
      %v1958 = vsel %vm1171, %v1926, %v1895
      %v1959 = vsel %vm1010, 0.0, %v1894
      %v1960 = vsel %vm1011, 0.0, %v1893
      %v1961 = vsel %vm1012, 0.0, %v1892
      %v1962 = vsel %vm1013, 0.0, %v1891
      %v1963 = vsel %vm1014, 0.0, %v1890
      %v1964 = vsel %vm1015, 0.0, %v1889
      %v1965 = vsel %vm1016, 0.0, %v1888
      %v1966 = vsel %vm1017, 0.0, %v1887
      %v1967 = vsel %vm1018, 0.0, %v1886
      %v1968 = vsel %vm1019, 0.0, %v1885
      %v1969 = vsel %vm1020, 0.0, %v1884
      %v1970 = vsel %vm1021, 0.0, %v1883
      %v1971 = vsel %vm1022, 0.0, %v1882
      %v1972 = vsel %vm1023, 0.0, %v1881
      %v1973 = vsel %vm1024, 0.0, %v1880
      %v1974 = vsel %vm1025, 0.0, %v1879
      %v1975 = vsel %vm1026, 0.0, %v1878
      %v1976 = vsel %vm1027, 0.0, %v1877
      %v1977 = vsel %vm1028, 0.0, %v1876
      %v1978 = vsel %vm1029, 0.0, %v1875
      %v1979 = vsel %vm1030, 0.0, %v1874
      %v1980 = vsel %vm1031, 0.0, %v1873
      %v1981 = vsel %vm1032, 0.0, %v1872
      %v1982 = vsel %vm1033, 0.0, %v1871
      %v1983 = vsel %vm1034, 0.0, %v1870
      %v1984 = vsel %vm1035, 0.0, %v1869
      %v1985 = vsel %vm1036, 0.0, %v1868
      %v1986 = vsel %vm1037, 0.0, %v1867
      %v1987 = vsel %vm1038, 0.0, %v1866
      %v1988 = vsel %vm1039, 0.0, %v1865
      %v1989 = vsel %vm1040, 0.0, %v1864
      %v1990 = vsel %vm1041, 0.0, %v1863
      %v1991 = vsel %vm1042, 0.0, %v1957
      %v1992 = vsel %vm1043, 0.0, %v1956
      %v1993 = vsel %vm1044, 0.0, %v1955
      %v1994 = vsel %vm1045, 0.0, %v1954
      %v1995 = vsel %vm1046, 0.0, %v1953
      %v1996 = vsel %vm1047, 0.0, %v1952
      %v1997 = vsel %vm1048, 0.0, %v1951
      %v1998 = vsel %vm1049, 0.0, %v1950
      %v1999 = vsel %vm1050, 0.0, %v1949
      %v2000 = vsel %vm1051, 0.0, %v1948
      %v2001 = vsel %vm1052, 0.0, %v1947
      %v2002 = vsel %vm1053, 0.0, %v1946
      %v2003 = vsel %vm1054, 0.0, %v1945
      %v2004 = vsel %vm1055, 0.0, %v1944
      %v2005 = vsel %vm1056, 0.0, %v1943
      %v2006 = vsel %vm1057, 0.0, %v1942
      %v2007 = vsel %vm1058, 0.0, %v1941
      %v2008 = vsel %vm1059, 0.0, %v1940
      %v2009 = vsel %vm1060, 0.0, %v1939
      %v2010 = vsel %vm1061, 0.0, %v1938
      %v2011 = vsel %vm1062, 0.0, %v1937
      %v2012 = vsel %vm1063, 0.0, %v1936
      %v2013 = vsel %vm1064, 0.0, %v1935
      %v2014 = vsel %vm1065, 0.0, %v1934
      %v2015 = vsel %vm1066, 0.0, %v1933
      %v2016 = vsel %vm1067, 0.0, %v1932
      %v2017 = vsel %vm1068, 0.0, %v1931
      %v2018 = vsel %vm1069, 0.0, %v1930
      %v2019 = vsel %vm1070, 0.0, %v1929
      %v2020 = vsel %vm1071, 0.0, %v1928
      %v2021 = vsel %vm1072, 0.0, %v1927
      %v2022 = vsel %vm1073, 0.0, %v1958
      %v2023 = vadd.f32 %v1959, %v1991
      %v2024 = vadd.f32 %v1960, %v1992
      %v2025 = vadd.f32 %v1961, %v1993
      %v2026 = vadd.f32 %v1962, %v1994
      %v2027 = vadd.f32 %v1963, %v1995
      %v2028 = vadd.f32 %v1964, %v1996
      %v2029 = vadd.f32 %v1965, %v1997
      %v2030 = vadd.f32 %v1966, %v1998
      %v2031 = vadd.f32 %v1967, %v1999
      %v2032 = vadd.f32 %v1968, %v2000
      %v2033 = vadd.f32 %v1969, %v2001
      %v2034 = vadd.f32 %v1970, %v2002
      %v2035 = vadd.f32 %v1971, %v2003
      %v2036 = vadd.f32 %v1972, %v2004
      %v2037 = vadd.f32 %v1973, %v2005
      %v2038 = vadd.f32 %v1974, %v2006
      %v2039 = vadd.f32 %v1975, %v2007
      %v2040 = vadd.f32 %v1976, %v2008
      %v2041 = vadd.f32 %v1977, %v2009
      %v2042 = vadd.f32 %v1978, %v2010
      %v2043 = vadd.f32 %v1979, %v2011
      %v2044 = vadd.f32 %v1980, %v2012
      %v2045 = vadd.f32 %v1981, %v2013
      %v2046 = vadd.f32 %v1982, %v2014
      %v2047 = vadd.f32 %v1983, %v2015
      %v2048 = vadd.f32 %v1984, %v2016
      %v2049 = vadd.f32 %v1985, %v2017
      %v2050 = vadd.f32 %v1986, %v2018
      %v2051 = vadd.f32 %v1987, %v2019
      %v2052 = vadd.f32 %v1988, %v2020
      %v2053 = vadd.f32 %v1989, %v2021
      %v2054 = vadd.f32 %v1990, %v2022
      %v2055 = vadd.f32 %v1799, %v2023
      %v2056 = vadd.f32 %v1800, %v2024
      %v2057 = vadd.f32 %v1801, %v2025
      %v2058 = vadd.f32 %v1802, %v2026
      %v2059 = vadd.f32 %v1803, %v2027
      %v2060 = vadd.f32 %v1804, %v2028
      %v2061 = vadd.f32 %v1805, %v2029
      %v2062 = vadd.f32 %v1806, %v2030
      %v2063 = vadd.f32 %v1807, %v2031
      %v2064 = vadd.f32 %v1808, %v2032
      %v2065 = vadd.f32 %v1809, %v2033
      %v2066 = vadd.f32 %v1810, %v2034
      %v2067 = vadd.f32 %v1811, %v2035
      %v2068 = vadd.f32 %v1812, %v2036
      %v2069 = vadd.f32 %v1813, %v2037
      %v2070 = vadd.f32 %v1814, %v2038
      %v2071 = vadd.f32 %v1815, %v2039
      %v2072 = vadd.f32 %v1816, %v2040
      %v2073 = vadd.f32 %v1817, %v2041
      %v2074 = vadd.f32 %v1818, %v2042
      %v2075 = vadd.f32 %v1819, %v2043
      %v2076 = vadd.f32 %v1820, %v2044
      %v2077 = vadd.f32 %v1821, %v2045
      %v2078 = vadd.f32 %v1822, %v2046
      %v2079 = vadd.f32 %v1823, %v2047
      %v2080 = vadd.f32 %v1824, %v2048
      %v2081 = vadd.f32 %v1825, %v2049
      %v2082 = vadd.f32 %v1826, %v2050
      %v2083 = vadd.f32 %v1827, %v2051
      %v2084 = vadd.f32 %v1828, %v2052
      %v2085 = vadd.f32 %v1829, %v2053
      %v2086 = vadd.f32 %v1830, %v2054
      %s2087 = scalar_lea.vmem %s3, 32
      %v2088 = vld [vmem:[%s2087] sm:$0xff]
      %v2089 = vld [vmem:[%s2087 + $0x8] sm:$0xff]
      %v2090 = vld [vmem:[%s2087 + $0x10] sm:$0xff]
      %v2091 = vld [vmem:[%s2087 + $0x18] sm:$0xff]
      %s2092 = scalar_lea.vmem %s4, 1
      %v2093 = vld [vmem:[%s2092] sm:$0x1]
      %v2095 = vperm.slane %v2093, 0
      %v2098 = vsel %vm1340, %v2055, 0
      %v2101 = vsel %vm1340, %v2056, 0
      %v2104 = vsel %vm1340, %v2057, 0
      %v2107 = vsel %vm1340, %v2058, 0
      %v2110 = vsel %vm1340, %v2059, 0
      %v2113 = vsel %vm1340, %v2060, 0
      %v2116 = vsel %vm1340, %v2061, 0
      %v2119 = vsel %vm1340, %v2062, 0
      %v2122 = vsel %vm1340, %v2063, 0
      %v2125 = vsel %vm1340, %v2064, 0
      %v2128 = vsel %vm1340, %v2065, 0
      %v2131 = vsel %vm1340, %v2066, 0
      %v2134 = vsel %vm1340, %v2067, 0
      %v2137 = vsel %vm1340, %v2068, 0
      %v2140 = vsel %vm1340, %v2069, 0
      %v2143 = vsel %vm1340, %v2070, 0
      %v2146 = vsel %vm1340, %v2071, 0
      %v2149 = vsel %vm1340, %v2072, 0
      %v2152 = vsel %vm1340, %v2073, 0
      %v2155 = vsel %vm1340, %v2074, 0
      %v2158 = vsel %vm1340, %v2075, 0
      %v2161 = vsel %vm1340, %v2076, 0
      %v2164 = vsel %vm1340, %v2077, 0
      %v2167 = vsel %vm1340, %v2078, 0
      %v2170 = vsel %vm1340, %v2079, 0
      %v2173 = vsel %vm1340, %v2080, 0
      %v2176 = vsel %vm1340, %v2081, 0
      %v2179 = vsel %vm1340, %v2082, 0
      %v2182 = vsel %vm1340, %v2083, 0
      %v2185 = vsel %vm1340, %v2084, 0
      %v2188 = vsel %vm1340, %v2085, 0
      %v2191 = vsel %vm1340, %v2086, 0
      %2193 = vmatpush.msra.mxu0 0.0
      %2194 = vmatpush.msra.mxu0 0.0
      %2195 = vmatpush.msra.mxu0 0.0
      %2196 = vmatpush.msra.mxu0 0.0
      %2197 = vmatpush.msra.mxu0 0.0
      %2198 = vmatpush.msra.mxu0 0.0
      %2199 = vmatpush.msra.mxu0 0.0
      %2200 = vmatpush.msra.mxu0 0.0
      %2201 = vmatpush.msra.mxu0 0.0
      %2202 = vmatpush.msra.mxu0 0.0
      %2203 = vmatpush.msra.mxu0 0.0
      %2204 = vmatpush.msra.mxu0 0.0
      %2205 = vmatpush.msra.mxu0 %v2091
      %2206 = vmatpush.msra.mxu0 %v2090
      %2207 = vmatpush.msra.mxu0 %v2089
      %2208 = vmatpush.msra.mxu0 %v2088
      %2209 = vmatmul.f32.gmra.mxu0 %v2098
      %v2210 = vpop.f32.mrf.mxu0
      %v2211 = vadd.f32 %v2095, %v2210
      %2212 = vmatmul.f32.gmra.mxu0 %v2101
      %v2213 = vpop.f32.mrf.mxu0
      %v2214 = vadd.f32 %v2095, %v2213
      %2215 = vmatmul.f32.gmra.mxu0 %v2104
      %v2216 = vpop.f32.mrf.mxu0
      %v2217 = vadd.f32 %v2095, %v2216
      %2218 = vmatmul.f32.gmra.mxu0 %v2107
      %v2219 = vpop.f32.mrf.mxu0
      %v2220 = vadd.f32 %v2095, %v2219
      %2221 = vmatmul.f32.gmra.mxu0 %v2110
      %v2222 = vpop.f32.mrf.mxu0
      %v2223 = vadd.f32 %v2095, %v2222
      %2224 = vmatmul.f32.gmra.mxu0 %v2113
      %v2225 = vpop.f32.mrf.mxu0
      %v2226 = vadd.f32 %v2095, %v2225
      %2227 = vmatmul.f32.gmra.mxu0 %v2116
      %v2228 = vpop.f32.mrf.mxu0
      %v2229 = vadd.f32 %v2095, %v2228
      %2230 = vmatmul.f32.gmra.mxu0 %v2119
      %v2231 = vpop.f32.mrf.mxu0
      %v2232 = vadd.f32 %v2095, %v2231
      %2233 = vmatmul.f32.gmra.mxu0 %v2122
      %v2234 = vpop.f32.mrf.mxu0
      %v2235 = vadd.f32 %v2095, %v2234
      %2236 = vmatmul.f32.gmra.mxu0 %v2125
      %v2237 = vpop.f32.mrf.mxu0
      %v2238 = vadd.f32 %v2095, %v2237
      %2239 = vmatmul.f32.gmra.mxu0 %v2128
      %v2240 = vpop.f32.mrf.mxu0
      %v2241 = vadd.f32 %v2095, %v2240
      %2242 = vmatmul.f32.gmra.mxu0 %v2131
      %v2243 = vpop.f32.mrf.mxu0
      %v2244 = vadd.f32 %v2095, %v2243
      %2245 = vmatmul.f32.gmra.mxu0 %v2134
      %v2246 = vpop.f32.mrf.mxu0
      %v2247 = vadd.f32 %v2095, %v2246
      %2248 = vmatmul.f32.gmra.mxu0 %v2137
      %v2249 = vpop.f32.mrf.mxu0
      %v2250 = vadd.f32 %v2095, %v2249
      %2251 = vmatmul.f32.gmra.mxu0 %v2140
      %v2252 = vpop.f32.mrf.mxu0
      %v2253 = vadd.f32 %v2095, %v2252
      %2254 = vmatmul.f32.gmra.mxu0 %v2143
      %v2255 = vpop.f32.mrf.mxu0
      %v2256 = vadd.f32 %v2095, %v2255
      %2257 = vmatmul.f32.gmra.mxu0 %v2146
      %v2258 = vpop.f32.mrf.mxu0
      %v2259 = vadd.f32 %v2095, %v2258
      %2260 = vmatmul.f32.gmra.mxu0 %v2149
      %v2261 = vpop.f32.mrf.mxu0
      %v2262 = vadd.f32 %v2095, %v2261
      %2263 = vmatmul.f32.gmra.mxu0 %v2152
      %v2264 = vpop.f32.mrf.mxu0
      %v2265 = vadd.f32 %v2095, %v2264
      %2266 = vmatmul.f32.gmra.mxu0 %v2155
      %v2267 = vpop.f32.mrf.mxu0
      %v2268 = vadd.f32 %v2095, %v2267
      %2269 = vmatmul.f32.gmra.mxu0 %v2158
      %v2270 = vpop.f32.mrf.mxu0
      %v2271 = vadd.f32 %v2095, %v2270
      %2272 = vmatmul.f32.gmra.mxu0 %v2161
      %v2273 = vpop.f32.mrf.mxu0
      %v2274 = vadd.f32 %v2095, %v2273
      %2275 = vmatmul.f32.gmra.mxu0 %v2164
      %v2276 = vpop.f32.mrf.mxu0
      %v2277 = vadd.f32 %v2095, %v2276
      %2278 = vmatmul.f32.gmra.mxu0 %v2167
      %v2279 = vpop.f32.mrf.mxu0
      %v2280 = vadd.f32 %v2095, %v2279
      %2281 = vmatmul.f32.gmra.mxu0 %v2170
      %v2282 = vpop.f32.mrf.mxu0
      %v2283 = vadd.f32 %v2095, %v2282
      %2284 = vmatmul.f32.gmra.mxu0 %v2173
      %v2285 = vpop.f32.mrf.mxu0
      %v2286 = vadd.f32 %v2095, %v2285
      %2287 = vmatmul.f32.gmra.mxu0 %v2176
      %v2288 = vpop.f32.mrf.mxu0
      %v2289 = vadd.f32 %v2095, %v2288
      %2290 = vmatmul.f32.gmra.mxu0 %v2179
      %v2291 = vpop.f32.mrf.mxu0
      %v2292 = vadd.f32 %v2095, %v2291
      %2293 = vmatmul.f32.gmra.mxu0 %v2182
      %v2294 = vpop.f32.mrf.mxu0
      %v2295 = vadd.f32 %v2095, %v2294
      %2296 = vmatmul.f32.gmra.mxu0 %v2185
      %v2297 = vpop.f32.mrf.mxu0
      %v2298 = vadd.f32 %v2095, %v2297
      %2299 = vmatmul.f32.gmra.mxu0 %v2188
      %v2300 = vpop.f32.mrf.mxu0
      %v2301 = vadd.f32 %v2095, %v2300
      %2302 = vmatmul.f32.gmra.mxu0 %v2191
      %v2303 = vpop.f32.mrf.mxu0
      %v2304 = vadd.f32 %v2095, %v2303
      %2305 = vdwg.mxu0
      %v2306 = vmax.f32 %v2211, 0.0
      %v2307 = vmax.f32 %v2214, 0.0
      %v2308 = vmax.f32 %v2217, 0.0
      %v2309 = vmax.f32 %v2220, 0.0
      %v2310 = vmax.f32 %v2223, 0.0
      %v2311 = vmax.f32 %v2226, 0.0
      %v2312 = vmax.f32 %v2229, 0.0
      %v2313 = vmax.f32 %v2232, 0.0
      %v2314 = vmax.f32 %v2235, 0.0
      %v2315 = vmax.f32 %v2238, 0.0
      %v2316 = vmax.f32 %v2241, 0.0
      %v2317 = vmax.f32 %v2244, 0.0
      %v2318 = vmax.f32 %v2247, 0.0
      %v2319 = vmax.f32 %v2250, 0.0
      %v2320 = vmax.f32 %v2253, 0.0
      %v2321 = vmax.f32 %v2256, 0.0
      %v2322 = vmax.f32 %v2259, 0.0
      %v2323 = vmax.f32 %v2262, 0.0
      %v2324 = vmax.f32 %v2265, 0.0
      %v2325 = vmax.f32 %v2268, 0.0
      %v2326 = vmax.f32 %v2271, 0.0
      %v2327 = vmax.f32 %v2274, 0.0
      %v2328 = vmax.f32 %v2277, 0.0
      %v2329 = vmax.f32 %v2280, 0.0
      %v2330 = vmax.f32 %v2283, 0.0
      %v2331 = vmax.f32 %v2286, 0.0
      %v2332 = vmax.f32 %v2289, 0.0
      %v2333 = vmax.f32 %v2292, 0.0
      %v2334 = vmax.f32 %v2295, 0.0
      %v2335 = vmax.f32 %v2298, 0.0
      %v2336 = vmax.f32 %v2301, 0.0
      %v2337 = vmax.f32 %v2304, 0.0
      %s2338 = scalar_lea.vmem %s5, 32
      %v2339 = vld [vmem:[%s2338] sm:$0xff]
      %v2340 = vld [vmem:[%s2338 + $0x8] sm:$0xff]
      %v2341 = vld [vmem:[%s2338 + $0x10] sm:$0xff]
      %v2342 = vld [vmem:[%s2338 + $0x18] sm:$0xff]
      %s2343 = scalar_lea.vmem %s6, 1
      %v2344 = vld [vmem:[%s2343] sm:$0x1]
      %v2346 = vperm.slane %v2344, 0
      %v2349 = vsel %vm1340, %v2306, 0
      %v2352 = vsel %vm1340, %v2307, 0
      %v2355 = vsel %vm1340, %v2308, 0
      %v2358 = vsel %vm1340, %v2309, 0
      %v2361 = vsel %vm1340, %v2310, 0
      %v2364 = vsel %vm1340, %v2311, 0
      %v2367 = vsel %vm1340, %v2312, 0
      %v2370 = vsel %vm1340, %v2313, 0
      %v2373 = vsel %vm1340, %v2314, 0
      %v2376 = vsel %vm1340, %v2315, 0
      %v2379 = vsel %vm1340, %v2316, 0
      %v2382 = vsel %vm1340, %v2317, 0
      %v2385 = vsel %vm1340, %v2318, 0
      %v2388 = vsel %vm1340, %v2319, 0
      %v2391 = vsel %vm1340, %v2320, 0
      %v2394 = vsel %vm1340, %v2321, 0
      %v2397 = vsel %vm1340, %v2322, 0
      %v2400 = vsel %vm1340, %v2323, 0
      %v2403 = vsel %vm1340, %v2324, 0
      %v2406 = vsel %vm1340, %v2325, 0
      %v2409 = vsel %vm1340, %v2326, 0
      %v2412 = vsel %vm1340, %v2327, 0
      %v2415 = vsel %vm1340, %v2328, 0
      %v2418 = vsel %vm1340, %v2329, 0
      %v2421 = vsel %vm1340, %v2330, 0
      %v2424 = vsel %vm1340, %v2331, 0
      %v2427 = vsel %vm1340, %v2332, 0
      %v2430 = vsel %vm1340, %v2333, 0
      %v2433 = vsel %vm1340, %v2334, 0
      %v2436 = vsel %vm1340, %v2335, 0
      %v2439 = vsel %vm1340, %v2336, 0
      %v2442 = vsel %vm1340, %v2337, 0
      %2444 = vmatpush.msra.mxu0 0.0
      %2445 = vmatpush.msra.mxu0 0.0
      %2446 = vmatpush.msra.mxu0 0.0
      %2447 = vmatpush.msra.mxu0 0.0
      %2448 = vmatpush.msra.mxu0 0.0
      %2449 = vmatpush.msra.mxu0 0.0
      %2450 = vmatpush.msra.mxu0 0.0
      %2451 = vmatpush.msra.mxu0 0.0
      %2452 = vmatpush.msra.mxu0 0.0
      %2453 = vmatpush.msra.mxu0 0.0
      %2454 = vmatpush.msra.mxu0 0.0
      %2455 = vmatpush.msra.mxu0 0.0
      %2456 = vmatpush.msra.mxu0 %v2342
      %2457 = vmatpush.msra.mxu0 %v2341
      %2458 = vmatpush.msra.mxu0 %v2340
      %2459 = vmatpush.msra.mxu0 %v2339
      %2460 = vmatmul.f32.gmra.mxu0 %v2349
      %v2461 = vpop.f32.mrf.mxu0
      %v2462 = vadd.f32 %v2346, %v2461
      %2463 = vmatmul.f32.gmra.mxu0 %v2352
      %v2464 = vpop.f32.mrf.mxu0
      %v2465 = vadd.f32 %v2346, %v2464
      %2466 = vmatmul.f32.gmra.mxu0 %v2355
      %v2467 = vpop.f32.mrf.mxu0
      %v2468 = vadd.f32 %v2346, %v2467
      %2469 = vmatmul.f32.gmra.mxu0 %v2358
      %v2470 = vpop.f32.mrf.mxu0
      %v2471 = vadd.f32 %v2346, %v2470
      %2472 = vmatmul.f32.gmra.mxu0 %v2361
      %v2473 = vpop.f32.mrf.mxu0
      %v2474 = vadd.f32 %v2346, %v2473
      %2475 = vmatmul.f32.gmra.mxu0 %v2364
      %v2476 = vpop.f32.mrf.mxu0
      %v2477 = vadd.f32 %v2346, %v2476
      %2478 = vmatmul.f32.gmra.mxu0 %v2367
      %v2479 = vpop.f32.mrf.mxu0
      %v2480 = vadd.f32 %v2346, %v2479
      %2481 = vmatmul.f32.gmra.mxu0 %v2370
      %v2482 = vpop.f32.mrf.mxu0
      %v2483 = vadd.f32 %v2346, %v2482
      %2484 = vmatmul.f32.gmra.mxu0 %v2373
      %v2485 = vpop.f32.mrf.mxu0
      %v2486 = vadd.f32 %v2346, %v2485
      %2487 = vmatmul.f32.gmra.mxu0 %v2376
      %v2488 = vpop.f32.mrf.mxu0
      %v2489 = vadd.f32 %v2346, %v2488
      %2490 = vmatmul.f32.gmra.mxu0 %v2379
      %v2491 = vpop.f32.mrf.mxu0
      %v2492 = vadd.f32 %v2346, %v2491
      %2493 = vmatmul.f32.gmra.mxu0 %v2382
      %v2494 = vpop.f32.mrf.mxu0
      %v2495 = vadd.f32 %v2346, %v2494
      %2496 = vmatmul.f32.gmra.mxu0 %v2385
      %v2497 = vpop.f32.mrf.mxu0
      %v2498 = vadd.f32 %v2346, %v2497
      %2499 = vmatmul.f32.gmra.mxu0 %v2388
      %v2500 = vpop.f32.mrf.mxu0
      %v2501 = vadd.f32 %v2346, %v2500
      %2502 = vmatmul.f32.gmra.mxu0 %v2391
      %v2503 = vpop.f32.mrf.mxu0
      %v2504 = vadd.f32 %v2346, %v2503
      %2505 = vmatmul.f32.gmra.mxu0 %v2394
      %v2506 = vpop.f32.mrf.mxu0
      %v2507 = vadd.f32 %v2346, %v2506
      %2508 = vmatmul.f32.gmra.mxu0 %v2397
      %v2509 = vpop.f32.mrf.mxu0
      %v2510 = vadd.f32 %v2346, %v2509
      %2511 = vmatmul.f32.gmra.mxu0 %v2400
      %v2512 = vpop.f32.mrf.mxu0
      %v2513 = vadd.f32 %v2346, %v2512
      %2514 = vmatmul.f32.gmra.mxu0 %v2403
      %v2515 = vpop.f32.mrf.mxu0
      %v2516 = vadd.f32 %v2346, %v2515
      %2517 = vmatmul.f32.gmra.mxu0 %v2406
      %v2518 = vpop.f32.mrf.mxu0
      %v2519 = vadd.f32 %v2346, %v2518
      %2520 = vmatmul.f32.gmra.mxu0 %v2409
      %v2521 = vpop.f32.mrf.mxu0
      %v2522 = vadd.f32 %v2346, %v2521
      %2523 = vmatmul.f32.gmra.mxu0 %v2412
      %v2524 = vpop.f32.mrf.mxu0
      %v2525 = vadd.f32 %v2346, %v2524
      %2526 = vmatmul.f32.gmra.mxu0 %v2415
      %v2527 = vpop.f32.mrf.mxu0
      %v2528 = vadd.f32 %v2346, %v2527
      %2529 = vmatmul.f32.gmra.mxu0 %v2418
      %v2530 = vpop.f32.mrf.mxu0
      %v2531 = vadd.f32 %v2346, %v2530
      %2532 = vmatmul.f32.gmra.mxu0 %v2421
      %v2533 = vpop.f32.mrf.mxu0
      %v2534 = vadd.f32 %v2346, %v2533
      %2535 = vmatmul.f32.gmra.mxu0 %v2424
      %v2536 = vpop.f32.mrf.mxu0
      %v2537 = vadd.f32 %v2346, %v2536
      %2538 = vmatmul.f32.gmra.mxu0 %v2427
      %v2539 = vpop.f32.mrf.mxu0
      %v2540 = vadd.f32 %v2346, %v2539
      %2541 = vmatmul.f32.gmra.mxu0 %v2430
      %v2542 = vpop.f32.mrf.mxu0
      %v2543 = vadd.f32 %v2346, %v2542
      %2544 = vmatmul.f32.gmra.mxu0 %v2433
      %v2545 = vpop.f32.mrf.mxu0
      %v2546 = vadd.f32 %v2346, %v2545
      %2547 = vmatmul.f32.gmra.mxu0 %v2436
      %v2548 = vpop.f32.mrf.mxu0
      %v2549 = vadd.f32 %v2346, %v2548
      %2550 = vmatmul.f32.gmra.mxu0 %v2439
      %v2551 = vpop.f32.mrf.mxu0
      %v2552 = vadd.f32 %v2346, %v2551
      %2553 = vmatmul.f32.gmra.mxu0 %v2442
      %v2554 = vpop.f32.mrf.mxu0
      %v2555 = vadd.f32 %v2346, %v2554
      %2556 = vdwg.mxu0
      %v2557 = vsel %vm978, %v2462, 0.0
      %v2558 = vsel %vm979, %v2465, 0.0
      %v2559 = vsel %vm980, %v2468, 0.0
      %v2560 = vsel %vm981, %v2471, 0.0
      %v2561 = vsel %vm982, %v2474, 0.0
      %v2562 = vsel %vm983, %v2477, 0.0
      %v2563 = vsel %vm984, %v2480, 0.0
      %v2564 = vsel %vm985, %v2483, 0.0
      %v2565 = vsel %vm986, %v2486, 0.0
      %v2566 = vsel %vm987, %v2489, 0.0
      %v2567 = vsel %vm988, %v2492, 0.0
      %v2568 = vsel %vm989, %v2495, 0.0
      %v2569 = vsel %vm990, %v2498, 0.0
      %v2570 = vsel %vm991, %v2501, 0.0
      %v2571 = vsel %vm992, %v2504, 0.0
      %v2572 = vsel %vm993, %v2507, 0.0
      %v2573 = vsel %vm994, %v2510, 0.0
      %v2574 = vsel %vm995, %v2513, 0.0
      %v2575 = vsel %vm996, %v2516, 0.0
      %v2576 = vsel %vm997, %v2519, 0.0
      %v2577 = vsel %vm998, %v2522, 0.0
      %v2578 = vsel %vm999, %v2525, 0.0
      %v2579 = vsel %vm1000, %v2528, 0.0
      %v2580 = vsel %vm1001, %v2531, 0.0
      %v2581 = vsel %vm1002, %v2534, 0.0
      %v2582 = vsel %vm1003, %v2537, 0.0
      %v2583 = vsel %vm1004, %v2540, 0.0
      %v2584 = vsel %vm1005, %v2543, 0.0
      %v2585 = vsel %vm1006, %v2546, 0.0
      %v2586 = vsel %vm1007, %v2549, 0.0
      %v2587 = vsel %vm1008, %v2552, 0.0
      %v2588 = vsel %vm1009, %v2555, 0.0
      %v2589 = vsel %vm1340, %v2557, 0.0
      %v2590 = vrot.slane %v2589, 4
      %v2591 = vadd.f32 %v2589, %v2590
      %v2592 = vrot.slane %v2591, 2
      %v2593 = vadd.f32 %v2591, %v2592
      %v2594 = vrot.slane %v2593, 1
      %v2595 = vadd.f32 %v2593, %v2594
      %v2596 = vsel %vm1340, %v2558, 0.0
      %v2597 = vrot.slane %v2596, 4
      %v2598 = vadd.f32 %v2596, %v2597
      %v2599 = vrot.slane %v2598, 2
      %v2600 = vadd.f32 %v2598, %v2599
      %v2601 = vrot.slane %v2600, 1
      %v2602 = vadd.f32 %v2600, %v2601
      %v2603 = vsel %vm1340, %v2559, 0.0
      %v2604 = vrot.slane %v2603, 4
      %v2605 = vadd.f32 %v2603, %v2604
      %v2606 = vrot.slane %v2605, 2
      %v2607 = vadd.f32 %v2605, %v2606
      %v2608 = vrot.slane %v2607, 1
      %v2609 = vadd.f32 %v2607, %v2608
      %v2610 = vsel %vm1340, %v2560, 0.0
      %v2611 = vrot.slane %v2610, 4
      %v2612 = vadd.f32 %v2610, %v2611
      %v2613 = vrot.slane %v2612, 2
      %v2614 = vadd.f32 %v2612, %v2613
      %v2615 = vrot.slane %v2614, 1
      %v2616 = vadd.f32 %v2614, %v2615
      %v2617 = vsel %vm1340, %v2561, 0.0
      %v2618 = vrot.slane %v2617, 4
      %v2619 = vadd.f32 %v2617, %v2618
      %v2620 = vrot.slane %v2619, 2
      %v2621 = vadd.f32 %v2619, %v2620
      %v2622 = vrot.slane %v2621, 1
      %v2623 = vadd.f32 %v2621, %v2622
      %v2624 = vsel %vm1340, %v2562, 0.0
      %v2625 = vrot.slane %v2624, 4
      %v2626 = vadd.f32 %v2624, %v2625
      %v2627 = vrot.slane %v2626, 2
      %v2628 = vadd.f32 %v2626, %v2627
      %v2629 = vrot.slane %v2628, 1
      %v2630 = vadd.f32 %v2628, %v2629
      %v2631 = vsel %vm1340, %v2563, 0.0
      %v2632 = vrot.slane %v2631, 4
      %v2633 = vadd.f32 %v2631, %v2632
      %v2634 = vrot.slane %v2633, 2
      %v2635 = vadd.f32 %v2633, %v2634
      %v2636 = vrot.slane %v2635, 1
      %v2637 = vadd.f32 %v2635, %v2636
      %v2638 = vsel %vm1340, %v2564, 0.0
      %v2639 = vrot.slane %v2638, 4
      %v2640 = vadd.f32 %v2638, %v2639
      %v2641 = vrot.slane %v2640, 2
      %v2642 = vadd.f32 %v2640, %v2641
      %v2643 = vrot.slane %v2642, 1
      %v2644 = vadd.f32 %v2642, %v2643
      %v2645 = vsel %vm1340, %v2565, 0.0
      %v2646 = vrot.slane %v2645, 4
      %v2647 = vadd.f32 %v2645, %v2646
      %v2648 = vrot.slane %v2647, 2
      %v2649 = vadd.f32 %v2647, %v2648
      %v2650 = vrot.slane %v2649, 1
      %v2651 = vadd.f32 %v2649, %v2650
      %v2652 = vsel %vm1340, %v2566, 0.0
      %v2653 = vrot.slane %v2652, 4
      %v2654 = vadd.f32 %v2652, %v2653
      %v2655 = vrot.slane %v2654, 2
      %v2656 = vadd.f32 %v2654, %v2655
      %v2657 = vrot.slane %v2656, 1
      %v2658 = vadd.f32 %v2656, %v2657
      %v2659 = vsel %vm1340, %v2567, 0.0
      %v2660 = vrot.slane %v2659, 4
      %v2661 = vadd.f32 %v2659, %v2660
      %v2662 = vrot.slane %v2661, 2
      %v2663 = vadd.f32 %v2661, %v2662
      %v2664 = vrot.slane %v2663, 1
      %v2665 = vadd.f32 %v2663, %v2664
      %v2666 = vsel %vm1340, %v2568, 0.0
      %v2667 = vrot.slane %v2666, 4
      %v2668 = vadd.f32 %v2666, %v2667
      %v2669 = vrot.slane %v2668, 2
      %v2670 = vadd.f32 %v2668, %v2669
      %v2671 = vrot.slane %v2670, 1
      %v2672 = vadd.f32 %v2670, %v2671
      %v2673 = vsel %vm1340, %v2569, 0.0
      %v2674 = vrot.slane %v2673, 4
      %v2675 = vadd.f32 %v2673, %v2674
      %v2676 = vrot.slane %v2675, 2
      %v2677 = vadd.f32 %v2675, %v2676
      %v2678 = vrot.slane %v2677, 1
      %v2679 = vadd.f32 %v2677, %v2678
      %v2680 = vsel %vm1340, %v2570, 0.0
      %v2681 = vrot.slane %v2680, 4
      %v2682 = vadd.f32 %v2680, %v2681
      %v2683 = vrot.slane %v2682, 2
      %v2684 = vadd.f32 %v2682, %v2683
      %v2685 = vrot.slane %v2684, 1
      %v2686 = vadd.f32 %v2684, %v2685
      %v2687 = vsel %vm1340, %v2571, 0.0
      %v2688 = vrot.slane %v2687, 4
      %v2689 = vadd.f32 %v2687, %v2688
      %v2690 = vrot.slane %v2689, 2
      %v2691 = vadd.f32 %v2689, %v2690
      %v2692 = vrot.slane %v2691, 1
      %v2693 = vadd.f32 %v2691, %v2692
      %v2694 = vsel %vm1340, %v2572, 0.0
      %v2695 = vrot.slane %v2694, 4
      %v2696 = vadd.f32 %v2694, %v2695
      %v2697 = vrot.slane %v2696, 2
      %v2698 = vadd.f32 %v2696, %v2697
      %v2699 = vrot.slane %v2698, 1
      %v2700 = vadd.f32 %v2698, %v2699
      %v2701 = vsel %vm1340, %v2573, 0.0
      %v2702 = vrot.slane %v2701, 4
      %v2703 = vadd.f32 %v2701, %v2702
      %v2704 = vrot.slane %v2703, 2
      %v2705 = vadd.f32 %v2703, %v2704
      %v2706 = vrot.slane %v2705, 1
      %v2707 = vadd.f32 %v2705, %v2706
      %v2708 = vsel %vm1340, %v2574, 0.0
      %v2709 = vrot.slane %v2708, 4
      %v2710 = vadd.f32 %v2708, %v2709
      %v2711 = vrot.slane %v2710, 2
      %v2712 = vadd.f32 %v2710, %v2711
      %v2713 = vrot.slane %v2712, 1
      %v2714 = vadd.f32 %v2712, %v2713
      %v2715 = vsel %vm1340, %v2575, 0.0
      %v2716 = vrot.slane %v2715, 4
      %v2717 = vadd.f32 %v2715, %v2716
      %v2718 = vrot.slane %v2717, 2
      %v2719 = vadd.f32 %v2717, %v2718
      %v2720 = vrot.slane %v2719, 1
      %v2721 = vadd.f32 %v2719, %v2720
      %v2722 = vsel %vm1340, %v2576, 0.0
      %v2723 = vrot.slane %v2722, 4
      %v2724 = vadd.f32 %v2722, %v2723
      %v2725 = vrot.slane %v2724, 2
      %v2726 = vadd.f32 %v2724, %v2725
      %v2727 = vrot.slane %v2726, 1
      %v2728 = vadd.f32 %v2726, %v2727
      %v2729 = vsel %vm1340, %v2577, 0.0
      %v2730 = vrot.slane %v2729, 4
      %v2731 = vadd.f32 %v2729, %v2730
      %v2732 = vrot.slane %v2731, 2
      %v2733 = vadd.f32 %v2731, %v2732
      %v2734 = vrot.slane %v2733, 1
      %v2735 = vadd.f32 %v2733, %v2734
      %v2736 = vsel %vm1340, %v2578, 0.0
      %v2737 = vrot.slane %v2736, 4
      %v2738 = vadd.f32 %v2736, %v2737
      %v2739 = vrot.slane %v2738, 2
      %v2740 = vadd.f32 %v2738, %v2739
      %v2741 = vrot.slane %v2740, 1
      %v2742 = vadd.f32 %v2740, %v2741
      %v2743 = vsel %vm1340, %v2579, 0.0
      %v2744 = vrot.slane %v2743, 4
      %v2745 = vadd.f32 %v2743, %v2744
      %v2746 = vrot.slane %v2745, 2
      %v2747 = vadd.f32 %v2745, %v2746
      %v2748 = vrot.slane %v2747, 1
      %v2749 = vadd.f32 %v2747, %v2748
      %v2750 = vsel %vm1340, %v2580, 0.0
      %v2751 = vrot.slane %v2750, 4
      %v2752 = vadd.f32 %v2750, %v2751
      %v2753 = vrot.slane %v2752, 2
      %v2754 = vadd.f32 %v2752, %v2753
      %v2755 = vrot.slane %v2754, 1
      %v2756 = vadd.f32 %v2754, %v2755
      %v2757 = vsel %vm1340, %v2581, 0.0
      %v2758 = vrot.slane %v2757, 4
      %v2759 = vadd.f32 %v2757, %v2758
      %v2760 = vrot.slane %v2759, 2
      %v2761 = vadd.f32 %v2759, %v2760
      %v2762 = vrot.slane %v2761, 1
      %v2763 = vadd.f32 %v2761, %v2762
      %v2764 = vsel %vm1340, %v2582, 0.0
      %v2765 = vrot.slane %v2764, 4
      %v2766 = vadd.f32 %v2764, %v2765
      %v2767 = vrot.slane %v2766, 2
      %v2768 = vadd.f32 %v2766, %v2767
      %v2769 = vrot.slane %v2768, 1
      %v2770 = vadd.f32 %v2768, %v2769
      %v2771 = vsel %vm1340, %v2583, 0.0
      %v2772 = vrot.slane %v2771, 4
      %v2773 = vadd.f32 %v2771, %v2772
      %v2774 = vrot.slane %v2773, 2
      %v2775 = vadd.f32 %v2773, %v2774
      %v2776 = vrot.slane %v2775, 1
      %v2777 = vadd.f32 %v2775, %v2776
      %v2778 = vsel %vm1340, %v2584, 0.0
      %v2779 = vrot.slane %v2778, 4
      %v2780 = vadd.f32 %v2778, %v2779
      %v2781 = vrot.slane %v2780, 2
      %v2782 = vadd.f32 %v2780, %v2781
      %v2783 = vrot.slane %v2782, 1
      %v2784 = vadd.f32 %v2782, %v2783
      %v2785 = vsel %vm1340, %v2585, 0.0
      %v2786 = vrot.slane %v2785, 4
      %v2787 = vadd.f32 %v2785, %v2786
      %v2788 = vrot.slane %v2787, 2
      %v2789 = vadd.f32 %v2787, %v2788
      %v2790 = vrot.slane %v2789, 1
      %v2791 = vadd.f32 %v2789, %v2790
      %v2792 = vsel %vm1340, %v2586, 0.0
      %v2793 = vrot.slane %v2792, 4
      %v2794 = vadd.f32 %v2792, %v2793
      %v2795 = vrot.slane %v2794, 2
      %v2796 = vadd.f32 %v2794, %v2795
      %v2797 = vrot.slane %v2796, 1
      %v2798 = vadd.f32 %v2796, %v2797
      %v2799 = vsel %vm1340, %v2587, 0.0
      %v2800 = vrot.slane %v2799, 4
      %v2801 = vadd.f32 %v2799, %v2800
      %v2802 = vrot.slane %v2801, 2
      %v2803 = vadd.f32 %v2801, %v2802
      %v2804 = vrot.slane %v2803, 1
      %v2805 = vadd.f32 %v2803, %v2804
      %v2806 = vsel %vm1340, %v2588, 0.0
      %v2807 = vrot.slane %v2806, 4
      %v2808 = vadd.f32 %v2806, %v2807
      %v2809 = vrot.slane %v2808, 2
      %v2810 = vadd.f32 %v2808, %v2809
      %v2811 = vrot.slane %v2810, 1
      %v2812 = vadd.f32 %v2810, %v2811
      %vm2845 = vcmask 1041409
      %v2846 = vsel %vm2845, %v2602, %v2595
      %vm2847 = vcmask 1042434
      %v2848 = vsel %vm2847, %v2609, %v2846
      %vm2849 = vcmask 1043459
      %v2850 = vsel %vm2849, %v2616, %v2848
      %vm2851 = vcmask 1044484
      %v2852 = vsel %vm2851, %v2623, %v2850
      %vm2853 = vcmask 1045509
      %v2854 = vsel %vm2853, %v2630, %v2852
      %vm2855 = vcmask 1046534
      %v2856 = vsel %vm2855, %v2637, %v2854
      %vm2857 = vcmask 1047559
      %v2858 = vsel %vm2857, %v2644, %v2856
      %v2859 = vsel %vm2845, %v2658, %v2651
      %v2860 = vsel %vm2847, %v2665, %v2859
      %v2861 = vsel %vm2849, %v2672, %v2860
      %v2862 = vsel %vm2851, %v2679, %v2861
      %v2863 = vsel %vm2853, %v2686, %v2862
      %v2864 = vsel %vm2855, %v2693, %v2863
      %v2865 = vsel %vm2857, %v2700, %v2864
      %v2866 = vsel %vm2845, %v2714, %v2707
      %v2867 = vsel %vm2847, %v2721, %v2866
      %v2868 = vsel %vm2849, %v2728, %v2867
      %v2869 = vsel %vm2851, %v2735, %v2868
      %v2870 = vsel %vm2853, %v2742, %v2869
      %v2871 = vsel %vm2855, %v2749, %v2870
      %v2872 = vsel %vm2857, %v2756, %v2871
      %v2873 = vsel %vm2845, %v2770, %v2763
      %v2874 = vsel %vm2847, %v2777, %v2873
      %v2875 = vsel %vm2849, %v2784, %v2874
      %v2876 = vsel %vm2851, %v2791, %v2875
      %v2877 = vsel %vm2853, %v2798, %v2876
      %v2878 = vsel %vm2855, %v2805, %v2877
      %v2879 = vsel %vm2857, %v2812, %v2878
      %2884 = vst.msk [vmem:[%s280] sm:$0xff] %vm1340, %v2858
      %2885 = vst.msk [vmem:[%s280 + $0x8] sm:$0xff] %vm1340, %v2865
      %2886 = vst.msk [vmem:[%s280 + $0x10] sm:$0xff] %vm1340, %v2872
      %2887 = vst.msk [vmem:[%s280 + $0x18] sm:$0xff] %vm1340, %v2879
      %s2888 = smul.u32 4, %s18
      %p2889 = scmp.lt.s32.totalorder %s2888, 15
      %s2890 = scalar_select %p2889, %s2888, 15
      %s2891 = smul.addr %s2890, 8
      %s2892 = scalar_lea.vmem %s7, %s2891
      // Predicated region
      $region49: #{tpu_custom_call.1} parent=47 // pred_check
        %p2893 = pneg %p188
      $region50: #{tpu_custom_call.1} parent=47 // pred_check_branch
        %2895 = sbr.rel (%p2893) target = $region52
      $region51: #{tpu_custom_call.1} parent=47 // pred_region
        %s2896 = smul.u32 4, %s18
      $region52: #{tpu_custom_call.1} parent=47 // pred_fallthru
        _
    $region48: #{tpu_custom_call.1} parent=5 // pred_fallthru
      _
    %p2897 = scmp.le.s32.totalorder 2, %s13
    // Predicated region
    $region53: #{tpu_custom_call.1} parent=5 // pred_check
      %p2898 = pneg %p2897
    $region54: #{tpu_custom_call.1} parent=5 // pred_check_branch
      %2900 = sbr.rel (%p2898) target = $region56
    $region55: #{tpu_custom_call.1} parent=5 // pred_region
      %s2901 = ssub.s32 %s13, 2
      // Predicated region
      $region57: #{tpu_custom_call.1} parent=55 // pred_check
        %p2902 = pneg %p194
      $region58: #{tpu_custom_call.1} parent=55 // pred_check_branch
        %2904 = sbr.rel (%p2902) target = $region60
      $region59: #{tpu_custom_call.1} parent=55 // pred_region
        %s2905 = smul.u32 4, %s19
        %p2906 = scmp.lt.s32.totalorder %s2905, 15
        %s2907 = scalar_select %p2906, %s2905, 15
        %s2908 = smul.addr %s2907, 8
        %s2909 = scalar_lea.vmem %s7, %s2908
      $region60: #{tpu_custom_call.1} parent=55 // pred_fallthru
        _
    $region56: #{tpu_custom_call.1} parent=5 // pred_fallthru
      _
  $region6: #{tpu_custom_call.1} parent=0 // loop_footer
    %s17 = sadd.s32 1, %s13
  $region7: #{tpu_custom_call.1} parent=0 // loop_footer_branch
    %12 = sbr.rel target = $region3
  $region8: #{tpu_custom_call.1} parent=0 // loop_exit
    _

</llo_original>
